<compile_context>
chip_gen: v6e
topology: v6e:2x2x1
jax: 0.10.0
libtpu: 0.0.40
codegen_flags: <defaults>
</compile_context>

<pallas_src>
import functools

import jax
import jax.numpy as jnp
from jax.experimental import pallas as pl
from jax.experimental.pallas import tpu as pltpu

LEAKINESS = 0.01
BN_EPS = 1e-5
LANE = 128
H1, H2 = 400, 300


def _round_up(n, m):
    return ((n + m - 1) // m) * m


def _leaky_relu(x, slope):
    return jnp.where(x > 0, x, slope * x)


def actor_kernel(x_ref, w_ref, b_ref, o_ref,
                 sum_ref, sumsq_ref, mean_ref, rstd_ref,
                 *, true_batch, tile_m, s_pad, h1_pad, h2_pad, a_pad,
                 leakiness, eps):
    phase = pl.program_id(0)   # 0: BN batch statistics, 1: normalize + fc2/fc3
    tile = pl.program_id(1)    # batch-tile index

    # ---- fc1 (bf16 MXU inputs, f32 accumulate) + leaky_relu.  Needed in both
    #      phases; recomputed in phase 1 instead of storing h1 to HBM. ----
    x = x_ref[...].astype(jnp.bfloat16)
    w1 = w_ref[0:s_pad, 0:h1_pad]
    b1 = b_ref[:, 0:h1_pad]
    h1 = jnp.dot(x, w1, preferred_element_type=jnp.float32) + b1
    h1 = _leaky_relu(h1, leakiness)

    # ------------- phase 0: accumulate global sum / sum-of-squares ----------
    @pl.when(phase == 0)
    def _stats():
        @pl.when(tile == 0)
        def _init():
            sum_ref[...] = jnp.zeros_like(sum_ref)
            sumsq_ref[...] = jnp.zeros_like(sumsq_ref)

        # Mask padded batch rows out of the statistics (zero-padded input rows
        # produce leaky_relu(b1), which must not pollute mean/var).
        row = jax.lax.broadcasted_iota(jnp.int32, (tile_m, 1), 0) + tile * tile_m
        h1m = jnp.where(row < true_batch, h1, 0.0)
        sum_ref[...] += jnp.sum(h1m, axis=0, keepdims=True)
        sumsq_ref[...] += jnp.sum(h1m * h1m, axis=0, keepdims=True)

    # ------------- phase 1: BN normalize + fc2 + fc3 + tanh -----------------
    @pl.when(phase == 1)
    def _forward():
        @pl.when(tile == 0)
        def _finalize_stats():
            inv_n = jnp.float32(1.0 / true_batch)
            mean = sum_ref[...] * inv_n
            var = sumsq_ref[...] * inv_n - mean * mean      # biased variance
            mean_ref[...] = mean
            rstd_ref[...] = jax.lax.rsqrt(var + eps)

        # Padded all-zero feature columns stay zero: mean=0, h1=0 => 0*rstd=0.
        h1n = (h1 - mean_ref[...]) * rstd_ref[...]

        w2 = w_ref[s_pad:s_pad + h1_pad, 0:h2_pad]
        b2 = b_ref[:, h1_pad:h1_pad + h2_pad]
        h2 = jnp.dot(h1n.astype(jnp.bfloat16), w2,
                     preferred_element_type=jnp.float32) + b2
        h2 = _leaky_relu(h2, leakiness)

        w3 = w_ref[s_pad + h1_pad:s_pad + h1_pad + h2_pad, 0:a_pad]
        b3 = b_ref[:, h1_pad + h2_pad:h1_pad + h2_pad + a_pad]
        h3 = jnp.dot(h2.astype(jnp.bfloat16), w3,
                     preferred_element_type=jnp.float32) + b3
        o_ref[...] = jnp.tanh(h3).astype(o_ref.dtype)


def init_actor_params(key, state_size, action_size):
    """Deterministic parameter init mirroring the PyTorch reset_parameters().

    PyTorch's `hidden_init` uses weight.size()[0] == out_features, so
    lim = 1/sqrt(out_features) for fc1/fc2 weights.  Linear biases keep the
    default PyTorch init: uniform(-1/sqrt(in_features), 1/sqrt(in_features)).
    Weights are stored transposed as [in_features, out_features].
    """
    k = jax.random.split(key, 6)

    lim1_w = 1.0 / jnp.sqrt(jnp.float32(H1))           # hidden_init(fc1)
    lim2_w = 1.0 / jnp.sqrt(jnp.float32(H2))           # hidden_init(fc2)
    lim3_w = 3e-3
    lim1_b = 1.0 / jnp.sqrt(jnp.float32(state_size))   # default bias init
    lim2_b = 1.0 / jnp.sqrt(jnp.float32(H1))
    lim3_b = 1.0 / jnp.sqrt(jnp.float32(H2))

    def u(key, shape, lim):
        return jax.random.uniform(key, shape, jnp.float32, -lim, lim)

    return {
        "w1": u(k[0], (state_size, H1), lim1_w),
        "b1": u(k[1], (1, H1), lim1_b),
        "w2": u(k[2], (H1, H2), lim2_w),
        "b2": u(k[3], (1, H2), lim2_b),
        "w3": u(k[4], (H2, action_size), lim3_w),
        "b3": u(k[5], (1, action_size), lim3_b),
    }


def _pad_to(a, shape):
    pads = [(0, t - s) for s, t in zip(a.shape, shape)]
    return jnp.pad(a, pads)


def prepare_actor_params(params, *, weight_dtype=jnp.bfloat16):
    """One-time parameter prep: lane-pad feature dims, pack the three weight
    matrices into a single bf16 slab and the three biases into a single f32
    slab (fewer, larger DMAs).  Call once, reuse every step.
    # TODO(synk): optional fp8 weight storage on v7x not implemented (bf16 kept
    # for v5e/v6e compatibility and accuracy)."""
    state_size = params["w1"].shape[0]
    action_size = params["w3"].shape[1]
    s_pad = _round_up(state_size, LANE)    # e.g. 33  -> 128
    h1_pad = _round_up(H1, LANE)           # 400 -> 512
    h2_pad = _round_up(H2, LANE)           # 300 -> 384
    a_pad = _round_up(action_size, LANE)   # e.g. 4   -> 128
    w_cols = max(h1_pad, h2_pad, a_pad)    # 512

    # Weight slab rows: [0:s_pad]=w1, [s_pad:s_pad+h1_pad]=w2, rest=w3.
    w_slab = jnp.concatenate([
        _pad_to(params["w1"], (s_pad, w_cols)),
        _pad_to(params["w2"], (h1_pad, w_cols)),
        _pad_to(params["w3"], (h2_pad, w_cols)),
    ], axis=0).astype(weight_dtype)

    # Bias slab columns: [0:h1_pad]=b1, [h1_pad:h1_pad+h2_pad]=b2, rest=b3.
    b_slab = jnp.concatenate([
        _pad_to(params["b1"], (1, h1_pad)),
        _pad_to(params["b2"], (1, h2_pad)),
        _pad_to(params["b3"], (1, a_pad)),
    ], axis=1).astype(jnp.float32)

    return {
        "w": w_slab, "b": b_slab,
        "state_size": state_size, "action_size": action_size,
        "s_pad": s_pad, "h1_pad": h1_pad, "h2_pad": h2_pad, "a_pad": a_pad,
    }


def actor_forward(x, prepared, *, leakiness=LEAKINESS, tile_m=256):
    """Run the Actor forward pass as a single fused, batch-tiled Pallas kernel.

    x: [batch, state_size] float32 (or [state_size], mirroring torch.unsqueeze)
    prepared: output of prepare_actor_params().
    """
    if x.ndim == 1:
        # Mirrors torch.unsqueeze(state, 0).  NOTE: training-mode BatchNorm on
        # batch=1 has var=0 and degenerates (PyTorch would raise); batch the
        # states whenever possible.
        x = x[None, :]
    batch = x.shape[0]

    s_pad = prepared["s_pad"]
    h1_pad = prepared["h1_pad"]
    h2_pad = prepared["h2_pad"]
    a_pad = prepared["a_pad"]
    action_size = prepared["action_size"]

    # Batch tile: <=256 rows (v6e/v7x MXU M dim), multiple of 16 (bf16 sublane
    # packing).  Pad the batch to a tile multiple; padded rows are masked out
    # of the BN statistics inside the kernel and sliced off afterwards.
    tile_m = min(tile_m, _round_up(batch, 16))
    batch_pad = _round_up(batch, tile_m)
    num_tiles = batch_pad // tile_m

    x = x.astype(jnp.float32)
    x = jnp.pad(x, ((0, batch_pad - batch), (0, s_pad - x.shape[1])))

    kernel = functools.partial(
        actor_kernel, true_batch=batch, tile_m=tile_m,
        s_pad=s_pad, h1_pad=h1_pad, h2_pad=h2_pad, a_pad=a_pad,
        leakiness=leakiness, eps=BN_EPS)

    w_rows, w_cols = prepared["w"].shape
    b_cols = prepared["b"].shape[1]

    out_padded = pl.pallas_call(
        kernel,
        out_shape=jax.ShapeDtypeStruct((batch_pad, a_pad), jnp.float32),
        grid_spec=pltpu.PrefetchScalarGridSpec(
            num_scalar_prefetch=0,
            grid=(2, num_tiles),   # (phase, batch tile): 0=stats, 1=forward
            in_specs=[
                # x tile: auto-pipelined, re-streamed in each phase.
                pl.BlockSpec((tile_m, s_pad), lambda p, i: (i, 0)),
                # Packed weight / bias slabs: constant index_map => DMA'd once,
                # VMEM-resident for the whole grid.
                pl.BlockSpec((w_rows, w_cols), lambda p, i: (0, 0)),
                pl.BlockSpec((1, b_cols), lambda p, i: (0, 0)),
            ],
            # p*i: during the stats phase all steps map to block 0 (never
            # written, never flushed); in phase 1 each tile writes its block.
            out_specs=pl.BlockSpec((tile_m, a_pad), lambda p, i: (p * i, 0)),
            scratch_shapes=[
                pltpu.VMEM((1, h1_pad), jnp.float32),   # sum
                pltpu.VMEM((1, h1_pad), jnp.float32),   # sum of squares
                pltpu.VMEM((1, h1_pad), jnp.float32),   # mean
                pltpu.VMEM((1, h1_pad), jnp.float32),   # rsqrt(var + eps)
            ],
        ),
        compiler_params=pltpu.CompilerParams(
            # Both axes carry the BN reduction (scratch accumulators), so they
            # must stay sequential; a megacore 'parallel' batch split would
            # compute per-core statistics and diverge from the reference.
            dimension_semantics=("arbitrary", "arbitrary"),
            vmem_limit_bytes=16 << 20,
        ),
    )(x, prepared["w"], prepared["b"])

    return out_padded[:batch, :action_size]


def actor_reference(x, params, *, leakiness=LEAKINESS):
    """Pure-JAX f32 reference of the PyTorch forward (training-mode BN)."""
    if x.ndim == 1:
        x = x[None, :]
    h1 = _leaky_relu(x @ params["w1"] + params["b1"], leakiness)
    mean = jnp.mean(h1, axis=0, keepdims=True)
    var = jnp.mean((h1 - mean) ** 2, axis=0, keepdims=True)
    h1n = (h1 - mean) * jax.lax.rsqrt(var + BN_EPS)
    h2 = _leaky_relu(h1n @ params["w2"] + params["b2"], leakiness)
    return jnp.tanh(h2 @ params["w3"] + params["b3"])


# TODO(synk): BatchNorm1d running-stat updates / eval-mode normalization are not
# implemented; the kernel always uses training-mode batch statistics.

if __name__ == "__main__":
    key = jax.random.PRNGKey(0)
    kx, kp = jax.random.split(key)

    # Reacher-style sizes.  batch=384 amortizes launch/DMA overhead, exercises
    # two 256-row grid tiles AND the padded-row masking path (384 % 256 != 0).
    batch, state_size, action_size = 384, 33, 4
    x = jax.random.normal(kx, (batch, state_size), jnp.float32)

    params = init_actor_params(kp, state_size, action_size)
    prepared = prepare_actor_params(params)   # pad + pack + bf16 cast, done once

    out = actor_forward(x, prepared)
    jax.block_until_ready(out)

    assert out.shape == (batch, action_size)
    assert bool(jnp.all(jnp.abs(out) <= 1.0)), "tanh output out of range"

    # Cross-check against the f32 pure-JAX reference (bf16 weights => loose tol).
    ref = actor_reference(x, params)
    err = float(jnp.max(jnp.abs(out - ref)))
    assert err < 5e-2, f"kernel/reference mismatch: max abs err {err}"

    print("KERNEL_OK")
</pallas_src>

<mosaic_0001>
module attributes {stable_mosaic.version = 11 : i64} {
  func.func @actor_kernel(%arg0: i32, %arg1: i32, %arg2: memref<256x128xf32, #tpu.memory_space<vmem>>, %arg3: memref<1024x512xbf16, #tpu.memory_space<vmem>>, %arg4: memref<1x1024xf32, #tpu.memory_space<vmem>>, %arg5: memref<256x128xf32, #tpu.memory_space<vmem>>, %arg6: memref<1x512xf32, #tpu.memory_space<vmem>>, %arg7: memref<1x512xf32, #tpu.memory_space<vmem>>, %arg8: memref<1x512xf32, #tpu.memory_space<vmem>>, %arg9: memref<1x512xf32, #tpu.memory_space<vmem>>) attributes {dimension_semantics = [#tpu.dimension_semantics<arbitrary>, #tpu.dimension_semantics<arbitrary>], iteration_bounds = array<i64: 2, 2>, scalar_prefetch = 0 : i64, scratch_operands = 4 : i64, tpu.core_type = #tpu.core_type<tc>, window_params = [{transform_indices = @transform_0, window_bounds = array<i64: 256, 128>}, {pipeline_mode = #tpu.pipeline_mode<synchronous>, transform_indices = @transform_1, window_bounds = array<i64: 1024, 512>}, {pipeline_mode = #tpu.pipeline_mode<synchronous>, transform_indices = @transform_2, window_bounds = array<i64: 1, 1024>}, {transform_indices = @transform_3, window_bounds = array<i64: 256, 128>}]} {
    %c0 = arith.constant 0 : index
    %c0_0 = arith.constant 0 : index
    %0 = vector.load %arg2[%c0, %c0_0] : memref<256x128xf32, #tpu.memory_space<vmem>>, vector<256x128xf32>
    %1 = arith.truncf %0 : vector<256x128xf32> to vector<256x128xbf16>
    %c0_1 = arith.constant 0 : index
    %c0_2 = arith.constant 0 : index
    %2 = vector.load %arg3[%c0_1, %c0_2] : memref<1024x512xbf16, #tpu.memory_space<vmem>>, vector<128x512xbf16>
    %c0_3 = arith.constant 0 : index
    %c0_4 = arith.constant 0 : index
    %3 = vector.load %arg4[%c0_3, %c0_4] : memref<1x1024xf32, #tpu.memory_space<vmem>>, vector<1x512xf32>
    %cst = arith.constant dense<0.000000e+00> : vector<256x512xf32>
    %4 = tpu.matmul %1, %2, %cst {dimension_numbers = #tpu.dot_dimension_numbers<[1], [0], [0], [1], [0, 0, 1, 1], [], []>} : vector<256x128xbf16>, vector<128x512xbf16>, vector<256x512xf32> -> vector<256x512xf32>
    %5 = vector.broadcast %3 : vector<1x512xf32> to vector<256x512xf32>
    %6 = arith.addf %4, %5 : vector<256x512xf32>
    %cst_5 = arith.constant 0.000000e+00 : f32
    %7 = vector.broadcast %cst_5 : f32 to vector<256x512xf32>
    %8 = arith.cmpf ogt, %6, %7 : vector<256x512xf32>
    %cst_6 = arith.constant 0.00999999977 : f32
    %9 = vector.broadcast %cst_6 : f32 to vector<256x512xf32>
    %10 = arith.mulf %9, %6 : vector<256x512xf32>
    %11 = arith.select %8, %6, %10 : vector<256x512xi1>, vector<256x512xf32>
    %c0_i32 = arith.constant 0 : i32
    %12 = arith.cmpi eq, %arg0, %c0_i32 : i32
    %13 = arith.extui %12 : i1 to i32
    %c0_i32_7 = arith.constant 0 : i32
    %14 = arith.cmpi ne, %13, %c0_i32_7 : i32
    scf.if %14 {
      %c0_i32_9 = arith.constant 0 : i32
      %18 = arith.cmpi eq, %arg1, %c0_i32_9 : i32
      %19 = arith.extui %18 : i1 to i32
      %c0_i32_10 = arith.constant 0 : i32
      %20 = arith.cmpi ne, %19, %c0_i32_10 : i32
      scf.if %20 {
        %cst_22 = arith.constant 0.000000e+00 : f32
        %42 = vector.broadcast %cst_22 : f32 to vector<1x512xf32>
        %c0_23 = arith.constant 0 : index
        %c0_24 = arith.constant 0 : index
        %43 = vector.load %arg6[%c0_23, %c0_24] : memref<1x512xf32, #tpu.memory_space<vmem>>, vector<1x512xf32>
        tpu.vector_store %arg6[%c0_23, %c0_24], %42 {strides = array<i32>} : memref<1x512xf32, #tpu.memory_space<vmem>>, vector<1x512xf32>,
        %cst_25 = arith.constant 0.000000e+00 : f32
        %44 = vector.broadcast %cst_25 : f32 to vector<1x512xf32>
        %c0_26 = arith.constant 0 : index
        %c0_27 = arith.constant 0 : index
        %45 = vector.load %arg7[%c0_26, %c0_27] : memref<1x512xf32, #tpu.memory_space<vmem>>, vector<1x512xf32>
        tpu.vector_store %arg7[%c0_26, %c0_27], %44 {strides = array<i32>} : memref<1x512xf32, #tpu.memory_space<vmem>>, vector<1x512xf32>,
      } else {
      }
      %21 = tpu.iota {dimensions = array<i32: 0>} : vector<256x1xi32>
      %c256_i32 = arith.constant 256 : i32
      %22 = arith.muli %arg1, %c256_i32 : i32
      %23 = vector.broadcast %22 : i32 to vector<256x1xi32>
      %24 = arith.addi %21, %23 : vector<256x1xi32>
      %c384_i32 = arith.constant 384 : i32
      %25 = vector.broadcast %c384_i32 : i32 to vector<256x1xi32>
      %26 = arith.cmpi slt, %24, %25 : vector<256x1xi32>
      %cst_11 = arith.constant 0.000000e+00 : f32
      %27 = vector.shape_cast %26 : vector<256x1xi1> to vector<256x1xi1>
      %28 = vector.broadcast %27 : vector<256x1xi1> to vector<256x512xi1>
      %29 = vector.broadcast %cst_11 : f32 to vector<256x512xf32>
      %30 = arith.select %28, %11, %29 : vector<256x512xi1>, vector<256x512xf32>
      %c0_12 = arith.constant 0 : index
      %c0_13 = arith.constant 0 : index
      %31 = vector.load %arg6[%c0_12, %c0_13] : memref<1x512xf32, #tpu.memory_space<vmem>>, vector<1x512xf32>
      %cst_14 = arith.constant dense<0.000000e+00> : vector<512xf32>
      %32 = vector.multi_reduction <add>, %30, %cst_14 [0] : vector<256x512xf32> to vector<512xf32>
      %33 = vector.shape_cast %32 : vector<512xf32> to vector<1x512xf32>
      %34 = arith.addf %31, %33 : vector<1x512xf32>
      %c0_15 = arith.constant 0 : index
      %c0_16 = arith.constant 0 : index
      %35 = vector.load %arg6[%c0_15, %c0_16] : memref<1x512xf32, #tpu.memory_space<vmem>>, vector<1x512xf32>
      tpu.vector_store %arg6[%c0_15, %c0_16], %34 {strides = array<i32>} : memref<1x512xf32, #tpu.memory_space<vmem>>, vector<1x512xf32>,
      %c0_17 = arith.constant 0 : index
      %c0_18 = arith.constant 0 : index
      %36 = vector.load %arg7[%c0_17, %c0_18] : memref<1x512xf32, #tpu.memory_space<vmem>>, vector<1x512xf32>
      %37 = arith.mulf %30, %30 : vector<256x512xf32>
      %cst_19 = arith.constant dense<0.000000e+00> : vector<512xf32>
      %38 = vector.multi_reduction <add>, %37, %cst_19 [0] : vector<256x512xf32> to vector<512xf32>
      %39 = vector.shape_cast %38 : vector<512xf32> to vector<1x512xf32>
      %40 = arith.addf %36, %39 : vector<1x512xf32>
      %c0_20 = arith.constant 0 : index
      %c0_21 = arith.constant 0 : index
      %41 = vector.load %arg7[%c0_20, %c0_21] : memref<1x512xf32, #tpu.memory_space<vmem>>, vector<1x512xf32>
      tpu.vector_store %arg7[%c0_20, %c0_21], %40 {strides = array<i32>} : memref<1x512xf32, #tpu.memory_space<vmem>>, vector<1x512xf32>,
    } else {
    }
    %c1_i32 = arith.constant 1 : i32
    %15 = arith.cmpi eq, %arg0, %c1_i32 : i32
    %16 = arith.extui %15 : i1 to i32
    %c0_i32_8 = arith.constant 0 : i32
    %17 = arith.cmpi ne, %16, %c0_i32_8 : i32
    scf.if %17 {
      %c0_i32_9 = arith.constant 0 : i32
      %18 = arith.cmpi eq, %arg1, %c0_i32_9 : i32
      %19 = arith.extui %18 : i1 to i32
      %c0_i32_10 = arith.constant 0 : i32
      %20 = arith.cmpi ne, %19, %c0_i32_10 : i32
      scf.if %20 {
        %c0_25 = arith.constant 0 : index
        %c0_26 = arith.constant 0 : index
        %46 = vector.load %arg6[%c0_25, %c0_26] : memref<1x512xf32, #tpu.memory_space<vmem>>, vector<1x512xf32>
        %cst_27 = arith.constant 0.00260416674 : f32
        %47 = vector.broadcast %cst_27 : f32 to vector<1x512xf32>
        %48 = arith.mulf %46, %47 : vector<1x512xf32>
        %c0_28 = arith.constant 0 : index
        %c0_29 = arith.constant 0 : index
        %49 = vector.load %arg7[%c0_28, %c0_29] : memref<1x512xf32, #tpu.memory_space<vmem>>, vector<1x512xf32>
        %cst_30 = arith.constant 0.00260416674 : f32
        %50 = vector.broadcast %cst_30 : f32 to vector<1x512xf32>
        %51 = arith.mulf %49, %50 : vector<1x512xf32>
        %52 = arith.mulf %48, %48 : vector<1x512xf32>
        %53 = arith.subf %51, %52 : vector<1x512xf32>
        %c0_31 = arith.constant 0 : index
        %c0_32 = arith.constant 0 : index
        %54 = vector.load %arg8[%c0_31, %c0_32] : memref<1x512xf32, #tpu.memory_space<vmem>>, vector<1x512xf32>
        tpu.vector_store %arg8[%c0_31, %c0_32], %48 {strides = array<i32>} : memref<1x512xf32, #tpu.memory_space<vmem>>, vector<1x512xf32>,
        %cst_33 = arith.constant 9.99999974E-6 : f32
        %55 = vector.broadcast %cst_33 : f32 to vector<1x512xf32>
        %56 = arith.addf %53, %55 : vector<1x512xf32>
        %57 = math.rsqrt %56 : vector<1x512xf32>
        %c0_34 = arith.constant 0 : index
        %c0_35 = arith.constant 0 : index
        %58 = vector.load %arg9[%c0_34, %c0_35] : memref<1x512xf32, #tpu.memory_space<vmem>>, vector<1x512xf32>
        tpu.vector_store %arg9[%c0_34, %c0_35], %57 {strides = array<i32>} : memref<1x512xf32, #tpu.memory_space<vmem>>, vector<1x512xf32>,
      } else {
      }
      %c0_11 = arith.constant 0 : index
      %c0_12 = arith.constant 0 : index
      %21 = vector.load %arg8[%c0_11, %c0_12] : memref<1x512xf32, #tpu.memory_space<vmem>>, vector<1x512xf32>
      %22 = vector.broadcast %21 : vector<1x512xf32> to vector<256x512xf32>
      %23 = arith.subf %11, %22 : vector<256x512xf32>
      %c0_13 = arith.constant 0 : index
      %c0_14 = arith.constant 0 : index
      %24 = vector.load %arg9[%c0_13, %c0_14] : memref<1x512xf32, #tpu.memory_space<vmem>>, vector<1x512xf32>
      %25 = vector.broadcast %24 : vector<1x512xf32> to vector<256x512xf32>
      %26 = arith.mulf %23, %25 : vector<256x512xf32>
      %c128 = arith.constant 128 : index
      %c0_15 = arith.constant 0 : index
      %27 = vector.load %arg3[%c128, %c0_15] : memref<1024x512xbf16, #tpu.memory_space<vmem>>, vector<512x384xbf16>
      %c0_16 = arith.constant 0 : index
      %c512 = arith.constant 512 : index
      %28 = vector.load %arg4[%c0_16, %c512] : memref<1x1024xf32, #tpu.memory_space<vmem>>, vector<1x384xf32>
      %29 = arith.truncf %26 : vector<256x512xf32> to vector<256x512xbf16>
      %cst_17 = arith.constant dense<0.000000e+00> : vector<256x384xf32>
      %30 = tpu.matmul %29, %27, %cst_17 {dimension_numbers = #tpu.dot_dimension_numbers<[1], [0], [0], [1], [0, 0, 1, 1], [], []>} : vector<256x512xbf16>, vector<512x384xbf16>, vector<256x384xf32> -> vector<256x384xf32>
      %31 = vector.broadcast %28 : vector<1x384xf32> to vector<256x384xf32>
      %32 = arith.addf %30, %31 : vector<256x384xf32>
      %cst_18 = arith.constant 0.000000e+00 : f32
      %33 = vector.broadcast %cst_18 : f32 to vector<256x384xf32>
      %34 = arith.cmpf ogt, %32, %33 : vector<256x384xf32>
      %cst_19 = arith.constant 0.00999999977 : f32
      %35 = vector.broadcast %cst_19 : f32 to vector<256x384xf32>
      %36 = arith.mulf %35, %32 : vector<256x384xf32>
      %37 = arith.select %34, %32, %36 : vector<256x384xi1>, vector<256x384xf32>
      %c640 = arith.constant 640 : index
      %c0_20 = arith.constant 0 : index
      %38 = vector.load %arg3[%c640, %c0_20] : memref<1024x512xbf16, #tpu.memory_space<vmem>>, vector<384x128xbf16>
      %c0_21 = arith.constant 0 : index
      %c896 = arith.constant 896 : index
      %39 = vector.load %arg4[%c0_21, %c896] : memref<1x1024xf32, #tpu.memory_space<vmem>>, vector<1x128xf32>
      %40 = arith.truncf %37 : vector<256x384xf32> to vector<256x384xbf16>
      %cst_22 = arith.constant dense<0.000000e+00> : vector<256x128xf32>
      %41 = tpu.matmul %40, %38, %cst_22 {dimension_numbers = #tpu.dot_dimension_numbers<[1], [0], [0], [1], [0, 0, 1, 1], [], []>} : vector<256x384xbf16>, vector<384x128xbf16>, vector<256x128xf32> -> vector<256x128xf32>
      %42 = vector.broadcast %39 : vector<1x128xf32> to vector<256x128xf32>
      %43 = arith.addf %41, %42 : vector<256x128xf32>
      %44 = math.tanh %43 : vector<256x128xf32>
      %c0_23 = arith.constant 0 : index
      %c0_24 = arith.constant 0 : index
      %45 = vector.load %arg5[%c0_23, %c0_24] : memref<256x128xf32, #tpu.memory_space<vmem>>, vector<256x128xf32>
      tpu.vector_store %arg5[%c0_23, %c0_24], %44 {strides = array<i32>} : memref<256x128xf32, #tpu.memory_space<vmem>>, vector<256x128xf32>,
    } else {
    }
    return
  }
  func.func @transform_0(%arg0: i32, %arg1: i32) -> (i32, i32) {
    %c0_i32 = arith.constant 0 : i32
    %c0_i32_0 = arith.constant 0 : i32
    return %arg1, %c0_i32 : i32, i32
  }
  func.func @transform_1(%arg0: i32, %arg1: i32) -> (i32, i32) {
    %c0_i32 = arith.constant 0 : i32
    %c0_i32_0 = arith.constant 0 : i32
    %c0_i32_1 = arith.constant 0 : i32
    return %c0_i32, %c0_i32_0 : i32, i32
  }
  func.func @transform_2(%arg0: i32, %arg1: i32) -> (i32, i32) {
    %c0_i32 = arith.constant 0 : i32
    %c0_i32_0 = arith.constant 0 : i32
    %c0_i32_1 = arith.constant 0 : i32
    return %c0_i32, %c0_i32_0 : i32, i32
  }
  func.func @transform_3(%arg0: i32, %arg1: i32) -> (i32, i32) {
    %0 = arith.muli %arg0, %arg1 : i32
    %c0_i32 = arith.constant 0 : i32
    %c0_i32_0 = arith.constant 0 : i32
    return %0, %c0_i32 : i32, i32
  }
}

</mosaic_0001>

<llo_original>
// kernel: tpu_custom_call.1
$region0: #{tpu_custom_call.1}
  #allocation0 [shape = 'u32[]', space=smem, size = 0x4, offset = 0x4, fixed_abs, tag = 'smem constant byte address 0x4 - core index']
  #allocation1 [shape = 'u32[144,128]{1,0:T(1,128)}', space=vmem, size = 0x12000, scoped, tag = 'internal scratch']
  #allocation2 [shape = 'f32[1,512]{1,0:T(1,128)}', space=vmem, size = 0x800, scoped, tag = 'scratch operand']
  #allocation3 [shape = 'f32[1,512]{1,0:T(1,128)}', space=vmem, size = 0x800, scoped, tag = 'scratch operand']
  #allocation4 [shape = 'f32[1,512]{1,0:T(1,128)}', space=vmem, size = 0x800, scoped, tag = 'scratch operand']
  #allocation5 [shape = 'f32[1,512]{1,0:T(1,128)}', space=vmem, size = 0x800, scoped, tag = 'scratch operand']
  %s0 = inlined_call_operand.hbm [shape: f32[512,128], index: 0, kind: input, shape index: {}]
  %s1 = inlined_call_operand.hbm [shape: bf16[1024,512], index: 1, kind: input, shape index: {}]
  %s2 = inlined_call_operand.hbm [shape: f32[1,1024], index: 2, kind: input, shape index: {}]
  %s3 = inlined_call_operand.hbm [shape: f32[512,128], index: 3, kind: output, shape index: {}]
  %s4 = sld [smem:[#allocation0]]
  $region73: #{tpu_custom_call.1} parent=0
    _
  %s6 = ssub.s32 1, %s4
  %s7 = scalar_select 0, %s6, %s4
  $region1: #{tpu_custom_call.1} parent=0
    #allocation6 [shape = 'u8[262144]{0}', space=vmem, size = 0x40000, scoped, tag = 'input window, operand 0']
    #allocation7 [shape = 's32[2]{0}', space=sflag, size = 0x8, scoped, tag = 'scoped memory for tpu_custom_call.1']
    #allocation8 [shape = 's32[2]{0}', space=sflag, size = 0x8, scoped, tag = 'scoped memory for tpu_custom_call.1']
    #allocation9 [shape = 'u8[1048576]{0}', space=vmem, size = 0x100000, scoped, tag = 'input window, operand 1, single buffered']
    #allocation10 [shape = 's32[1]{0}', space=sflag, size = 0x4, scoped, tag = 'scoped memory for tpu_custom_call.1']
    #allocation11 [shape = 'u8[4096]{0}', space=vmem, size = 0x1000, scoped, tag = 'input window, operand 2, single buffered']
    #allocation12 [shape = 'u8[262144]{0}', space=vmem, size = 0x40000, scoped, tag = 'output window, operand 0']
    %8 = vsyncpa [#allocation7], 0
    %s9 = scalar_lea.sflag [#allocation7], 1
    %10 = vsyncpa %s9, 0
    %11 = vsyncpa [#allocation10], 0
    %12 = vsyncpa [#allocation8], 0
    %s13 = scalar_lea.sflag [#allocation8], 1
    %14 = vsyncpa %s13, 0
    loop: start=0, step=1, limit=6
    $region2: #{tpu_custom_call.1} parent=1 // loop_pre_header
      _
    $region3: #{tpu_custom_call.1} parent=1 // loop_header
      %s16 = sphi 0, %s20
      %p17 = scmp.ge.s32.totalorder %s16, 6
      %s23 = sphi 0, %s35
      %s24 = sphi 0, %s31
      %s25 = sphi 0, %s23
      %s26 = sphi 0, %s24
      %s27 = sphi 0, %s25
      %s28 = sphi 0, %s26
      %s38 = sphi 0, %s40
      %s41 = sphi 0, %s38
      %s42 = sphi 0, %s41
      %s58 = sphi 0, %s42
      %s62 = sphi 0, %s62
      %s64 = sphi 0, %s62
      %s65 = sphi 0, %s64
      %s79 = sphi 0, %s65
      %s83 = sphi 0, %s83
      %s85 = sphi 0, %s83
      %s86 = sphi 0, %s85
      %s100 = sphi 0, %s86
      %s108 = sphi 0, %s110
      %s111 = sphi 0, %s108
      %s112 = sphi 0, %s111
      %s128 = sphi 0, %s112
    $region4: #{tpu_custom_call.1} parent=1 // loop_header_branch
      %19 = sbr.rel (%p17) target = $region8
    $region5: #{tpu_custom_call.1} parent=1 // loop_body
      %s21 = ssub.s32 %s16, 1
      %s22 = ssub.s32 %s16, 2
      %s29 = sadd.s32 1, %s24
      %p30 = scmp.ge.s32.totalorder %s29, 2
      %s31 = scalar_select %p30, 0, %s29
      %s32 = sadd.s32 1, %s23
      %s33 = scalar_select %p30, %s32, %s23
      %p34 = scmp.ge.s32.totalorder %s33, 2
      %s35 = scalar_select %p34, 0, %s33
      %s36 = ssub.s32 %s24, %s31
      %p37 = scmp.eq.s32.totalorder %s36, 0
      %s39 = sadd.s32 %s38, 1
      %s40 = scalar_select %p37, %s38, %s39
      %p43 = pneg %p37
      %p44 = scmp.eq.s32.totalorder %s16, 3
      %p45 = por %p43, %p44
      %p46 = scmp.ne.s32.totalorder %s38, %s41
      %p47 = scmp.eq.s32.totalorder %s16, 0
      %p48 = por %p46, %p47
      %p49 = scmp.ne.s32.totalorder %s38, %s41
      %p50 = scmp.eq.s32.totalorder %s21, 3
      %p51 = por %p49, %p50
      %p52 = scmp.ne.s32.totalorder %s41, %s42
      %p53 = scmp.eq.s32.totalorder %s21, 0
      %p54 = por %p52, %p53
      %p55 = scmp.ne.s32.totalorder %s41, %s42
      %p56 = scmp.eq.s32.totalorder %s22, 3
      %p57 = por %p55, %p56
      %p59 = scmp.ne.s32.totalorder %s42, %s58
      %p60 = scmp.eq.s32.totalorder %s22, 0
      %p61 = por %p59, %p60
      %s63 = sadd.s32 %s62, 1
      %p66 = scmp.eq.s32.totalorder %s16, 3
      %p67 = scmp.ne.s32.totalorder %s62, %s64
      %p68 = scmp.eq.s32.totalorder %s16, 0
      %p69 = por %p67, %p68
      %p70 = scmp.ne.s32.totalorder %s62, %s64
      %p71 = scmp.eq.s32.totalorder %s21, 3
      %p72 = por %p70, %p71
      %p73 = scmp.ne.s32.totalorder %s64, %s65
      %p74 = scmp.eq.s32.totalorder %s21, 0
      %p75 = por %p73, %p74
      %p76 = scmp.ne.s32.totalorder %s64, %s65
      %p77 = scmp.eq.s32.totalorder %s22, 3
      %p78 = por %p76, %p77
      %p80 = scmp.ne.s32.totalorder %s65, %s79
      %p81 = scmp.eq.s32.totalorder %s22, 0
      %p82 = por %p80, %p81
      %s84 = sadd.s32 %s83, 1
      %p87 = scmp.eq.s32.totalorder %s16, 3
      %p88 = scmp.ne.s32.totalorder %s83, %s85
      %p89 = scmp.eq.s32.totalorder %s16, 0
      %p90 = por %p88, %p89
      %p91 = scmp.ne.s32.totalorder %s83, %s85
      %p92 = scmp.eq.s32.totalorder %s21, 3
      %p93 = por %p91, %p92
      %p94 = scmp.ne.s32.totalorder %s85, %s86
      %p95 = scmp.eq.s32.totalorder %s21, 0
      %p96 = por %p94, %p95
      %p97 = scmp.ne.s32.totalorder %s85, %s86
      %p98 = scmp.eq.s32.totalorder %s22, 3
      %p99 = por %p97, %p98
      %p101 = scmp.ne.s32.totalorder %s86, %s100
      %p102 = scmp.eq.s32.totalorder %s22, 0
      %p103 = por %p101, %p102
      %s104 = smul.u32 %s23, %s24
      %s105 = smul.u32 %s35, %s31
      %s106 = ssub.s32 %s104, %s105
      %p107 = scmp.eq.s32.totalorder %s106, 0
      %s109 = sadd.s32 %s108, 1
      %s110 = scalar_select %p107, %s108, %s109
      %p113 = pneg %p107
      %p114 = scmp.eq.s32.totalorder %s16, 3
      %p115 = por %p113, %p114
      %p116 = scmp.ne.s32.totalorder %s108, %s111
      %p117 = scmp.eq.s32.totalorder %s16, 0
      %p118 = por %p116, %p117
      %p119 = scmp.ne.s32.totalorder %s108, %s111
      %p120 = scmp.eq.s32.totalorder %s21, 3
      %p121 = por %p119, %p120
      %p122 = scmp.ne.s32.totalorder %s111, %s112
      %p123 = scmp.eq.s32.totalorder %s21, 0
      %p124 = por %p122, %p123
      %p125 = scmp.ne.s32.totalorder %s111, %s112
      %p126 = scmp.eq.s32.totalorder %s22, 3
      %p127 = por %p125, %p126
      %p129 = scmp.ne.s32.totalorder %s112, %s128
      %p130 = scmp.eq.s32.totalorder %s22, 0
      %p131 = por %p129, %p130
      %p132 = scmp.le.s32.totalorder 1, %s16
      %p133 = scmp.lt.s32.totalorder %s16, 5
      %p134 = pnand %p132, %p133
      %p135 = pneg %p134
      // Predicated region
      $region9: #{tpu_custom_call.1} parent=5 // pred_check
        _
      $region10: #{tpu_custom_call.1} parent=5 // pred_check_branch
        %137 = sbr.rel (%p134) target = $region12
      $region11: #{tpu_custom_call.1} parent=5 // pred_region
        %s138 = ssub.s32 %s16, 1
        // Predicated region
        $region13: #{tpu_custom_call.1} parent=11 // pred_check
          %p139 = pneg %p75
        $region14: #{tpu_custom_call.1} parent=11 // pred_check_branch
          %141 = sbr.rel (%p139) target = $region16
        $region15: #{tpu_custom_call.1} parent=11 // pred_region
          %s143 = ssub.s32 32768, 32768
          %144 = vsyncadd [#allocation10], %s143
          %s145 = sshll.u32 [#allocation9], 4
          %s146 = int_to_ptr.vmem [resolvable:$true] %s145
          %151 = dma.hbm_to_vmem [thread:$0]  %s1, 32768, %s146, [#allocation10], 256, 256, 16
        $region16: #{tpu_custom_call.1} parent=11 // pred_fallthru
          _
        // Predicated region
        $region17: #{tpu_custom_call.1} parent=11 // pred_check
          %p152 = pneg %p96
        $region18: #{tpu_custom_call.1} parent=11 // pred_check_branch
          %154 = sbr.rel (%p152) target = $region20
        $region19: #{tpu_custom_call.1} parent=11 // pred_region
          %s156 = ssub.s32 128, 128
          %157 = vsyncadd [#allocation10], %s156
          %s159 = sshll.u32 [#allocation11], 4
          %s160 = int_to_ptr.vmem [resolvable:$true] %s159
          %162 = dma.hbm_to_vmem [thread:$0]  %s2, 128, %s160, [#allocation10]
        $region20: #{tpu_custom_call.1} parent=11 // pred_fallthru
          _
      $region12: #{tpu_custom_call.1} parent=5 // pred_fallthru
        _
      %p163 = scmp.lt.s32.totalorder %s16, 4
      // Predicated region
      $region21: #{tpu_custom_call.1} parent=5 // pred_check
        %p164 = pneg %p163
      $region22: #{tpu_custom_call.1} parent=5 // pred_check_branch
        %166 = sbr.rel (%p164) target = $region24
      $region23: #{tpu_custom_call.1} parent=5 // pred_region
        // Predicated region
        $region25: #{tpu_custom_call.1} parent=23 // pred_check
          %p167 = pneg %p48
        $region26: #{tpu_custom_call.1} parent=23 // pred_check_branch
          %169 = sbr.rel (%p167) target = $region28
        $region27: #{tpu_custom_call.1} parent=23 // pred_region
          %s170 = sand.u32 %s38, 1
          %s171 = scalar_lea.sflag [#allocation7], %s170
          %s172 = sand.u32 %s38, 1
          %s173 = smul.addr %s172, 256
          %s174 = scalar_lea.vmem [#allocation6], %s173
          %s175 = smul.u32 32, %s24
          %s177 = ssub.s32 4096, 4096
          %178 = vsyncadd %s171, %s177
          %s179 = smul.addr %s175, 128
          %s180 = scalar_lea.hbm %s0, %s179
          %s181 = sshll.u32 %s174, 4
          %s182 = int_to_ptr.vmem [resolvable:$true] %s181
          %187 = dma.hbm_to_vmem [thread:$0]  %s180, 4096, %s182, %s171, 128, 128, 8
        $region28: #{tpu_custom_call.1} parent=23 // pred_fallthru
          _
      $region24: #{tpu_custom_call.1} parent=5 // pred_fallthru
        _
      %p188 = scmp.le.s32.totalorder 1, %s16
      %p189 = scmp.lt.s32.totalorder %s16, 5
      %p190 = pnand %p188, %p189
      %p191 = pneg %p190
      // Predicated region
      $region29: #{tpu_custom_call.1} parent=5 // pred_check
        _
      $region30: #{tpu_custom_call.1} parent=5 // pred_check_branch
        %193 = sbr.rel (%p190) target = $region32
      $region31: #{tpu_custom_call.1} parent=5 // pred_region
        %s194 = ssub.s32 %s16, 1
        %s195 = sand.u32 %s41, 1
        %s196 = scalar_lea.sflag [#allocation7], %s195
        %s197 = sand.u32 %s41, 1
        %s198 = smul.addr %s197, 256
        %s199 = scalar_lea.vmem [#allocation6], %s198
        // Predicated region
        $region33: #{tpu_custom_call.1} parent=31 // pred_check
          %p200 = pneg %p54
        $region34: #{tpu_custom_call.1} parent=31 // pred_check_branch
          %202 = sbr.rel (%p200) target = $region36
        $region35: #{tpu_custom_call.1} parent=31 // pred_region
          %203 = dma.done %s196, 4096
        $region36: #{tpu_custom_call.1} parent=31 // pred_fallthru
          _
        // Predicated region
        $region37: #{tpu_custom_call.1} parent=31 // pred_check
          %p204 = pneg %p75
        $region38: #{tpu_custom_call.1} parent=31 // pred_check_branch
          %206 = sbr.rel (%p204) target = $region40
        $region39: #{tpu_custom_call.1} parent=31 // pred_region
          %207 = dma.done [#allocation10], 32768
        $region40: #{tpu_custom_call.1} parent=31 // pred_fallthru
          _
        // Predicated region
        $region41: #{tpu_custom_call.1} parent=31 // pred_check
          %p208 = pneg %p96
        $region42: #{tpu_custom_call.1} parent=31 // pred_check_branch
          %210 = sbr.rel (%p208) target = $region44
        $region43: #{tpu_custom_call.1} parent=31 // pred_region
          %211 = dma.done [#allocation10], 128
        $region44: #{tpu_custom_call.1} parent=31 // pred_fallthru
          _
        %s212 = sand.u32 %s41, 1
        %s213 = scalar_lea.sflag [#allocation7], %s212
        %s214 = sand.u32 %s41, 1
        %s215 = smul.addr %s214, 256
        %s216 = scalar_lea.vmem [#allocation6], %s215
        %p217 = pneg %p54
        %p218 = pneg %p51
        %p219 = pneg %p75
        %p220 = pneg %p72
        %p221 = pneg %p96
        %p222 = pneg %p93
        %p223 = pneg %p124
        %p224 = pneg %p121
        %s225 = sand.u32 %s111, 1
        %s226 = scalar_lea.sflag [#allocation8], %s225
        %s227 = sand.u32 %s111, 1
        %s228 = smul.addr %s227, 256
        %s229 = scalar_lea.vmem [#allocation12], %s228
        %s230 = smul.u32 32, %s26
        %s231 = smul.u32 %s25, %s26
        %s232 = smul.u32 32, %s231
        %v234 = vld [vmem:[%s199] sm:$0xff]
        %v235 = vld [vmem:[%s199 + $0x8] sm:$0xff]
        %v236 = vld [vmem:[%s199 + $0x10] sm:$0xff]
        %v237 = vld [vmem:[%s199 + $0x18] sm:$0xff]
        %v238 = vld [vmem:[%s199 + $0x20] sm:$0xff]
        %v239 = vld [vmem:[%s199 + $0x28] sm:$0xff]
        %v240 = vld [vmem:[%s199 + $0x30] sm:$0xff]
        %v241 = vld [vmem:[%s199 + $0x38] sm:$0xff]
        %v242 = vld [vmem:[%s199 + $0x40] sm:$0xff]
        %v243 = vld [vmem:[%s199 + $0x48] sm:$0xff]
        %v244 = vld [vmem:[%s199 + $0x50] sm:$0xff]
        %v245 = vld [vmem:[%s199 + $0x58] sm:$0xff]
        %v246 = vld [vmem:[%s199 + $0x60] sm:$0xff]
        %v247 = vld [vmem:[%s199 + $0x68] sm:$0xff]
        %v248 = vld [vmem:[%s199 + $0x70] sm:$0xff]
        %v249 = vld [vmem:[%s199 + $0x78] sm:$0xff]
        %v250 = vld [vmem:[%s199 + $0x80] sm:$0xff]
        %v251 = vld [vmem:[%s199 + $0x88] sm:$0xff]
        %v252 = vld [vmem:[%s199 + $0x90] sm:$0xff]
        %v253 = vld [vmem:[%s199 + $0x98] sm:$0xff]
        %v254 = vld [vmem:[%s199 + $0xa0] sm:$0xff]
        %v255 = vld [vmem:[%s199 + $0xa8] sm:$0xff]
        %v256 = vld [vmem:[%s199 + $0xb0] sm:$0xff]
        %v257 = vld [vmem:[%s199 + $0xb8] sm:$0xff]
        %v258 = vld [vmem:[%s199 + $0xc0] sm:$0xff]
        %v259 = vld [vmem:[%s199 + $0xc8] sm:$0xff]
        %v260 = vld [vmem:[%s199 + $0xd0] sm:$0xff]
        %v261 = vld [vmem:[%s199 + $0xd8] sm:$0xff]
        %v262 = vld [vmem:[%s199 + $0xe0] sm:$0xff]
        %v263 = vld [vmem:[%s199 + $0xe8] sm:$0xff]
        %v264 = vld [vmem:[%s199 + $0xf0] sm:$0xff]
        %v265 = vld [vmem:[%s199 + $0xf8] sm:$0xff]
        %v266 = vpack.c.bf16 %v235, %v234
        %v267 = vpack.c.bf16 %v237, %v236
        %v268 = vpack.c.bf16 %v239, %v238
        %v269 = vpack.c.bf16 %v241, %v240
        %v270 = vpack.c.bf16 %v243, %v242
        %v271 = vpack.c.bf16 %v245, %v244
        %v272 = vpack.c.bf16 %v247, %v246
        %v273 = vpack.c.bf16 %v249, %v248
        %v274 = vpack.c.bf16 %v251, %v250
        %v275 = vpack.c.bf16 %v253, %v252
        %v276 = vpack.c.bf16 %v255, %v254
        %v277 = vpack.c.bf16 %v257, %v256
        %v278 = vpack.c.bf16 %v259, %v258
        %v279 = vpack.c.bf16 %v261, %v260
        %v280 = vpack.c.bf16 %v263, %v262
        %v281 = vpack.c.bf16 %v265, %v264
        %v282 = vld [vmem:[#allocation9] sm:$0xff]
        %v283 = vld [vmem:[#allocation9 + $0x8] sm:$0xff]
        %v284 = vld [vmem:[#allocation9 + $0x10] sm:$0xff]
        %v285 = vld [vmem:[#allocation9 + $0x18] sm:$0xff]
        %v286 = vld [vmem:[#allocation9 + $0x20] sm:$0xff]
        %v287 = vld [vmem:[#allocation9 + $0x28] sm:$0xff]
        %v288 = vld [vmem:[#allocation9 + $0x30] sm:$0xff]
        %v289 = vld [vmem:[#allocation9 + $0x38] sm:$0xff]
        %v290 = vld [vmem:[#allocation9 + $0x40] sm:$0xff]
        %v291 = vld [vmem:[#allocation9 + $0x48] sm:$0xff]
        %v292 = vld [vmem:[#allocation9 + $0x50] sm:$0xff]
        %v293 = vld [vmem:[#allocation9 + $0x58] sm:$0xff]
        %v294 = vld [vmem:[#allocation9 + $0x60] sm:$0xff]
        %v295 = vld [vmem:[#allocation9 + $0x68] sm:$0xff]
        %v296 = vld [vmem:[#allocation9 + $0x70] sm:$0xff]
        %v297 = vld [vmem:[#allocation9 + $0x78] sm:$0xff]
        %v298 = vld [vmem:[#allocation9 + $0x80] sm:$0xff]
        %v299 = vld [vmem:[#allocation9 + $0x88] sm:$0xff]
        %v300 = vld [vmem:[#allocation9 + $0x90] sm:$0xff]
        %v301 = vld [vmem:[#allocation9 + $0x98] sm:$0xff]
        %v302 = vld [vmem:[#allocation9 + $0xa0] sm:$0xff]
        %v303 = vld [vmem:[#allocation9 + $0xa8] sm:$0xff]
        %v304 = vld [vmem:[#allocation9 + $0xb0] sm:$0xff]
        %v305 = vld [vmem:[#allocation9 + $0xb8] sm:$0xff]
        %v306 = vld [vmem:[#allocation9 + $0xc0] sm:$0xff]
        %v307 = vld [vmem:[#allocation9 + $0xc8] sm:$0xff]
        %v308 = vld [vmem:[#allocation9 + $0xd0] sm:$0xff]
        %v309 = vld [vmem:[#allocation9 + $0xd8] sm:$0xff]
        %v310 = vld [vmem:[#allocation9 + $0xe0] sm:$0xff]
        %v311 = vld [vmem:[#allocation9 + $0xe8] sm:$0xff]
        %v312 = vld [vmem:[#allocation9 + $0xf0] sm:$0xff]
        %v313 = vld [vmem:[#allocation9 + $0xf8] sm:$0xff]
        %v314 = vld [vmem:[#allocation11] sm:$0xf]
        %v316 = vlaneseq
        %v317 = vshrl.u32 %v316, 7
        %v318 = vsub.s32 0, %v317
        %v319 = vrot.slane %v314, %v318
        %v320 = vlaneseq
        %v321 = vshrl.u32 %v320, 7
        %v322 = vsub.s32 1, %v321
        %v323 = vrot.slane %v314, %v322
        %v324 = vlaneseq
        %v325 = vshrl.u32 %v324, 7
        %v326 = vsub.s32 2, %v325
        %v327 = vrot.slane %v314, %v326
        %v328 = vlaneseq
        %v329 = vshrl.u32 %v328, 7
        %v330 = vsub.s32 3, %v329
        %v331 = vrot.slane %v314, %v330
        %v368 = vunpack.c.l.b16 %v282
        %v369 = vunpack.c.h.b16 %v282
        %v370 = vunpack.c.l.b16 %v283
        %v371 = vunpack.c.h.b16 %v283
        %v372 = vunpack.c.l.b16 %v284
        %v373 = vunpack.c.h.b16 %v284
        %v374 = vunpack.c.l.b16 %v285
        %v375 = vunpack.c.h.b16 %v285
        %v376 = vunpack.c.l.b16 %v286
        %v377 = vunpack.c.h.b16 %v286
        %v378 = vunpack.c.l.b16 %v287
        %v379 = vunpack.c.h.b16 %v287
        %v380 = vunpack.c.l.b16 %v288
        %v381 = vunpack.c.h.b16 %v288
        %v382 = vunpack.c.l.b16 %v289
        %v383 = vunpack.c.h.b16 %v289
        %v384 = vunpack.c.l.b16 %v290
        %v385 = vunpack.c.h.b16 %v290
        %v386 = vunpack.c.l.b16 %v291
        %v387 = vunpack.c.h.b16 %v291
        %v388 = vunpack.c.l.b16 %v292
        %v389 = vunpack.c.h.b16 %v292
        %v390 = vunpack.c.l.b16 %v293
        %v391 = vunpack.c.h.b16 %v293
        %v392 = vunpack.c.l.b16 %v294
        %v393 = vunpack.c.h.b16 %v294
        %v394 = vunpack.c.l.b16 %v295
        %v395 = vunpack.c.h.b16 %v295
        %v396 = vunpack.c.l.b16 %v296
        %v397 = vunpack.c.h.b16 %v296
        %v398 = vunpack.c.l.b16 %v297
        %v399 = vunpack.c.h.b16 %v297
        %v400 = vunpack.c.l.b16 %v298
        %v401 = vunpack.c.h.b16 %v298
        %v402 = vunpack.c.l.b16 %v299
        %v403 = vunpack.c.h.b16 %v299
        %v404 = vunpack.c.l.b16 %v300
        %v405 = vunpack.c.h.b16 %v300
        %v406 = vunpack.c.l.b16 %v301
        %v407 = vunpack.c.h.b16 %v301
        %v408 = vunpack.c.l.b16 %v302
        %v409 = vunpack.c.h.b16 %v302
        %v410 = vunpack.c.l.b16 %v303
        %v411 = vunpack.c.h.b16 %v303
        %v412 = vunpack.c.l.b16 %v304
        %v413 = vunpack.c.h.b16 %v304
        %v414 = vunpack.c.l.b16 %v305
        %v415 = vunpack.c.h.b16 %v305
        %v416 = vunpack.c.l.b16 %v306
        %v417 = vunpack.c.h.b16 %v306
        %v418 = vunpack.c.l.b16 %v307
        %v419 = vunpack.c.h.b16 %v307
        %v420 = vunpack.c.l.b16 %v308
        %v421 = vunpack.c.h.b16 %v308
        %v422 = vunpack.c.l.b16 %v309
        %v423 = vunpack.c.h.b16 %v309
        %v424 = vunpack.c.l.b16 %v310
        %v425 = vunpack.c.h.b16 %v310
        %v426 = vunpack.c.l.b16 %v311
        %v427 = vunpack.c.h.b16 %v311
        %v428 = vunpack.c.l.b16 %v312
        %v429 = vunpack.c.h.b16 %v312
        %v430 = vunpack.c.l.b16 %v313
        %v431 = vunpack.c.h.b16 %v313
        %v432 = vpack.c.b16 %v372, %v368
        %v433 = vpack.c.b16 %v373, %v369
        %v434 = vpack.c.b16 %v374, %v370
        %v435 = vpack.c.b16 %v375, %v371
        %v436 = vpack.c.b16 %v380, %v376
        %v437 = vpack.c.b16 %v381, %v377
        %v438 = vpack.c.b16 %v382, %v378
        %v439 = vpack.c.b16 %v383, %v379
        %v440 = vpack.c.b16 %v388, %v384
        %v441 = vpack.c.b16 %v389, %v385
        %v442 = vpack.c.b16 %v390, %v386
        %v443 = vpack.c.b16 %v391, %v387
        %v444 = vpack.c.b16 %v396, %v392
        %v445 = vpack.c.b16 %v397, %v393
        %v446 = vpack.c.b16 %v398, %v394
        %v447 = vpack.c.b16 %v399, %v395
        %v448 = vpack.c.b16 %v404, %v400
        %v449 = vpack.c.b16 %v405, %v401
        %v450 = vpack.c.b16 %v406, %v402
        %v451 = vpack.c.b16 %v407, %v403
        %v452 = vpack.c.b16 %v412, %v408
        %v453 = vpack.c.b16 %v413, %v409
        %v454 = vpack.c.b16 %v414, %v410
        %v455 = vpack.c.b16 %v415, %v411
        %v456 = vpack.c.b16 %v420, %v416
        %v457 = vpack.c.b16 %v421, %v417
        %v458 = vpack.c.b16 %v422, %v418
        %v459 = vpack.c.b16 %v423, %v419
        %v460 = vpack.c.b16 %v428, %v424
        %v461 = vpack.c.b16 %v429, %v425
        %v462 = vpack.c.b16 %v430, %v426
        %v463 = vpack.c.b16 %v431, %v427
        %496 = vmatprep.subr.bf16.mxu0 %v461
        %497 = vmatpush1.bf16.msra.mxu0 %v460
        %498 = vmatprep.subr.bf16.mxu0 %v457
        %499 = vmatpush1.bf16.msra.mxu0 %v456
        %500 = vmatprep.subr.bf16.mxu0 %v453
        %501 = vmatpush1.bf16.msra.mxu0 %v452
        %502 = vmatprep.subr.bf16.mxu0 %v449
        %503 = vmatpush1.bf16.msra.mxu0 %v448
        %504 = vmatprep.subr.bf16.mxu0 %v445
        %505 = vmatpush1.bf16.msra.mxu0 %v444
        %506 = vmatprep.subr.bf16.mxu0 %v441
        %507 = vmatpush1.bf16.msra.mxu0 %v440
        %508 = vmatprep.subr.bf16.mxu0 %v437
        %509 = vmatpush1.bf16.msra.mxu0 %v436
        %510 = vmatprep.subr.bf16.mxu0 %v433
        %511 = vmatpush1.bf16.msra.mxu0 %v432
        %512 = vmatprep.subr.bf16.mxu0 0
        %513 = vmatpush2.bf16.msra.mxu0 0
        %514 = vmatprep.subr.bf16.mxu0 0
        %515 = vmatpush2.bf16.msra.mxu0 0
        %516 = vmatprep.subr.bf16.mxu0 0
        %517 = vmatpush2.bf16.msra.mxu0 0
        %518 = vmatprep.subr.bf16.mxu0 0
        %519 = vmatpush2.bf16.msra.mxu0 0
        %520 = vmatprep.subr.bf16.mxu0 0
        %521 = vmatpush2.bf16.msra.mxu0 0
        %522 = vmatprep.subr.bf16.mxu0 0
        %523 = vmatpush2.bf16.msra.mxu0 0
        %524 = vmatprep.subr.bf16.mxu0 0
        %525 = vmatpush2.bf16.msra.mxu0 0
        %526 = vmatprep.subr.bf16.mxu0 0
        %527 = vmatpush2.bf16.msra.mxu0 0
        %528 = vmatprep.mubr.bf16.mxu0 0
        %529 = vmatmul.mubr.bf16.gmra.mxu0 %v266
        %v530 = vpop.f32.mrf.mxu0
        %v531 = vadd.f32 %v319, %v530
        %v532 = vpop.f32.mrf.mxu0
        %v533 = vadd.f32 %v323, %v532
        %v534 = vpop.f32.mrf.mxu0
        %v535 = vadd.f32 %v319, %v534
        %v536 = vpop.f32.mrf.mxu0
        %v537 = vadd.f32 %v323, %v536
        %538 = vmatprep.mubr.bf16.mxu0 0
        %539 = vmatmul.mubr.bf16.gmra.mxu0 %v267
        %v540 = vpop.f32.mrf.mxu0
        %v541 = vadd.f32 %v319, %v540
        %v542 = vpop.f32.mrf.mxu0
        %v543 = vadd.f32 %v323, %v542
        %v544 = vpop.f32.mrf.mxu0
        %v545 = vadd.f32 %v319, %v544
        %v546 = vpop.f32.mrf.mxu0
        %v547 = vadd.f32 %v323, %v546
        %548 = vmatprep.mubr.bf16.mxu0 0
        %549 = vmatmul.mubr.bf16.gmra.mxu0 %v268
        %v550 = vpop.f32.mrf.mxu0
        %v551 = vadd.f32 %v319, %v550
        %v552 = vpop.f32.mrf.mxu0
        %v553 = vadd.f32 %v323, %v552
        %v554 = vpop.f32.mrf.mxu0
        %v555 = vadd.f32 %v319, %v554
        %v556 = vpop.f32.mrf.mxu0
        %v557 = vadd.f32 %v323, %v556
        %558 = vmatprep.mubr.bf16.mxu0 0
        %559 = vmatmul.mubr.bf16.gmra.mxu0 %v269
        %v560 = vpop.f32.mrf.mxu0
        %v561 = vadd.f32 %v319, %v560
        %v562 = vpop.f32.mrf.mxu0
        %v563 = vadd.f32 %v323, %v562
        %v564 = vpop.f32.mrf.mxu0
        %v565 = vadd.f32 %v319, %v564
        %v566 = vpop.f32.mrf.mxu0
        %v567 = vadd.f32 %v323, %v566
        %568 = vmatprep.mubr.bf16.mxu0 0
        %569 = vmatmul.mubr.bf16.gmra.mxu0 %v270
        %v570 = vpop.f32.mrf.mxu0
        %v571 = vadd.f32 %v319, %v570
        %v572 = vpop.f32.mrf.mxu0
        %v573 = vadd.f32 %v323, %v572
        %v574 = vpop.f32.mrf.mxu0
        %v575 = vadd.f32 %v319, %v574
        %v576 = vpop.f32.mrf.mxu0
        %v577 = vadd.f32 %v323, %v576
        %578 = vmatprep.mubr.bf16.mxu0 0
        %579 = vmatmul.mubr.bf16.gmra.mxu0 %v271
        %v580 = vpop.f32.mrf.mxu0
        %v581 = vadd.f32 %v319, %v580
        %v582 = vpop.f32.mrf.mxu0
        %v583 = vadd.f32 %v323, %v582
        %v584 = vpop.f32.mrf.mxu0
        %v585 = vadd.f32 %v319, %v584
        %v586 = vpop.f32.mrf.mxu0
        %v587 = vadd.f32 %v323, %v586
        %588 = vmatprep.mubr.bf16.mxu0 0
        %589 = vmatmul.mubr.bf16.gmra.mxu0 %v272
        %v590 = vpop.f32.mrf.mxu0
        %v591 = vadd.f32 %v319, %v590
        %v592 = vpop.f32.mrf.mxu0
        %v593 = vadd.f32 %v323, %v592
        %v594 = vpop.f32.mrf.mxu0
        %v595 = vadd.f32 %v319, %v594
        %v596 = vpop.f32.mrf.mxu0
        %v597 = vadd.f32 %v323, %v596
        %598 = vmatprep.mubr.bf16.mxu0 0
        %599 = vmatmul.mubr.bf16.gmra.mxu0 %v273
        %v600 = vpop.f32.mrf.mxu0
        %v601 = vadd.f32 %v319, %v600
        %v602 = vpop.f32.mrf.mxu0
        %v603 = vadd.f32 %v323, %v602
        %v604 = vpop.f32.mrf.mxu0
        %v605 = vadd.f32 %v319, %v604
        %v606 = vpop.f32.mrf.mxu0
        %v607 = vadd.f32 %v323, %v606
        %608 = vmatprep.mubr.bf16.mxu0 0
        %609 = vmatmul.mubr.bf16.gmra.mxu0 %v274
        %v610 = vpop.f32.mrf.mxu0
        %v611 = vadd.f32 %v319, %v610
        %v612 = vpop.f32.mrf.mxu0
        %v613 = vadd.f32 %v323, %v612
        %v614 = vpop.f32.mrf.mxu0
        %v615 = vadd.f32 %v319, %v614
        %v616 = vpop.f32.mrf.mxu0
        %v617 = vadd.f32 %v323, %v616
        %618 = vmatprep.mubr.bf16.mxu0 0
        %619 = vmatmul.mubr.bf16.gmra.mxu0 %v275
        %v620 = vpop.f32.mrf.mxu0
        %v621 = vadd.f32 %v319, %v620
        %v622 = vpop.f32.mrf.mxu0
        %v623 = vadd.f32 %v323, %v622
        %v624 = vpop.f32.mrf.mxu0
        %v625 = vadd.f32 %v319, %v624
        %v626 = vpop.f32.mrf.mxu0
        %v627 = vadd.f32 %v323, %v626
        %628 = vmatprep.mubr.bf16.mxu0 0
        %629 = vmatmul.mubr.bf16.gmra.mxu0 %v276
        %v630 = vpop.f32.mrf.mxu0
        %v631 = vadd.f32 %v319, %v630
        %v632 = vpop.f32.mrf.mxu0
        %v633 = vadd.f32 %v323, %v632
        %v634 = vpop.f32.mrf.mxu0
        %v635 = vadd.f32 %v319, %v634
        %v636 = vpop.f32.mrf.mxu0
        %v637 = vadd.f32 %v323, %v636
        %638 = vmatprep.mubr.bf16.mxu0 0
        %639 = vmatmul.mubr.bf16.gmra.mxu0 %v277
        %v640 = vpop.f32.mrf.mxu0
        %v641 = vadd.f32 %v319, %v640
        %v642 = vpop.f32.mrf.mxu0
        %v643 = vadd.f32 %v323, %v642
        %v644 = vpop.f32.mrf.mxu0
        %v645 = vadd.f32 %v319, %v644
        %v646 = vpop.f32.mrf.mxu0
        %v647 = vadd.f32 %v323, %v646
        %648 = vmatprep.mubr.bf16.mxu0 0
        %649 = vmatmul.mubr.bf16.gmra.mxu0 %v278
        %v650 = vpop.f32.mrf.mxu0
        %v651 = vadd.f32 %v319, %v650
        %v652 = vpop.f32.mrf.mxu0
        %v653 = vadd.f32 %v323, %v652
        %v654 = vpop.f32.mrf.mxu0
        %v655 = vadd.f32 %v319, %v654
        %v656 = vpop.f32.mrf.mxu0
        %v657 = vadd.f32 %v323, %v656
        %658 = vmatprep.mubr.bf16.mxu0 0
        %659 = vmatmul.mubr.bf16.gmra.mxu0 %v279
        %v660 = vpop.f32.mrf.mxu0
        %v661 = vadd.f32 %v319, %v660
        %v662 = vpop.f32.mrf.mxu0
        %v663 = vadd.f32 %v323, %v662
        %v664 = vpop.f32.mrf.mxu0
        %v665 = vadd.f32 %v319, %v664
        %v666 = vpop.f32.mrf.mxu0
        %v667 = vadd.f32 %v323, %v666
        %668 = vmatprep.mubr.bf16.mxu0 0
        %669 = vmatmul.mubr.bf16.gmra.mxu0 %v280
        %v670 = vpop.f32.mrf.mxu0
        %v671 = vadd.f32 %v319, %v670
        %v672 = vpop.f32.mrf.mxu0
        %v673 = vadd.f32 %v323, %v672
        %v674 = vpop.f32.mrf.mxu0
        %v675 = vadd.f32 %v319, %v674
        %v676 = vpop.f32.mrf.mxu0
        %v677 = vadd.f32 %v323, %v676
        %678 = vmatprep.mubr.bf16.mxu0 0
        %679 = vmatmul.mubr.bf16.gmra.mxu0 %v281
        %v680 = vpop.f32.mrf.mxu0
        %v681 = vadd.f32 %v319, %v680
        %v682 = vpop.f32.mrf.mxu0
        %v683 = vadd.f32 %v323, %v682
        %v684 = vpop.f32.mrf.mxu0
        %v685 = vadd.f32 %v319, %v684
        %v686 = vpop.f32.mrf.mxu0
        %v687 = vadd.f32 %v323, %v686
        %688 = vdwg.mxu0
        %689 = vmatprep.subr.bf16.mxu0 %v463
        %690 = vmatpush1.bf16.msra.mxu0 %v462
        %691 = vmatprep.subr.bf16.mxu0 %v459
        %692 = vmatpush1.bf16.msra.mxu0 %v458
        %693 = vmatprep.subr.bf16.mxu0 %v455
        %694 = vmatpush1.bf16.msra.mxu0 %v454
        %695 = vmatprep.subr.bf16.mxu0 %v451
        %696 = vmatpush1.bf16.msra.mxu0 %v450
        %697 = vmatprep.subr.bf16.mxu0 %v447
        %698 = vmatpush1.bf16.msra.mxu0 %v446
        %699 = vmatprep.subr.bf16.mxu0 %v443
        %700 = vmatpush1.bf16.msra.mxu0 %v442
        %701 = vmatprep.subr.bf16.mxu0 %v439
        %702 = vmatpush1.bf16.msra.mxu0 %v438
        %703 = vmatprep.subr.bf16.mxu0 %v435
        %704 = vmatpush1.bf16.msra.mxu0 %v434
        %705 = vmatprep.subr.bf16.mxu0 0
        %706 = vmatpush2.bf16.msra.mxu0 0
        %707 = vmatprep.subr.bf16.mxu0 0
        %708 = vmatpush2.bf16.msra.mxu0 0
        %709 = vmatprep.subr.bf16.mxu0 0
        %710 = vmatpush2.bf16.msra.mxu0 0
        %711 = vmatprep.subr.bf16.mxu0 0
        %712 = vmatpush2.bf16.msra.mxu0 0
        %713 = vmatprep.subr.bf16.mxu0 0
        %714 = vmatpush2.bf16.msra.mxu0 0
        %715 = vmatprep.subr.bf16.mxu0 0
        %716 = vmatpush2.bf16.msra.mxu0 0
        %717 = vmatprep.subr.bf16.mxu0 0
        %718 = vmatpush2.bf16.msra.mxu0 0
        %719 = vmatprep.subr.bf16.mxu0 0
        %720 = vmatpush2.bf16.msra.mxu0 0
        %721 = vmatprep.mubr.bf16.mxu0 0
        %722 = vmatmul.mubr.bf16.gmra.mxu0 %v266
        %v723 = vpop.f32.mrf.mxu0
        %v724 = vadd.f32 %v327, %v723
        %v725 = vpop.f32.mrf.mxu0
        %v726 = vadd.f32 %v331, %v725
        %v727 = vpop.f32.mrf.mxu0
        %v728 = vadd.f32 %v327, %v727
        %v729 = vpop.f32.mrf.mxu0
        %v730 = vadd.f32 %v331, %v729
        %731 = vmatprep.mubr.bf16.mxu0 0
        %732 = vmatmul.mubr.bf16.gmra.mxu0 %v267
        %v733 = vpop.f32.mrf.mxu0
        %v734 = vadd.f32 %v327, %v733
        %v735 = vpop.f32.mrf.mxu0
        %v736 = vadd.f32 %v331, %v735
        %v737 = vpop.f32.mrf.mxu0
        %v738 = vadd.f32 %v327, %v737
        %v739 = vpop.f32.mrf.mxu0
        %v740 = vadd.f32 %v331, %v739
        %741 = vmatprep.mubr.bf16.mxu0 0
        %742 = vmatmul.mubr.bf16.gmra.mxu0 %v268
        %v743 = vpop.f32.mrf.mxu0
        %v744 = vadd.f32 %v327, %v743
        %v745 = vpop.f32.mrf.mxu0
        %v746 = vadd.f32 %v331, %v745
        %v747 = vpop.f32.mrf.mxu0
        %v748 = vadd.f32 %v327, %v747
        %v749 = vpop.f32.mrf.mxu0
        %v750 = vadd.f32 %v331, %v749
        %751 = vmatprep.mubr.bf16.mxu0 0
        %752 = vmatmul.mubr.bf16.gmra.mxu0 %v269
        %v753 = vpop.f32.mrf.mxu0
        %v754 = vadd.f32 %v327, %v753
        %v755 = vpop.f32.mrf.mxu0
        %v756 = vadd.f32 %v331, %v755
        %v757 = vpop.f32.mrf.mxu0
        %v758 = vadd.f32 %v327, %v757
        %v759 = vpop.f32.mrf.mxu0
        %v760 = vadd.f32 %v331, %v759
        %761 = vmatprep.mubr.bf16.mxu0 0
        %762 = vmatmul.mubr.bf16.gmra.mxu0 %v270
        %v763 = vpop.f32.mrf.mxu0
        %v764 = vadd.f32 %v327, %v763
        %v765 = vpop.f32.mrf.mxu0
        %v766 = vadd.f32 %v331, %v765
        %v767 = vpop.f32.mrf.mxu0
        %v768 = vadd.f32 %v327, %v767
        %v769 = vpop.f32.mrf.mxu0
        %v770 = vadd.f32 %v331, %v769
        %771 = vmatprep.mubr.bf16.mxu0 0
        %772 = vmatmul.mubr.bf16.gmra.mxu0 %v271
        %v773 = vpop.f32.mrf.mxu0
        %v774 = vadd.f32 %v327, %v773
        %v775 = vpop.f32.mrf.mxu0
        %v776 = vadd.f32 %v331, %v775
        %v777 = vpop.f32.mrf.mxu0
        %v778 = vadd.f32 %v327, %v777
        %v779 = vpop.f32.mrf.mxu0
        %v780 = vadd.f32 %v331, %v779
        %781 = vmatprep.mubr.bf16.mxu0 0
        %782 = vmatmul.mubr.bf16.gmra.mxu0 %v272
        %v783 = vpop.f32.mrf.mxu0
        %v784 = vadd.f32 %v327, %v783
        %v785 = vpop.f32.mrf.mxu0
        %v786 = vadd.f32 %v331, %v785
        %v787 = vpop.f32.mrf.mxu0
        %v788 = vadd.f32 %v327, %v787
        %v789 = vpop.f32.mrf.mxu0
        %v790 = vadd.f32 %v331, %v789
        %791 = vmatprep.mubr.bf16.mxu0 0
        %792 = vmatmul.mubr.bf16.gmra.mxu0 %v273
        %v793 = vpop.f32.mrf.mxu0
        %v794 = vadd.f32 %v327, %v793
        %v795 = vpop.f32.mrf.mxu0
        %v796 = vadd.f32 %v331, %v795
        %v797 = vpop.f32.mrf.mxu0
        %v798 = vadd.f32 %v327, %v797
        %v799 = vpop.f32.mrf.mxu0
        %v800 = vadd.f32 %v331, %v799
        %801 = vmatprep.mubr.bf16.mxu0 0
        %802 = vmatmul.mubr.bf16.gmra.mxu0 %v274
        %v803 = vpop.f32.mrf.mxu0
        %v804 = vadd.f32 %v327, %v803
        %v805 = vpop.f32.mrf.mxu0
        %v806 = vadd.f32 %v331, %v805
        %v807 = vpop.f32.mrf.mxu0
        %v808 = vadd.f32 %v327, %v807
        %v809 = vpop.f32.mrf.mxu0
        %v810 = vadd.f32 %v331, %v809
        %811 = vmatprep.mubr.bf16.mxu0 0
        %812 = vmatmul.mubr.bf16.gmra.mxu0 %v275
        %v813 = vpop.f32.mrf.mxu0
        %v814 = vadd.f32 %v327, %v813
        %v815 = vpop.f32.mrf.mxu0
        %v816 = vadd.f32 %v331, %v815
        %v817 = vpop.f32.mrf.mxu0
        %v818 = vadd.f32 %v327, %v817
        %v819 = vpop.f32.mrf.mxu0
        %v820 = vadd.f32 %v331, %v819
        %821 = vmatprep.mubr.bf16.mxu0 0
        %822 = vmatmul.mubr.bf16.gmra.mxu0 %v276
        %v823 = vpop.f32.mrf.mxu0
        %v824 = vadd.f32 %v327, %v823
        %v825 = vpop.f32.mrf.mxu0
        %v826 = vadd.f32 %v331, %v825
        %v827 = vpop.f32.mrf.mxu0
        %v828 = vadd.f32 %v327, %v827
        %v829 = vpop.f32.mrf.mxu0
        %v830 = vadd.f32 %v331, %v829
        %831 = vmatprep.mubr.bf16.mxu0 0
        %832 = vmatmul.mubr.bf16.gmra.mxu0 %v277
        %v833 = vpop.f32.mrf.mxu0
        %v834 = vadd.f32 %v327, %v833
        %v835 = vpop.f32.mrf.mxu0
        %v836 = vadd.f32 %v331, %v835
        %v837 = vpop.f32.mrf.mxu0
        %v838 = vadd.f32 %v327, %v837
        %v839 = vpop.f32.mrf.mxu0
        %v840 = vadd.f32 %v331, %v839
        %841 = vmatprep.mubr.bf16.mxu0 0
        %842 = vmatmul.mubr.bf16.gmra.mxu0 %v278
        %v843 = vpop.f32.mrf.mxu0
        %v844 = vadd.f32 %v327, %v843
        %v845 = vpop.f32.mrf.mxu0
        %v846 = vadd.f32 %v331, %v845
        %v847 = vpop.f32.mrf.mxu0
        %v848 = vadd.f32 %v327, %v847
        %v849 = vpop.f32.mrf.mxu0
        %v850 = vadd.f32 %v331, %v849
        %851 = vmatprep.mubr.bf16.mxu0 0
        %852 = vmatmul.mubr.bf16.gmra.mxu0 %v279
        %v853 = vpop.f32.mrf.mxu0
        %v854 = vadd.f32 %v327, %v853
        %v855 = vpop.f32.mrf.mxu0
        %v856 = vadd.f32 %v331, %v855
        %v857 = vpop.f32.mrf.mxu0
        %v858 = vadd.f32 %v327, %v857
        %v859 = vpop.f32.mrf.mxu0
        %v860 = vadd.f32 %v331, %v859
        %861 = vmatprep.mubr.bf16.mxu0 0
        %862 = vmatmul.mubr.bf16.gmra.mxu0 %v280
        %v863 = vpop.f32.mrf.mxu0
        %v864 = vadd.f32 %v327, %v863
        %v865 = vpop.f32.mrf.mxu0
        %v866 = vadd.f32 %v331, %v865
        %v867 = vpop.f32.mrf.mxu0
        %v868 = vadd.f32 %v327, %v867
        %v869 = vpop.f32.mrf.mxu0
        %v870 = vadd.f32 %v331, %v869
        %871 = vmatprep.mubr.bf16.mxu0 0
        %872 = vmatmul.mubr.bf16.gmra.mxu0 %v281
        %v873 = vpop.f32.mrf.mxu0
        %v874 = vadd.f32 %v327, %v873
        %v875 = vpop.f32.mrf.mxu0
        %v876 = vadd.f32 %v331, %v875
        %v877 = vpop.f32.mrf.mxu0
        %v878 = vadd.f32 %v327, %v877
        %v879 = vpop.f32.mrf.mxu0
        %v880 = vadd.f32 %v331, %v879
        %881 = vdwg.mxu0
        %vm882 = vcmp.gt.f32.partialorder %v531, 0.0
        %vm883 = vcmp.gt.f32.partialorder %v533, 0.0
        %vm884 = vcmp.gt.f32.partialorder %v724, 0.0
        %vm885 = vcmp.gt.f32.partialorder %v726, 0.0
        %vm886 = vcmp.gt.f32.partialorder %v535, 0.0
        %vm887 = vcmp.gt.f32.partialorder %v537, 0.0
        %vm888 = vcmp.gt.f32.partialorder %v728, 0.0
        %vm889 = vcmp.gt.f32.partialorder %v730, 0.0
        %vm890 = vcmp.gt.f32.partialorder %v541, 0.0
        %vm891 = vcmp.gt.f32.partialorder %v543, 0.0
        %vm892 = vcmp.gt.f32.partialorder %v734, 0.0
        %vm893 = vcmp.gt.f32.partialorder %v736, 0.0
        %vm894 = vcmp.gt.f32.partialorder %v545, 0.0
        %vm895 = vcmp.gt.f32.partialorder %v547, 0.0
        %vm896 = vcmp.gt.f32.partialorder %v738, 0.0
        %vm897 = vcmp.gt.f32.partialorder %v740, 0.0
        %vm898 = vcmp.gt.f32.partialorder %v551, 0.0
        %vm899 = vcmp.gt.f32.partialorder %v553, 0.0
        %vm900 = vcmp.gt.f32.partialorder %v744, 0.0
        %vm901 = vcmp.gt.f32.partialorder %v746, 0.0
        %vm902 = vcmp.gt.f32.partialorder %v555, 0.0
        %vm903 = vcmp.gt.f32.partialorder %v557, 0.0
        %vm904 = vcmp.gt.f32.partialorder %v748, 0.0
        %vm905 = vcmp.gt.f32.partialorder %v750, 0.0
        %vm906 = vcmp.gt.f32.partialorder %v561, 0.0
        %vm907 = vcmp.gt.f32.partialorder %v563, 0.0
        %vm908 = vcmp.gt.f32.partialorder %v754, 0.0
        %vm909 = vcmp.gt.f32.partialorder %v756, 0.0
        %vm910 = vcmp.gt.f32.partialorder %v565, 0.0
        %vm911 = vcmp.gt.f32.partialorder %v567, 0.0
        %vm912 = vcmp.gt.f32.partialorder %v758, 0.0
        %vm913 = vcmp.gt.f32.partialorder %v760, 0.0
        %vm914 = vcmp.gt.f32.partialorder %v571, 0.0
        %vm915 = vcmp.gt.f32.partialorder %v573, 0.0
        %vm916 = vcmp.gt.f32.partialorder %v764, 0.0
        %vm917 = vcmp.gt.f32.partialorder %v766, 0.0
        %vm918 = vcmp.gt.f32.partialorder %v575, 0.0
        %vm919 = vcmp.gt.f32.partialorder %v577, 0.0
        %vm920 = vcmp.gt.f32.partialorder %v768, 0.0
        %vm921 = vcmp.gt.f32.partialorder %v770, 0.0
        %vm922 = vcmp.gt.f32.partialorder %v581, 0.0
        %vm923 = vcmp.gt.f32.partialorder %v583, 0.0
        %vm924 = vcmp.gt.f32.partialorder %v774, 0.0
        %vm925 = vcmp.gt.f32.partialorder %v776, 0.0
        %vm926 = vcmp.gt.f32.partialorder %v585, 0.0
        %vm927 = vcmp.gt.f32.partialorder %v587, 0.0
        %vm928 = vcmp.gt.f32.partialorder %v778, 0.0
        %vm929 = vcmp.gt.f32.partialorder %v780, 0.0
        %vm930 = vcmp.gt.f32.partialorder %v591, 0.0
        %vm931 = vcmp.gt.f32.partialorder %v593, 0.0
        %vm932 = vcmp.gt.f32.partialorder %v784, 0.0
        %vm933 = vcmp.gt.f32.partialorder %v786, 0.0
        %vm934 = vcmp.gt.f32.partialorder %v595, 0.0
        %vm935 = vcmp.gt.f32.partialorder %v597, 0.0
        %vm936 = vcmp.gt.f32.partialorder %v788, 0.0
        %vm937 = vcmp.gt.f32.partialorder %v790, 0.0
        %vm938 = vcmp.gt.f32.partialorder %v601, 0.0
        %vm939 = vcmp.gt.f32.partialorder %v603, 0.0
        %vm940 = vcmp.gt.f32.partialorder %v794, 0.0
        %vm941 = vcmp.gt.f32.partialorder %v796, 0.0
        %vm942 = vcmp.gt.f32.partialorder %v605, 0.0
        %vm943 = vcmp.gt.f32.partialorder %v607, 0.0
        %vm944 = vcmp.gt.f32.partialorder %v798, 0.0
        %vm945 = vcmp.gt.f32.partialorder %v800, 0.0
        %vm946 = vcmp.gt.f32.partialorder %v611, 0.0
        %vm947 = vcmp.gt.f32.partialorder %v613, 0.0
        %vm948 = vcmp.gt.f32.partialorder %v804, 0.0
        %vm949 = vcmp.gt.f32.partialorder %v806, 0.0
        %vm950 = vcmp.gt.f32.partialorder %v615, 0.0
        %vm951 = vcmp.gt.f32.partialorder %v617, 0.0
        %vm952 = vcmp.gt.f32.partialorder %v808, 0.0
        %vm953 = vcmp.gt.f32.partialorder %v810, 0.0
        %vm954 = vcmp.gt.f32.partialorder %v621, 0.0
        %vm955 = vcmp.gt.f32.partialorder %v623, 0.0
        %vm956 = vcmp.gt.f32.partialorder %v814, 0.0
        %vm957 = vcmp.gt.f32.partialorder %v816, 0.0
        %vm958 = vcmp.gt.f32.partialorder %v625, 0.0
        %vm959 = vcmp.gt.f32.partialorder %v627, 0.0
        %vm960 = vcmp.gt.f32.partialorder %v818, 0.0
        %vm961 = vcmp.gt.f32.partialorder %v820, 0.0
        %vm962 = vcmp.gt.f32.partialorder %v631, 0.0
        %vm963 = vcmp.gt.f32.partialorder %v633, 0.0
        %vm964 = vcmp.gt.f32.partialorder %v824, 0.0
        %vm965 = vcmp.gt.f32.partialorder %v826, 0.0
        %vm966 = vcmp.gt.f32.partialorder %v635, 0.0
        %vm967 = vcmp.gt.f32.partialorder %v637, 0.0
        %vm968 = vcmp.gt.f32.partialorder %v828, 0.0
        %vm969 = vcmp.gt.f32.partialorder %v830, 0.0
        %vm970 = vcmp.gt.f32.partialorder %v641, 0.0
        %vm971 = vcmp.gt.f32.partialorder %v643, 0.0
        %vm972 = vcmp.gt.f32.partialorder %v834, 0.0
        %vm973 = vcmp.gt.f32.partialorder %v836, 0.0
        %vm974 = vcmp.gt.f32.partialorder %v645, 0.0
        %vm975 = vcmp.gt.f32.partialorder %v647, 0.0
        %vm976 = vcmp.gt.f32.partialorder %v838, 0.0
        %vm977 = vcmp.gt.f32.partialorder %v840, 0.0
        %vm978 = vcmp.gt.f32.partialorder %v651, 0.0
        %vm979 = vcmp.gt.f32.partialorder %v653, 0.0
        %vm980 = vcmp.gt.f32.partialorder %v844, 0.0
        %vm981 = vcmp.gt.f32.partialorder %v846, 0.0
        %vm982 = vcmp.gt.f32.partialorder %v655, 0.0
        %vm983 = vcmp.gt.f32.partialorder %v657, 0.0
        %vm984 = vcmp.gt.f32.partialorder %v848, 0.0
        %vm985 = vcmp.gt.f32.partialorder %v850, 0.0
        %vm986 = vcmp.gt.f32.partialorder %v661, 0.0
        %vm987 = vcmp.gt.f32.partialorder %v663, 0.0
        %vm988 = vcmp.gt.f32.partialorder %v854, 0.0
        %vm989 = vcmp.gt.f32.partialorder %v856, 0.0
        %vm990 = vcmp.gt.f32.partialorder %v665, 0.0
        %vm991 = vcmp.gt.f32.partialorder %v667, 0.0
        %vm992 = vcmp.gt.f32.partialorder %v858, 0.0
        %vm993 = vcmp.gt.f32.partialorder %v860, 0.0
        %vm994 = vcmp.gt.f32.partialorder %v671, 0.0
        %vm995 = vcmp.gt.f32.partialorder %v673, 0.0
        %vm996 = vcmp.gt.f32.partialorder %v864, 0.0
        %vm997 = vcmp.gt.f32.partialorder %v866, 0.0
        %vm998 = vcmp.gt.f32.partialorder %v675, 0.0
        %vm999 = vcmp.gt.f32.partialorder %v677, 0.0
        %vm1000 = vcmp.gt.f32.partialorder %v868, 0.0
        %vm1001 = vcmp.gt.f32.partialorder %v870, 0.0
        %vm1002 = vcmp.gt.f32.partialorder %v681, 0.0
        %vm1003 = vcmp.gt.f32.partialorder %v683, 0.0
        %vm1004 = vcmp.gt.f32.partialorder %v874, 0.0
        %vm1005 = vcmp.gt.f32.partialorder %v876, 0.0
        %vm1006 = vcmp.gt.f32.partialorder %v685, 0.0
        %vm1007 = vcmp.gt.f32.partialorder %v687, 0.0
        %vm1008 = vcmp.gt.f32.partialorder %v878, 0.0
        %vm1009 = vcmp.gt.f32.partialorder %v880, 0.0
        %v1010 = vmul.f32 %v531, 0.01
        %v1011 = vmul.f32 %v533, 0.01
        %v1012 = vmul.f32 %v724, 0.01
        %v1013 = vmul.f32 %v726, 0.01
        %v1014 = vmul.f32 %v535, 0.01
        %v1015 = vmul.f32 %v537, 0.01
        %v1016 = vmul.f32 %v728, 0.01
        %v1017 = vmul.f32 %v730, 0.01
        %v1018 = vmul.f32 %v541, 0.01
        %v1019 = vmul.f32 %v543, 0.01
        %v1020 = vmul.f32 %v734, 0.01
        %v1021 = vmul.f32 %v736, 0.01
        %v1022 = vmul.f32 %v545, 0.01
        %v1023 = vmul.f32 %v547, 0.01
        %v1024 = vmul.f32 %v738, 0.01
        %v1025 = vmul.f32 %v740, 0.01
        %v1026 = vmul.f32 %v551, 0.01
        %v1027 = vmul.f32 %v553, 0.01
        %v1028 = vmul.f32 %v744, 0.01
        %v1029 = vmul.f32 %v746, 0.01
        %v1030 = vmul.f32 %v555, 0.01
        %v1031 = vmul.f32 %v557, 0.01
        %v1032 = vmul.f32 %v748, 0.01
        %v1033 = vmul.f32 %v750, 0.01
        %v1034 = vmul.f32 %v561, 0.01
        %v1035 = vmul.f32 %v563, 0.01
        %v1036 = vmul.f32 %v754, 0.01
        %v1037 = vmul.f32 %v756, 0.01
        %v1038 = vmul.f32 %v565, 0.01
        %v1039 = vmul.f32 %v567, 0.01
        %v1040 = vmul.f32 %v758, 0.01
        %v1041 = vmul.f32 %v760, 0.01
        %v1042 = vmul.f32 %v571, 0.01
        %v1043 = vmul.f32 %v573, 0.01
        %v1044 = vmul.f32 %v764, 0.01
        %v1045 = vmul.f32 %v766, 0.01
        %v1046 = vmul.f32 %v575, 0.01
        %v1047 = vmul.f32 %v577, 0.01
        %v1048 = vmul.f32 %v768, 0.01
        %v1049 = vmul.f32 %v770, 0.01
        %v1050 = vmul.f32 %v581, 0.01
        %v1051 = vmul.f32 %v583, 0.01
        %v1052 = vmul.f32 %v774, 0.01
        %v1053 = vmul.f32 %v776, 0.01
        %v1054 = vmul.f32 %v585, 0.01
        %v1055 = vmul.f32 %v587, 0.01
        %v1056 = vmul.f32 %v778, 0.01
        %v1057 = vmul.f32 %v780, 0.01
        %v1058 = vmul.f32 %v591, 0.01
        %v1059 = vmul.f32 %v593, 0.01
        %v1060 = vmul.f32 %v784, 0.01
        %v1061 = vmul.f32 %v786, 0.01
        %v1062 = vmul.f32 %v595, 0.01
        %v1063 = vmul.f32 %v597, 0.01
        %v1064 = vmul.f32 %v788, 0.01
        %v1065 = vmul.f32 %v790, 0.01
        %v1066 = vmul.f32 %v601, 0.01
        %v1067 = vmul.f32 %v603, 0.01
        %v1068 = vmul.f32 %v794, 0.01
        %v1069 = vmul.f32 %v796, 0.01
        %v1070 = vmul.f32 %v605, 0.01
        %v1071 = vmul.f32 %v607, 0.01
        %v1072 = vmul.f32 %v798, 0.01
        %v1073 = vmul.f32 %v800, 0.01
        %v1074 = vmul.f32 %v611, 0.01
        %v1075 = vmul.f32 %v613, 0.01
        %v1076 = vmul.f32 %v804, 0.01
        %v1077 = vmul.f32 %v806, 0.01
        %v1078 = vmul.f32 %v615, 0.01
        %v1079 = vmul.f32 %v617, 0.01
        %v1080 = vmul.f32 %v808, 0.01
        %v1081 = vmul.f32 %v810, 0.01
        %v1082 = vmul.f32 %v621, 0.01
        %v1083 = vmul.f32 %v623, 0.01
        %v1084 = vmul.f32 %v814, 0.01
        %v1085 = vmul.f32 %v816, 0.01
        %v1086 = vmul.f32 %v625, 0.01
        %v1087 = vmul.f32 %v627, 0.01
        %v1088 = vmul.f32 %v818, 0.01
        %v1089 = vmul.f32 %v820, 0.01
        %v1090 = vmul.f32 %v631, 0.01
        %v1091 = vmul.f32 %v633, 0.01
        %v1092 = vmul.f32 %v824, 0.01
        %v1093 = vmul.f32 %v826, 0.01
        %v1094 = vmul.f32 %v635, 0.01
        %v1095 = vmul.f32 %v637, 0.01
        %v1096 = vmul.f32 %v828, 0.01
        %v1097 = vmul.f32 %v830, 0.01
        %v1098 = vmul.f32 %v641, 0.01
        %v1099 = vmul.f32 %v643, 0.01
        %v1100 = vmul.f32 %v834, 0.01
        %v1101 = vmul.f32 %v836, 0.01
        %v1102 = vmul.f32 %v645, 0.01
        %v1103 = vmul.f32 %v647, 0.01
        %v1104 = vmul.f32 %v838, 0.01
        %v1105 = vmul.f32 %v840, 0.01
        %v1106 = vmul.f32 %v651, 0.01
        %v1107 = vmul.f32 %v653, 0.01
        %v1108 = vmul.f32 %v844, 0.01
        %v1109 = vmul.f32 %v846, 0.01
        %v1110 = vmul.f32 %v655, 0.01
        %v1111 = vmul.f32 %v657, 0.01
        %v1112 = vmul.f32 %v848, 0.01
        %v1113 = vmul.f32 %v850, 0.01
        %v1114 = vmul.f32 %v661, 0.01
        %v1115 = vmul.f32 %v663, 0.01
        %v1116 = vmul.f32 %v854, 0.01
        %v1117 = vmul.f32 %v856, 0.01
        %v1118 = vmul.f32 %v665, 0.01
        %v1119 = vmul.f32 %v667, 0.01
        %v1120 = vmul.f32 %v858, 0.01
        %v1121 = vmul.f32 %v860, 0.01
        %v1122 = vmul.f32 %v671, 0.01
        %v1123 = vmul.f32 %v673, 0.01
        %v1124 = vmul.f32 %v864, 0.01
        %v1125 = vmul.f32 %v866, 0.01
        %v1126 = vmul.f32 %v675, 0.01
        %v1127 = vmul.f32 %v677, 0.01
        %v1128 = vmul.f32 %v868, 0.01
        %v1129 = vmul.f32 %v870, 0.01
        %v1130 = vmul.f32 %v681, 0.01
        %v1131 = vmul.f32 %v683, 0.01
        %v1132 = vmul.f32 %v874, 0.01
        %v1133 = vmul.f32 %v876, 0.01
        %v1134 = vmul.f32 %v685, 0.01
        %v1135 = vmul.f32 %v687, 0.01
        %v1136 = vmul.f32 %v878, 0.01
        %v1137 = vmul.f32 %v880, 0.01
        %v1138 = vsel %vm882, %v531, %v1010
        %v1139 = vsel %vm883, %v533, %v1011
        %v1140 = vsel %vm884, %v724, %v1012
        %v1141 = vsel %vm885, %v726, %v1013
        %v1142 = vsel %vm886, %v535, %v1014
        %v1143 = vsel %vm887, %v537, %v1015
        %v1144 = vsel %vm888, %v728, %v1016
        %v1145 = vsel %vm889, %v730, %v1017
        %v1146 = vsel %vm890, %v541, %v1018
        %v1147 = vsel %vm891, %v543, %v1019
        %v1148 = vsel %vm892, %v734, %v1020
        %v1149 = vsel %vm893, %v736, %v1021
        %v1150 = vsel %vm894, %v545, %v1022
        %v1151 = vsel %vm895, %v547, %v1023
        %v1152 = vsel %vm896, %v738, %v1024
        %v1153 = vsel %vm897, %v740, %v1025
        %v1154 = vsel %vm898, %v551, %v1026
        %v1155 = vsel %vm899, %v553, %v1027
        %v1156 = vsel %vm900, %v744, %v1028
        %v1157 = vsel %vm901, %v746, %v1029
        %v1158 = vsel %vm902, %v555, %v1030
        %v1159 = vsel %vm903, %v557, %v1031
        %v1160 = vsel %vm904, %v748, %v1032
        %v1161 = vsel %vm905, %v750, %v1033
        %v1162 = vsel %vm906, %v561, %v1034
        %v1163 = vsel %vm907, %v563, %v1035
        %v1164 = vsel %vm908, %v754, %v1036
        %v1165 = vsel %vm909, %v756, %v1037
        %v1166 = vsel %vm910, %v565, %v1038
        %v1167 = vsel %vm911, %v567, %v1039
        %v1168 = vsel %vm912, %v758, %v1040
        %v1169 = vsel %vm913, %v760, %v1041
        %v1170 = vsel %vm914, %v571, %v1042
        %v1171 = vsel %vm915, %v573, %v1043
        %v1172 = vsel %vm916, %v764, %v1044
        %v1173 = vsel %vm917, %v766, %v1045
        %v1174 = vsel %vm918, %v575, %v1046
        %v1175 = vsel %vm919, %v577, %v1047
        %v1176 = vsel %vm920, %v768, %v1048
        %v1177 = vsel %vm921, %v770, %v1049
        %v1178 = vsel %vm922, %v581, %v1050
        %v1179 = vsel %vm923, %v583, %v1051
        %v1180 = vsel %vm924, %v774, %v1052
        %v1181 = vsel %vm925, %v776, %v1053
        %v1182 = vsel %vm926, %v585, %v1054
        %v1183 = vsel %vm927, %v587, %v1055
        %v1184 = vsel %vm928, %v778, %v1056
        %v1185 = vsel %vm929, %v780, %v1057
        %v1186 = vsel %vm930, %v591, %v1058
        %v1187 = vsel %vm931, %v593, %v1059
        %v1188 = vsel %vm932, %v784, %v1060
        %v1189 = vsel %vm933, %v786, %v1061
        %v1190 = vsel %vm934, %v595, %v1062
        %v1191 = vsel %vm935, %v597, %v1063
        %v1192 = vsel %vm936, %v788, %v1064
        %v1193 = vsel %vm937, %v790, %v1065
        %v1194 = vsel %vm938, %v601, %v1066
        %v1195 = vsel %vm939, %v603, %v1067
        %v1196 = vsel %vm940, %v794, %v1068
        %v1197 = vsel %vm941, %v796, %v1069
        %v1198 = vsel %vm942, %v605, %v1070
        %v1199 = vsel %vm943, %v607, %v1071
        %v1200 = vsel %vm944, %v798, %v1072
        %v1201 = vsel %vm945, %v800, %v1073
        %v1202 = vsel %vm946, %v611, %v1074
        %v1203 = vsel %vm947, %v613, %v1075
        %v1204 = vsel %vm948, %v804, %v1076
        %v1205 = vsel %vm949, %v806, %v1077
        %v1206 = vsel %vm950, %v615, %v1078
        %v1207 = vsel %vm951, %v617, %v1079
        %v1208 = vsel %vm952, %v808, %v1080
        %v1209 = vsel %vm953, %v810, %v1081
        %v1210 = vsel %vm954, %v621, %v1082
        %v1211 = vsel %vm955, %v623, %v1083
        %v1212 = vsel %vm956, %v814, %v1084
        %v1213 = vsel %vm957, %v816, %v1085
        %v1214 = vsel %vm958, %v625, %v1086
        %v1215 = vsel %vm959, %v627, %v1087
        %v1216 = vsel %vm960, %v818, %v1088
        %v1217 = vsel %vm961, %v820, %v1089
        %v1218 = vsel %vm962, %v631, %v1090
        %v1219 = vsel %vm963, %v633, %v1091
        %v1220 = vsel %vm964, %v824, %v1092
        %v1221 = vsel %vm965, %v826, %v1093
        %v1222 = vsel %vm966, %v635, %v1094
        %v1223 = vsel %vm967, %v637, %v1095
        %v1224 = vsel %vm968, %v828, %v1096
        %v1225 = vsel %vm969, %v830, %v1097
        %v1226 = vsel %vm970, %v641, %v1098
        %v1227 = vsel %vm971, %v643, %v1099
        %v1228 = vsel %vm972, %v834, %v1100
        %v1229 = vsel %vm973, %v836, %v1101
        %v1230 = vsel %vm974, %v645, %v1102
        %v1231 = vsel %vm975, %v647, %v1103
        %v1232 = vsel %vm976, %v838, %v1104
        %v1233 = vsel %vm977, %v840, %v1105
        %v1234 = vsel %vm978, %v651, %v1106
        %v1235 = vsel %vm979, %v653, %v1107
        %v1236 = vsel %vm980, %v844, %v1108
        %v1237 = vsel %vm981, %v846, %v1109
        %v1238 = vsel %vm982, %v655, %v1110
        %v1239 = vsel %vm983, %v657, %v1111
        %v1240 = vsel %vm984, %v848, %v1112
        %v1241 = vsel %vm985, %v850, %v1113
        %v1242 = vsel %vm986, %v661, %v1114
        %v1243 = vsel %vm987, %v663, %v1115
        %v1244 = vsel %vm988, %v854, %v1116
        %v1245 = vsel %vm989, %v856, %v1117
        %v1246 = vsel %vm990, %v665, %v1118
        %v1247 = vsel %vm991, %v667, %v1119
        %v1248 = vsel %vm992, %v858, %v1120
        %v1249 = vsel %vm993, %v860, %v1121
        %v1250 = vsel %vm994, %v671, %v1122
        %v1251 = vsel %vm995, %v673, %v1123
        %v1252 = vsel %vm996, %v864, %v1124
        %v1253 = vsel %vm997, %v866, %v1125
        %v1254 = vsel %vm998, %v675, %v1126
        %v1255 = vsel %vm999, %v677, %v1127
        %v1256 = vsel %vm1000, %v868, %v1128
        %v1257 = vsel %vm1001, %v870, %v1129
        %v1258 = vsel %vm1002, %v681, %v1130
        %v1259 = vsel %vm1003, %v683, %v1131
        %v1260 = vsel %vm1004, %v874, %v1132
        %v1261 = vsel %vm1005, %v876, %v1133
        %v1262 = vsel %vm1006, %v685, %v1134
        %v1263 = vsel %vm1007, %v687, %v1135
        %v1264 = vsel %vm1008, %v878, %v1136
        %v1265 = vsel %vm1009, %v880, %v1137
        %p1266 = scmp.eq.s32.totalorder %s25, 0
        // Predicated region
        $region45: #{tpu_custom_call.1} parent=31 // pred_check
          %p1267 = pneg %p1266
        $region46: #{tpu_custom_call.1} parent=31 // pred_check_branch
          %1269 = sbr.rel (%p1267) target = $region48
        $region47: #{tpu_custom_call.1} parent=31 // pred_region
          %p1270 = scmp.eq.s32.totalorder %s26, 0
          // Predicated region
          $region49: #{tpu_custom_call.1} parent=47 // pred_check
            %p1271 = pneg %p1270
          $region50: #{tpu_custom_call.1} parent=47 // pred_check_branch
            %1273 = sbr.rel (%p1271) target = $region52
          $region51: #{tpu_custom_call.1} parent=47 // pred_region
            %v1274 = vlaneseq
            %vm1275 = vcmp.ge.s32.totalorder %v1274, 0
            %vm1276 = vcmp.lt.s32.totalorder %v1274, 512
            %vm1277 = vmand %vm1275, %vm1276
            %1278 = vst.msk [vmem:[#allocation2] sm:$0xf] %vm1277, 0.0
            %1279 = vst.msk [vmem:[#allocation3] sm:$0xf] %vm1277, 0.0
          $region52: #{tpu_custom_call.1} parent=47 // pred_fallthru
            _
          %v1280 = vlaneseq
          %v1281 = vshrl.u32 %v1280, 7
          %v1282 = vadd.s32 %v1281, 8
          %v1283 = vadd.s32 %v1281, 16
          %v1284 = vadd.s32 %v1281, 24
          %v1285 = vadd.s32 %v1281, 32
          %v1286 = vadd.s32 %v1281, 40
          %v1287 = vadd.s32 %v1281, 48
          %v1288 = vadd.s32 %v1281, 56
          %v1289 = vadd.s32 %v1281, 64
          %v1290 = vadd.s32 %v1281, 72
          %v1291 = vadd.s32 %v1281, 80
          %v1292 = vadd.s32 %v1281, 88
          %v1293 = vadd.s32 %v1281, 96
          %v1294 = vadd.s32 %v1281, 104
          %v1295 = vadd.s32 %v1281, 112
          %v1296 = vadd.s32 %v1281, 120
          %v1297 = vadd.s32 %v1281, 128
          %v1298 = vadd.s32 %v1281, 136
          %v1299 = vadd.s32 %v1281, 144
          %v1300 = vadd.s32 %v1281, 152
          %v1301 = vadd.s32 %v1281, 160
          %v1302 = vadd.s32 %v1281, 168
          %v1303 = vadd.s32 %v1281, 176
          %v1304 = vadd.s32 %v1281, 184
          %v1305 = vadd.s32 %v1281, 192
          %v1306 = vadd.s32 %v1281, 200
          %v1307 = vadd.s32 %v1281, 208
          %v1308 = vadd.s32 %v1281, 216
          %v1309 = vadd.s32 %v1281, 224
          %v1310 = vadd.s32 %v1281, 232
          %v1311 = vadd.s32 %v1281, 240
          %v1312 = vadd.s32 %v1281, 248
          %s1313 = smul.u32 %s26, 256
          %v1314 = vstv %s1313
          %v1315 = vadd.s32 %v1281, %v1314
          %v1316 = vadd.s32 %v1282, %v1314
          %v1317 = vadd.s32 %v1283, %v1314
          %v1318 = vadd.s32 %v1284, %v1314
          %v1319 = vadd.s32 %v1285, %v1314
          %v1320 = vadd.s32 %v1286, %v1314
          %v1321 = vadd.s32 %v1287, %v1314
          %v1322 = vadd.s32 %v1288, %v1314
          %v1323 = vadd.s32 %v1289, %v1314
          %v1324 = vadd.s32 %v1290, %v1314
          %v1325 = vadd.s32 %v1291, %v1314
          %v1326 = vadd.s32 %v1292, %v1314
          %v1327 = vadd.s32 %v1293, %v1314
          %v1328 = vadd.s32 %v1294, %v1314
          %v1329 = vadd.s32 %v1295, %v1314
          %v1330 = vadd.s32 %v1296, %v1314
          %v1331 = vadd.s32 %v1297, %v1314
          %v1332 = vadd.s32 %v1298, %v1314
          %v1333 = vadd.s32 %v1299, %v1314
          %v1334 = vadd.s32 %v1300, %v1314
          %v1335 = vadd.s32 %v1301, %v1314
          %v1336 = vadd.s32 %v1302, %v1314
          %v1337 = vadd.s32 %v1303, %v1314
          %v1338 = vadd.s32 %v1304, %v1314
          %v1339 = vadd.s32 %v1305, %v1314
          %v1340 = vadd.s32 %v1306, %v1314
          %v1341 = vadd.s32 %v1307, %v1314
          %v1342 = vadd.s32 %v1308, %v1314
          %v1343 = vadd.s32 %v1309, %v1314
          %v1344 = vadd.s32 %v1310, %v1314
          %v1345 = vadd.s32 %v1311, %v1314
          %v1346 = vadd.s32 %v1312, %v1314
          %vm1347 = vcmp.lt.s32.totalorder %v1315, 384
          %vm1348 = vcmp.lt.s32.totalorder %v1316, 384
          %vm1349 = vcmp.lt.s32.totalorder %v1317, 384
          %vm1350 = vcmp.lt.s32.totalorder %v1318, 384
          %vm1351 = vcmp.lt.s32.totalorder %v1319, 384
          %vm1352 = vcmp.lt.s32.totalorder %v1320, 384
          %vm1353 = vcmp.lt.s32.totalorder %v1321, 384
          %vm1354 = vcmp.lt.s32.totalorder %v1322, 384
          %vm1355 = vcmp.lt.s32.totalorder %v1323, 384
          %vm1356 = vcmp.lt.s32.totalorder %v1324, 384
          %vm1357 = vcmp.lt.s32.totalorder %v1325, 384
          %vm1358 = vcmp.lt.s32.totalorder %v1326, 384
          %vm1359 = vcmp.lt.s32.totalorder %v1327, 384
          %vm1360 = vcmp.lt.s32.totalorder %v1328, 384
          %vm1361 = vcmp.lt.s32.totalorder %v1329, 384
          %vm1362 = vcmp.lt.s32.totalorder %v1330, 384
          %vm1363 = vcmp.lt.s32.totalorder %v1331, 384
          %vm1364 = vcmp.lt.s32.totalorder %v1332, 384
          %vm1365 = vcmp.lt.s32.totalorder %v1333, 384
          %vm1366 = vcmp.lt.s32.totalorder %v1334, 384
          %vm1367 = vcmp.lt.s32.totalorder %v1335, 384
          %vm1368 = vcmp.lt.s32.totalorder %v1336, 384
          %vm1369 = vcmp.lt.s32.totalorder %v1337, 384
          %vm1370 = vcmp.lt.s32.totalorder %v1338, 384
          %vm1371 = vcmp.lt.s32.totalorder %v1339, 384
          %vm1372 = vcmp.lt.s32.totalorder %v1340, 384
          %vm1373 = vcmp.lt.s32.totalorder %v1341, 384
          %vm1374 = vcmp.lt.s32.totalorder %v1342, 384
          %vm1375 = vcmp.lt.s32.totalorder %v1343, 384
          %vm1376 = vcmp.lt.s32.totalorder %v1344, 384
          %vm1377 = vcmp.lt.s32.totalorder %v1345, 384
          %vm1378 = vcmp.lt.s32.totalorder %v1346, 384
          %v1379 = vsel %vm1347, 1, 0
          %v1380 = vsel %vm1348, 1, 0
          %v1381 = vsel %vm1349, 1, 0
          %v1382 = vsel %vm1350, 1, 0
          %v1383 = vsel %vm1351, 1, 0
          %v1384 = vsel %vm1352, 1, 0
          %v1385 = vsel %vm1353, 1, 0
          %v1386 = vsel %vm1354, 1, 0
          %v1387 = vsel %vm1355, 1, 0
          %v1388 = vsel %vm1356, 1, 0
          %v1389 = vsel %vm1357, 1, 0
          %v1390 = vsel %vm1358, 1, 0
          %v1391 = vsel %vm1359, 1, 0
          %v1392 = vsel %vm1360, 1, 0
          %v1393 = vsel %vm1361, 1, 0
          %v1394 = vsel %vm1362, 1, 0
          %v1395 = vsel %vm1363, 1, 0
          %v1396 = vsel %vm1364, 1, 0
          %v1397 = vsel %vm1365, 1, 0
          %v1398 = vsel %vm1366, 1, 0
          %v1399 = vsel %vm1367, 1, 0
          %v1400 = vsel %vm1368, 1, 0
          %v1401 = vsel %vm1369, 1, 0
          %v1402 = vsel %vm1370, 1, 0
          %v1403 = vsel %vm1371, 1, 0
          %v1404 = vsel %vm1372, 1, 0
          %v1405 = vsel %vm1373, 1, 0
          %v1406 = vsel %vm1374, 1, 0
          %v1407 = vsel %vm1375, 1, 0
          %v1408 = vsel %vm1376, 1, 0
          %v1409 = vsel %vm1377, 1, 0
          %v1410 = vsel %vm1378, 1, 0
          %vm1411 = vcmp.eq.s32.totalorder %v1379, 1
          %vm1412 = vcmp.eq.s32.totalorder %v1380, 1
          %vm1413 = vcmp.eq.s32.totalorder %v1381, 1
          %vm1414 = vcmp.eq.s32.totalorder %v1382, 1
          %vm1415 = vcmp.eq.s32.totalorder %v1383, 1
          %vm1416 = vcmp.eq.s32.totalorder %v1384, 1
          %vm1417 = vcmp.eq.s32.totalorder %v1385, 1
          %vm1418 = vcmp.eq.s32.totalorder %v1386, 1
          %vm1419 = vcmp.eq.s32.totalorder %v1387, 1
          %vm1420 = vcmp.eq.s32.totalorder %v1388, 1
          %vm1421 = vcmp.eq.s32.totalorder %v1389, 1
          %vm1422 = vcmp.eq.s32.totalorder %v1390, 1
          %vm1423 = vcmp.eq.s32.totalorder %v1391, 1
          %vm1424 = vcmp.eq.s32.totalorder %v1392, 1
          %vm1425 = vcmp.eq.s32.totalorder %v1393, 1
          %vm1426 = vcmp.eq.s32.totalorder %v1394, 1
          %vm1427 = vcmp.eq.s32.totalorder %v1395, 1
          %vm1428 = vcmp.eq.s32.totalorder %v1396, 1
          %vm1429 = vcmp.eq.s32.totalorder %v1397, 1
          %vm1430 = vcmp.eq.s32.totalorder %v1398, 1
          %vm1431 = vcmp.eq.s32.totalorder %v1399, 1
          %vm1432 = vcmp.eq.s32.totalorder %v1400, 1
          %vm1433 = vcmp.eq.s32.totalorder %v1401, 1
          %vm1434 = vcmp.eq.s32.totalorder %v1402, 1
          %vm1435 = vcmp.eq.s32.totalorder %v1403, 1
          %vm1436 = vcmp.eq.s32.totalorder %v1404, 1
          %vm1437 = vcmp.eq.s32.totalorder %v1405, 1
          %vm1438 = vcmp.eq.s32.totalorder %v1406, 1
          %vm1439 = vcmp.eq.s32.totalorder %v1407, 1
          %vm1440 = vcmp.eq.s32.totalorder %v1408, 1
          %vm1441 = vcmp.eq.s32.totalorder %v1409, 1
          %vm1442 = vcmp.eq.s32.totalorder %v1410, 1
          %v1443 = vsel %vm1411, %v1138, 0.0
          %v1444 = vsel %vm1411, %v1139, 0.0
          %v1445 = vsel %vm1411, %v1140, 0.0
          %v1446 = vsel %vm1411, %v1141, 0.0
          %v1447 = vsel %vm1412, %v1142, 0.0
          %v1448 = vsel %vm1412, %v1143, 0.0
          %v1449 = vsel %vm1412, %v1144, 0.0
          %v1450 = vsel %vm1412, %v1145, 0.0
          %v1451 = vsel %vm1413, %v1146, 0.0
          %v1452 = vsel %vm1413, %v1147, 0.0
          %v1453 = vsel %vm1413, %v1148, 0.0
          %v1454 = vsel %vm1413, %v1149, 0.0
          %v1455 = vsel %vm1414, %v1150, 0.0
          %v1456 = vsel %vm1414, %v1151, 0.0
          %v1457 = vsel %vm1414, %v1152, 0.0
          %v1458 = vsel %vm1414, %v1153, 0.0
          %v1459 = vsel %vm1415, %v1154, 0.0
          %v1460 = vsel %vm1415, %v1155, 0.0
          %v1461 = vsel %vm1415, %v1156, 0.0
          %v1462 = vsel %vm1415, %v1157, 0.0
          %v1463 = vsel %vm1416, %v1158, 0.0
          %v1464 = vsel %vm1416, %v1159, 0.0
          %v1465 = vsel %vm1416, %v1160, 0.0
          %v1466 = vsel %vm1416, %v1161, 0.0
          %v1467 = vsel %vm1417, %v1162, 0.0
          %v1468 = vsel %vm1417, %v1163, 0.0
          %v1469 = vsel %vm1417, %v1164, 0.0
          %v1470 = vsel %vm1417, %v1165, 0.0
          %v1471 = vsel %vm1418, %v1166, 0.0
          %v1472 = vsel %vm1418, %v1167, 0.0
          %v1473 = vsel %vm1418, %v1168, 0.0
          %v1474 = vsel %vm1418, %v1169, 0.0
          %v1475 = vsel %vm1419, %v1170, 0.0
          %v1476 = vsel %vm1419, %v1171, 0.0
          %v1477 = vsel %vm1419, %v1172, 0.0
          %v1478 = vsel %vm1419, %v1173, 0.0
          %v1479 = vsel %vm1420, %v1174, 0.0
          %v1480 = vsel %vm1420, %v1175, 0.0
          %v1481 = vsel %vm1420, %v1176, 0.0
          %v1482 = vsel %vm1420, %v1177, 0.0
          %v1483 = vsel %vm1421, %v1178, 0.0
          %v1484 = vsel %vm1421, %v1179, 0.0
          %v1485 = vsel %vm1421, %v1180, 0.0
          %v1486 = vsel %vm1421, %v1181, 0.0
          %v1487 = vsel %vm1422, %v1182, 0.0
          %v1488 = vsel %vm1422, %v1183, 0.0
          %v1489 = vsel %vm1422, %v1184, 0.0
          %v1490 = vsel %vm1422, %v1185, 0.0
          %v1491 = vsel %vm1423, %v1186, 0.0
          %v1492 = vsel %vm1423, %v1187, 0.0
          %v1493 = vsel %vm1423, %v1188, 0.0
          %v1494 = vsel %vm1423, %v1189, 0.0
          %v1495 = vsel %vm1424, %v1190, 0.0
          %v1496 = vsel %vm1424, %v1191, 0.0
          %v1497 = vsel %vm1424, %v1192, 0.0
          %v1498 = vsel %vm1424, %v1193, 0.0
          %v1499 = vsel %vm1425, %v1194, 0.0
          %v1500 = vsel %vm1425, %v1195, 0.0
          %v1501 = vsel %vm1425, %v1196, 0.0
          %v1502 = vsel %vm1425, %v1197, 0.0
          %v1503 = vsel %vm1426, %v1198, 0.0
          %v1504 = vsel %vm1426, %v1199, 0.0
          %v1505 = vsel %vm1426, %v1200, 0.0
          %v1506 = vsel %vm1426, %v1201, 0.0
          %v1507 = vsel %vm1427, %v1202, 0.0
          %v1508 = vsel %vm1427, %v1203, 0.0
          %v1509 = vsel %vm1427, %v1204, 0.0
          %v1510 = vsel %vm1427, %v1205, 0.0
          %v1511 = vsel %vm1428, %v1206, 0.0
          %v1512 = vsel %vm1428, %v1207, 0.0
          %v1513 = vsel %vm1428, %v1208, 0.0
          %v1514 = vsel %vm1428, %v1209, 0.0
          %v1515 = vsel %vm1429, %v1210, 0.0
          %v1516 = vsel %vm1429, %v1211, 0.0
          %v1517 = vsel %vm1429, %v1212, 0.0
          %v1518 = vsel %vm1429, %v1213, 0.0
          %v1519 = vsel %vm1430, %v1214, 0.0
          %v1520 = vsel %vm1430, %v1215, 0.0
          %v1521 = vsel %vm1430, %v1216, 0.0
          %v1522 = vsel %vm1430, %v1217, 0.0
          %v1523 = vsel %vm1431, %v1218, 0.0
          %v1524 = vsel %vm1431, %v1219, 0.0
          %v1525 = vsel %vm1431, %v1220, 0.0
          %v1526 = vsel %vm1431, %v1221, 0.0
          %v1527 = vsel %vm1432, %v1222, 0.0
          %v1528 = vsel %vm1432, %v1223, 0.0
          %v1529 = vsel %vm1432, %v1224, 0.0
          %v1530 = vsel %vm1432, %v1225, 0.0
          %v1531 = vsel %vm1433, %v1226, 0.0
          %v1532 = vsel %vm1433, %v1227, 0.0
          %v1533 = vsel %vm1433, %v1228, 0.0
          %v1534 = vsel %vm1433, %v1229, 0.0
          %v1535 = vsel %vm1434, %v1230, 0.0
          %v1536 = vsel %vm1434, %v1231, 0.0
          %v1537 = vsel %vm1434, %v1232, 0.0
          %v1538 = vsel %vm1434, %v1233, 0.0
          %v1539 = vsel %vm1435, %v1234, 0.0
          %v1540 = vsel %vm1435, %v1235, 0.0
          %v1541 = vsel %vm1435, %v1236, 0.0
          %v1542 = vsel %vm1435, %v1237, 0.0
          %v1543 = vsel %vm1436, %v1238, 0.0
          %v1544 = vsel %vm1436, %v1239, 0.0
          %v1545 = vsel %vm1436, %v1240, 0.0
          %v1546 = vsel %vm1436, %v1241, 0.0
          %v1547 = vsel %vm1437, %v1242, 0.0
          %v1548 = vsel %vm1437, %v1243, 0.0
          %v1549 = vsel %vm1437, %v1244, 0.0
          %v1550 = vsel %vm1437, %v1245, 0.0
          %v1551 = vsel %vm1438, %v1246, 0.0
          %v1552 = vsel %vm1438, %v1247, 0.0
          %v1553 = vsel %vm1438, %v1248, 0.0
          %v1554 = vsel %vm1438, %v1249, 0.0
          %v1555 = vsel %vm1439, %v1250, 0.0
          %v1556 = vsel %vm1439, %v1251, 0.0
          %v1557 = vsel %vm1439, %v1252, 0.0
          %v1558 = vsel %vm1439, %v1253, 0.0
          %v1559 = vsel %vm1440, %v1254, 0.0
          %v1560 = vsel %vm1440, %v1255, 0.0
          %v1561 = vsel %vm1440, %v1256, 0.0
          %v1562 = vsel %vm1440, %v1257, 0.0
          %v1563 = vsel %vm1441, %v1258, 0.0
          %v1564 = vsel %vm1441, %v1259, 0.0
          %v1565 = vsel %vm1441, %v1260, 0.0
          %v1566 = vsel %vm1441, %v1261, 0.0
          %v1567 = vsel %vm1442, %v1262, 0.0
          %v1568 = vsel %vm1442, %v1263, 0.0
          %v1569 = vsel %vm1442, %v1264, 0.0
          %v1570 = vsel %vm1442, %v1265, 0.0
          %v1571 = vld [vmem:[#allocation2] sm:$0xf]
          %v1572 = vadd.f32 %v1443, %v1447
          %v1573 = vadd.f32 %v1572, %v1451
          %v1574 = vadd.f32 %v1573, %v1455
          %v1575 = vadd.f32 %v1574, %v1459
          %v1576 = vadd.f32 %v1575, %v1463
          %v1577 = vadd.f32 %v1576, %v1467
          %v1578 = vadd.f32 %v1577, %v1471
          %v1579 = vadd.f32 %v1578, %v1475
          %v1580 = vadd.f32 %v1579, %v1479
          %v1581 = vadd.f32 %v1580, %v1483
          %v1582 = vadd.f32 %v1581, %v1487
          %v1583 = vadd.f32 %v1582, %v1491
          %v1584 = vadd.f32 %v1583, %v1495
          %v1585 = vadd.f32 %v1584, %v1499
          %v1586 = vadd.f32 %v1585, %v1503
          %v1587 = vadd.f32 %v1586, %v1507
          %v1588 = vadd.f32 %v1587, %v1511
          %v1589 = vadd.f32 %v1588, %v1515
          %v1590 = vadd.f32 %v1589, %v1519
          %v1591 = vadd.f32 %v1590, %v1523
          %v1592 = vadd.f32 %v1591, %v1527
          %v1593 = vadd.f32 %v1592, %v1531
          %v1594 = vadd.f32 %v1593, %v1535
          %v1595 = vadd.f32 %v1594, %v1539
          %v1596 = vadd.f32 %v1595, %v1543
          %v1597 = vadd.f32 %v1596, %v1547
          %v1598 = vadd.f32 %v1597, %v1551
          %v1599 = vadd.f32 %v1598, %v1555
          %v1600 = vadd.f32 %v1599, %v1559
          %v1601 = vadd.f32 %v1600, %v1563
          %v1602 = vadd.f32 %v1601, %v1567
          %v1603 = vrot.slane %v1602, 4
          %v1604 = vadd.f32 %v1602, %v1603
          %v1605 = vrot.slane %v1604, 2
          %v1606 = vadd.f32 %v1604, %v1605
          %v1607 = vrot.slane %v1606, 1
          %v1608 = vadd.f32 %v1606, %v1607
          %v1609 = vadd.f32 %v1444, %v1448
          %v1610 = vadd.f32 %v1609, %v1452
          %v1611 = vadd.f32 %v1610, %v1456
          %v1612 = vadd.f32 %v1611, %v1460
          %v1613 = vadd.f32 %v1612, %v1464
          %v1614 = vadd.f32 %v1613, %v1468
          %v1615 = vadd.f32 %v1614, %v1472
          %v1616 = vadd.f32 %v1615, %v1476
          %v1617 = vadd.f32 %v1616, %v1480
          %v1618 = vadd.f32 %v1617, %v1484
          %v1619 = vadd.f32 %v1618, %v1488
          %v1620 = vadd.f32 %v1619, %v1492
          %v1621 = vadd.f32 %v1620, %v1496
          %v1622 = vadd.f32 %v1621, %v1500
          %v1623 = vadd.f32 %v1622, %v1504
          %v1624 = vadd.f32 %v1623, %v1508
          %v1625 = vadd.f32 %v1624, %v1512
          %v1626 = vadd.f32 %v1625, %v1516
          %v1627 = vadd.f32 %v1626, %v1520
          %v1628 = vadd.f32 %v1627, %v1524
          %v1629 = vadd.f32 %v1628, %v1528
          %v1630 = vadd.f32 %v1629, %v1532
          %v1631 = vadd.f32 %v1630, %v1536
          %v1632 = vadd.f32 %v1631, %v1540
          %v1633 = vadd.f32 %v1632, %v1544
          %v1634 = vadd.f32 %v1633, %v1548
          %v1635 = vadd.f32 %v1634, %v1552
          %v1636 = vadd.f32 %v1635, %v1556
          %v1637 = vadd.f32 %v1636, %v1560
          %v1638 = vadd.f32 %v1637, %v1564
          %v1639 = vadd.f32 %v1638, %v1568
          %v1640 = vrot.slane %v1639, 4
          %v1641 = vadd.f32 %v1639, %v1640
          %v1642 = vrot.slane %v1641, 2
          %v1643 = vadd.f32 %v1641, %v1642
          %v1644 = vrot.slane %v1643, 1
          %v1645 = vadd.f32 %v1643, %v1644
          %v1646 = vadd.f32 %v1445, %v1449
          %v1647 = vadd.f32 %v1646, %v1453
          %v1648 = vadd.f32 %v1647, %v1457
          %v1649 = vadd.f32 %v1648, %v1461
          %v1650 = vadd.f32 %v1649, %v1465
          %v1651 = vadd.f32 %v1650, %v1469
          %v1652 = vadd.f32 %v1651, %v1473
          %v1653 = vadd.f32 %v1652, %v1477
          %v1654 = vadd.f32 %v1653, %v1481
          %v1655 = vadd.f32 %v1654, %v1485
          %v1656 = vadd.f32 %v1655, %v1489
          %v1657 = vadd.f32 %v1656, %v1493
          %v1658 = vadd.f32 %v1657, %v1497
          %v1659 = vadd.f32 %v1658, %v1501
          %v1660 = vadd.f32 %v1659, %v1505
          %v1661 = vadd.f32 %v1660, %v1509
          %v1662 = vadd.f32 %v1661, %v1513
          %v1663 = vadd.f32 %v1662, %v1517
          %v1664 = vadd.f32 %v1663, %v1521
          %v1665 = vadd.f32 %v1664, %v1525
          %v1666 = vadd.f32 %v1665, %v1529
          %v1667 = vadd.f32 %v1666, %v1533
          %v1668 = vadd.f32 %v1667, %v1537
          %v1669 = vadd.f32 %v1668, %v1541
          %v1670 = vadd.f32 %v1669, %v1545
          %v1671 = vadd.f32 %v1670, %v1549
          %v1672 = vadd.f32 %v1671, %v1553
          %v1673 = vadd.f32 %v1672, %v1557
          %v1674 = vadd.f32 %v1673, %v1561
          %v1675 = vadd.f32 %v1674, %v1565
          %v1676 = vadd.f32 %v1675, %v1569
          %v1677 = vrot.slane %v1676, 4
          %v1678 = vadd.f32 %v1676, %v1677
          %v1679 = vrot.slane %v1678, 2
          %v1680 = vadd.f32 %v1678, %v1679
          %v1681 = vrot.slane %v1680, 1
          %v1682 = vadd.f32 %v1680, %v1681
          %v1683 = vadd.f32 %v1446, %v1450
          %v1684 = vadd.f32 %v1683, %v1454
          %v1685 = vadd.f32 %v1684, %v1458
          %v1686 = vadd.f32 %v1685, %v1462
          %v1687 = vadd.f32 %v1686, %v1466
          %v1688 = vadd.f32 %v1687, %v1470
          %v1689 = vadd.f32 %v1688, %v1474
          %v1690 = vadd.f32 %v1689, %v1478
          %v1691 = vadd.f32 %v1690, %v1482
          %v1692 = vadd.f32 %v1691, %v1486
          %v1693 = vadd.f32 %v1692, %v1490
          %v1694 = vadd.f32 %v1693, %v1494
          %v1695 = vadd.f32 %v1694, %v1498
          %v1696 = vadd.f32 %v1695, %v1502
          %v1697 = vadd.f32 %v1696, %v1506
          %v1698 = vadd.f32 %v1697, %v1510
          %v1699 = vadd.f32 %v1698, %v1514
          %v1700 = vadd.f32 %v1699, %v1518
          %v1701 = vadd.f32 %v1700, %v1522
          %v1702 = vadd.f32 %v1701, %v1526
          %v1703 = vadd.f32 %v1702, %v1530
          %v1704 = vadd.f32 %v1703, %v1534
          %v1705 = vadd.f32 %v1704, %v1538
          %v1706 = vadd.f32 %v1705, %v1542
          %v1707 = vadd.f32 %v1706, %v1546
          %v1708 = vadd.f32 %v1707, %v1550
          %v1709 = vadd.f32 %v1708, %v1554
          %v1710 = vadd.f32 %v1709, %v1558
          %v1711 = vadd.f32 %v1710, %v1562
          %v1712 = vadd.f32 %v1711, %v1566
          %v1713 = vadd.f32 %v1712, %v1570
          %v1714 = vrot.slane %v1713, 4
          %v1715 = vadd.f32 %v1713, %v1714
          %v1716 = vrot.slane %v1715, 2
          %v1717 = vadd.f32 %v1715, %v1716
          %v1718 = vrot.slane %v1717, 1
          %v1719 = vadd.f32 %v1717, %v1718
          %v1724 = vcombine.low %v1608, %v1645
          %v1725 = vcombine.low %v1682, %v1719
          %v1727 = vunpack.c.l.s4 1966171168
          %v1728 = vunpack.c.0.s8 %v1727
          %v1729 = vlaneseq
          %v1730 = vshrl.u32 %v1729, 7
          %v1731 = vsub.s32 %v1728, %v1730
          %v1732 = vrot.slane %v1724, %v1731
          %v1734 = vunpack.c.l.s4 1966171168
          %v1735 = vunpack.c.0.s8 %v1734
          %v1736 = vlaneseq
          %v1737 = vshrl.u32 %v1736, 7
          %v1738 = vsub.s32 %v1735, %v1737
          %v1739 = vrot.slane %v1725, %v1738
          %v1740 = vcombine.low %v1732, %v1739
          %v1742 = vunpack.c.l.s4 1966171168
          %v1743 = vunpack.c.0.s8 %v1742
          %v1744 = vlaneseq
          %v1745 = vshrl.u32 %v1744, 7
          %v1746 = vsub.s32 %v1743, %v1745
          %v1747 = vrot.slane %v1740, %v1746
          %v1749 = vadd.f32 %v1571, %v1747
          %v1750 = vlaneseq
          %vm1751 = vcmp.ge.s32.totalorder %v1750, 0
          %vm1752 = vcmp.lt.s32.totalorder %v1750, 512
          %vm1753 = vmand %vm1751, %vm1752
          %1754 = vst.msk [vmem:[#allocation2] sm:$0xf] %vm1753, %v1749
          %v1755 = vld [vmem:[#allocation3] sm:$0xf]
          %v1756 = vmul.f32 %v1443, %v1443
          %v1757 = vmul.f32 %v1444, %v1444
          %v1758 = vmul.f32 %v1445, %v1445
          %v1759 = vmul.f32 %v1446, %v1446
          %v1760 = vmul.f32 %v1447, %v1447
          %v1761 = vmul.f32 %v1448, %v1448
          %v1762 = vmul.f32 %v1449, %v1449
          %v1763 = vmul.f32 %v1450, %v1450
          %v1764 = vmul.f32 %v1451, %v1451
          %v1765 = vmul.f32 %v1452, %v1452
          %v1766 = vmul.f32 %v1453, %v1453
          %v1767 = vmul.f32 %v1454, %v1454
          %v1768 = vmul.f32 %v1455, %v1455
          %v1769 = vmul.f32 %v1456, %v1456
          %v1770 = vmul.f32 %v1457, %v1457
          %v1771 = vmul.f32 %v1458, %v1458
          %v1772 = vmul.f32 %v1459, %v1459
          %v1773 = vmul.f32 %v1460, %v1460
          %v1774 = vmul.f32 %v1461, %v1461
          %v1775 = vmul.f32 %v1462, %v1462
          %v1776 = vmul.f32 %v1463, %v1463
          %v1777 = vmul.f32 %v1464, %v1464
          %v1778 = vmul.f32 %v1465, %v1465
          %v1779 = vmul.f32 %v1466, %v1466
          %v1780 = vmul.f32 %v1467, %v1467
          %v1781 = vmul.f32 %v1468, %v1468
          %v1782 = vmul.f32 %v1469, %v1469
          %v1783 = vmul.f32 %v1470, %v1470
          %v1784 = vmul.f32 %v1471, %v1471
          %v1785 = vmul.f32 %v1472, %v1472
          %v1786 = vmul.f32 %v1473, %v1473
          %v1787 = vmul.f32 %v1474, %v1474
          %v1788 = vmul.f32 %v1475, %v1475
          %v1789 = vmul.f32 %v1476, %v1476
          %v1790 = vmul.f32 %v1477, %v1477
          %v1791 = vmul.f32 %v1478, %v1478
          %v1792 = vmul.f32 %v1479, %v1479
          %v1793 = vmul.f32 %v1480, %v1480
          %v1794 = vmul.f32 %v1481, %v1481
          %v1795 = vmul.f32 %v1482, %v1482
          %v1796 = vmul.f32 %v1483, %v1483
          %v1797 = vmul.f32 %v1484, %v1484
          %v1798 = vmul.f32 %v1485, %v1485
          %v1799 = vmul.f32 %v1486, %v1486
          %v1800 = vmul.f32 %v1487, %v1487
          %v1801 = vmul.f32 %v1488, %v1488
          %v1802 = vmul.f32 %v1489, %v1489
          %v1803 = vmul.f32 %v1490, %v1490
          %v1804 = vmul.f32 %v1491, %v1491
          %v1805 = vmul.f32 %v1492, %v1492
          %v1806 = vmul.f32 %v1493, %v1493
          %v1807 = vmul.f32 %v1494, %v1494
          %v1808 = vmul.f32 %v1495, %v1495
          %v1809 = vmul.f32 %v1496, %v1496
          %v1810 = vmul.f32 %v1497, %v1497
          %v1811 = vmul.f32 %v1498, %v1498
          %v1812 = vmul.f32 %v1499, %v1499
          %v1813 = vmul.f32 %v1500, %v1500
          %v1814 = vmul.f32 %v1501, %v1501
          %v1815 = vmul.f32 %v1502, %v1502
          %v1816 = vmul.f32 %v1503, %v1503
          %v1817 = vmul.f32 %v1504, %v1504
          %v1818 = vmul.f32 %v1505, %v1505
          %v1819 = vmul.f32 %v1506, %v1506
          %v1820 = vmul.f32 %v1507, %v1507
          %v1821 = vmul.f32 %v1508, %v1508
          %v1822 = vmul.f32 %v1509, %v1509
          %v1823 = vmul.f32 %v1510, %v1510
          %v1824 = vmul.f32 %v1511, %v1511
          %v1825 = vmul.f32 %v1512, %v1512
          %v1826 = vmul.f32 %v1513, %v1513
          %v1827 = vmul.f32 %v1514, %v1514
          %v1828 = vmul.f32 %v1515, %v1515
          %v1829 = vmul.f32 %v1516, %v1516
          %v1830 = vmul.f32 %v1517, %v1517
          %v1831 = vmul.f32 %v1518, %v1518
          %v1832 = vmul.f32 %v1519, %v1519
          %v1833 = vmul.f32 %v1520, %v1520
          %v1834 = vmul.f32 %v1521, %v1521
          %v1835 = vmul.f32 %v1522, %v1522
          %v1836 = vmul.f32 %v1523, %v1523
          %v1837 = vmul.f32 %v1524, %v1524
          %v1838 = vmul.f32 %v1525, %v1525
          %v1839 = vmul.f32 %v1526, %v1526
          %v1840 = vmul.f32 %v1527, %v1527
          %v1841 = vmul.f32 %v1528, %v1528
          %v1842 = vmul.f32 %v1529, %v1529
          %v1843 = vmul.f32 %v1530, %v1530
          %v1844 = vmul.f32 %v1531, %v1531
          %v1845 = vmul.f32 %v1532, %v1532
          %v1846 = vmul.f32 %v1533, %v1533
          %v1847 = vmul.f32 %v1534, %v1534
          %v1848 = vmul.f32 %v1535, %v1535
          %v1849 = vmul.f32 %v1536, %v1536
          %v1850 = vmul.f32 %v1537, %v1537
          %v1851 = vmul.f32 %v1538, %v1538
          %v1852 = vmul.f32 %v1539, %v1539
          %v1853 = vmul.f32 %v1540, %v1540
          %v1854 = vmul.f32 %v1541, %v1541
          %v1855 = vmul.f32 %v1542, %v1542
          %v1856 = vmul.f32 %v1543, %v1543
          %v1857 = vmul.f32 %v1544, %v1544
          %v1858 = vmul.f32 %v1545, %v1545
          %v1859 = vmul.f32 %v1546, %v1546
          %v1860 = vmul.f32 %v1547, %v1547
          %v1861 = vmul.f32 %v1548, %v1548
          %v1862 = vmul.f32 %v1549, %v1549
          %v1863 = vmul.f32 %v1550, %v1550
          %v1864 = vmul.f32 %v1551, %v1551
          %v1865 = vmul.f32 %v1552, %v1552
          %v1866 = vmul.f32 %v1553, %v1553
          %v1867 = vmul.f32 %v1554, %v1554
          %v1868 = vmul.f32 %v1555, %v1555
          %v1869 = vmul.f32 %v1556, %v1556
          %v1870 = vmul.f32 %v1557, %v1557
          %v1871 = vmul.f32 %v1558, %v1558
          %v1872 = vmul.f32 %v1559, %v1559
          %v1873 = vmul.f32 %v1560, %v1560
          %v1874 = vmul.f32 %v1561, %v1561
          %v1875 = vmul.f32 %v1562, %v1562
          %v1876 = vmul.f32 %v1563, %v1563
          %v1877 = vmul.f32 %v1564, %v1564
          %v1878 = vmul.f32 %v1565, %v1565
          %v1879 = vmul.f32 %v1566, %v1566
          %v1880 = vmul.f32 %v1567, %v1567
          %v1881 = vmul.f32 %v1568, %v1568
          %v1882 = vmul.f32 %v1569, %v1569
          %v1883 = vmul.f32 %v1570, %v1570
          %v1884 = vadd.f32 %v1756, %v1760
          %v1885 = vadd.f32 %v1884, %v1764
          %v1886 = vadd.f32 %v1885, %v1768
          %v1887 = vadd.f32 %v1886, %v1772
          %v1888 = vadd.f32 %v1887, %v1776
          %v1889 = vadd.f32 %v1888, %v1780
          %v1890 = vadd.f32 %v1889, %v1784
          %v1891 = vadd.f32 %v1890, %v1788
          %v1892 = vadd.f32 %v1891, %v1792
          %v1893 = vadd.f32 %v1892, %v1796
          %v1894 = vadd.f32 %v1893, %v1800
          %v1895 = vadd.f32 %v1894, %v1804
          %v1896 = vadd.f32 %v1895, %v1808
          %v1897 = vadd.f32 %v1896, %v1812
          %v1898 = vadd.f32 %v1897, %v1816
          %v1899 = vadd.f32 %v1898, %v1820
          %v1900 = vadd.f32 %v1899, %v1824
          %v1901 = vadd.f32 %v1900, %v1828
          %v1902 = vadd.f32 %v1901, %v1832
          %v1903 = vadd.f32 %v1902, %v1836
          %v1904 = vadd.f32 %v1903, %v1840
          %v1905 = vadd.f32 %v1904, %v1844
          %v1906 = vadd.f32 %v1905, %v1848
          %v1907 = vadd.f32 %v1906, %v1852
          %v1908 = vadd.f32 %v1907, %v1856
          %v1909 = vadd.f32 %v1908, %v1860
          %v1910 = vadd.f32 %v1909, %v1864
          %v1911 = vadd.f32 %v1910, %v1868
          %v1912 = vadd.f32 %v1911, %v1872
          %v1913 = vadd.f32 %v1912, %v1876
          %v1914 = vadd.f32 %v1913, %v1880
          %v1915 = vrot.slane %v1914, 4
          %v1916 = vadd.f32 %v1914, %v1915
          %v1917 = vrot.slane %v1916, 2
          %v1918 = vadd.f32 %v1916, %v1917
          %v1919 = vrot.slane %v1918, 1
          %v1920 = vadd.f32 %v1918, %v1919
          %v1921 = vadd.f32 %v1757, %v1761
          %v1922 = vadd.f32 %v1921, %v1765
          %v1923 = vadd.f32 %v1922, %v1769
          %v1924 = vadd.f32 %v1923, %v1773
          %v1925 = vadd.f32 %v1924, %v1777
          %v1926 = vadd.f32 %v1925, %v1781
          %v1927 = vadd.f32 %v1926, %v1785
          %v1928 = vadd.f32 %v1927, %v1789
          %v1929 = vadd.f32 %v1928, %v1793
          %v1930 = vadd.f32 %v1929, %v1797
          %v1931 = vadd.f32 %v1930, %v1801
          %v1932 = vadd.f32 %v1931, %v1805
          %v1933 = vadd.f32 %v1932, %v1809
          %v1934 = vadd.f32 %v1933, %v1813
          %v1935 = vadd.f32 %v1934, %v1817
          %v1936 = vadd.f32 %v1935, %v1821
          %v1937 = vadd.f32 %v1936, %v1825
          %v1938 = vadd.f32 %v1937, %v1829
          %v1939 = vadd.f32 %v1938, %v1833
          %v1940 = vadd.f32 %v1939, %v1837
          %v1941 = vadd.f32 %v1940, %v1841
          %v1942 = vadd.f32 %v1941, %v1845
          %v1943 = vadd.f32 %v1942, %v1849
          %v1944 = vadd.f32 %v1943, %v1853
          %v1945 = vadd.f32 %v1944, %v1857
          %v1946 = vadd.f32 %v1945, %v1861
          %v1947 = vadd.f32 %v1946, %v1865
          %v1948 = vadd.f32 %v1947, %v1869
          %v1949 = vadd.f32 %v1948, %v1873
          %v1950 = vadd.f32 %v1949, %v1877
          %v1951 = vadd.f32 %v1950, %v1881
          %v1952 = vrot.slane %v1951, 4
          %v1953 = vadd.f32 %v1951, %v1952
          %v1954 = vrot.slane %v1953, 2
          %v1955 = vadd.f32 %v1953, %v1954
          %v1956 = vrot.slane %v1955, 1
          %v1957 = vadd.f32 %v1955, %v1956
          %v1958 = vadd.f32 %v1758, %v1762
          %v1959 = vadd.f32 %v1958, %v1766
          %v1960 = vadd.f32 %v1959, %v1770
          %v1961 = vadd.f32 %v1960, %v1774
          %v1962 = vadd.f32 %v1961, %v1778
          %v1963 = vadd.f32 %v1962, %v1782
          %v1964 = vadd.f32 %v1963, %v1786
          %v1965 = vadd.f32 %v1964, %v1790
          %v1966 = vadd.f32 %v1965, %v1794
          %v1967 = vadd.f32 %v1966, %v1798
          %v1968 = vadd.f32 %v1967, %v1802
          %v1969 = vadd.f32 %v1968, %v1806
          %v1970 = vadd.f32 %v1969, %v1810
          %v1971 = vadd.f32 %v1970, %v1814
          %v1972 = vadd.f32 %v1971, %v1818
          %v1973 = vadd.f32 %v1972, %v1822
          %v1974 = vadd.f32 %v1973, %v1826
          %v1975 = vadd.f32 %v1974, %v1830
          %v1976 = vadd.f32 %v1975, %v1834
          %v1977 = vadd.f32 %v1976, %v1838
          %v1978 = vadd.f32 %v1977, %v1842
          %v1979 = vadd.f32 %v1978, %v1846
          %v1980 = vadd.f32 %v1979, %v1850
          %v1981 = vadd.f32 %v1980, %v1854
          %v1982 = vadd.f32 %v1981, %v1858
          %v1983 = vadd.f32 %v1982, %v1862
          %v1984 = vadd.f32 %v1983, %v1866
          %v1985 = vadd.f32 %v1984, %v1870
          %v1986 = vadd.f32 %v1985, %v1874
          %v1987 = vadd.f32 %v1986, %v1878
          %v1988 = vadd.f32 %v1987, %v1882
          %v1989 = vrot.slane %v1988, 4
          %v1990 = vadd.f32 %v1988, %v1989
          %v1991 = vrot.slane %v1990, 2
          %v1992 = vadd.f32 %v1990, %v1991
          %v1993 = vrot.slane %v1992, 1
          %v1994 = vadd.f32 %v1992, %v1993
          %v1995 = vadd.f32 %v1759, %v1763
          %v1996 = vadd.f32 %v1995, %v1767
          %v1997 = vadd.f32 %v1996, %v1771
          %v1998 = vadd.f32 %v1997, %v1775
          %v1999 = vadd.f32 %v1998, %v1779
          %v2000 = vadd.f32 %v1999, %v1783
          %v2001 = vadd.f32 %v2000, %v1787
          %v2002 = vadd.f32 %v2001, %v1791
          %v2003 = vadd.f32 %v2002, %v1795
          %v2004 = vadd.f32 %v2003, %v1799
          %v2005 = vadd.f32 %v2004, %v1803
          %v2006 = vadd.f32 %v2005, %v1807
          %v2007 = vadd.f32 %v2006, %v1811
          %v2008 = vadd.f32 %v2007, %v1815
          %v2009 = vadd.f32 %v2008, %v1819
          %v2010 = vadd.f32 %v2009, %v1823
          %v2011 = vadd.f32 %v2010, %v1827
          %v2012 = vadd.f32 %v2011, %v1831
          %v2013 = vadd.f32 %v2012, %v1835
          %v2014 = vadd.f32 %v2013, %v1839
          %v2015 = vadd.f32 %v2014, %v1843
          %v2016 = vadd.f32 %v2015, %v1847
          %v2017 = vadd.f32 %v2016, %v1851
          %v2018 = vadd.f32 %v2017, %v1855
          %v2019 = vadd.f32 %v2018, %v1859
          %v2020 = vadd.f32 %v2019, %v1863
          %v2021 = vadd.f32 %v2020, %v1867
          %v2022 = vadd.f32 %v2021, %v1871
          %v2023 = vadd.f32 %v2022, %v1875
          %v2024 = vadd.f32 %v2023, %v1879
          %v2025 = vadd.f32 %v2024, %v1883
          %v2026 = vrot.slane %v2025, 4
          %v2027 = vadd.f32 %v2025, %v2026
          %v2028 = vrot.slane %v2027, 2
          %v2029 = vadd.f32 %v2027, %v2028
          %v2030 = vrot.slane %v2029, 1
          %v2031 = vadd.f32 %v2029, %v2030
          %v2036 = vcombine.low %v1920, %v1957
          %v2037 = vcombine.low %v1994, %v2031
          %v2039 = vunpack.c.l.s4 1966171168
          %v2040 = vunpack.c.0.s8 %v2039
          %v2041 = vlaneseq
          %v2042 = vshrl.u32 %v2041, 7
          %v2043 = vsub.s32 %v2040, %v2042
          %v2044 = vrot.slane %v2036, %v2043
          %v2046 = vunpack.c.l.s4 1966171168
          %v2047 = vunpack.c.0.s8 %v2046
          %v2048 = vlaneseq
          %v2049 = vshrl.u32 %v2048, 7
          %v2050 = vsub.s32 %v2047, %v2049
          %v2051 = vrot.slane %v2037, %v2050
          %v2052 = vcombine.low %v2044, %v2051
          %v2054 = vunpack.c.l.s4 1966171168
          %v2055 = vunpack.c.0.s8 %v2054
          %v2056 = vlaneseq
          %v2057 = vshrl.u32 %v2056, 7
          %v2058 = vsub.s32 %v2055, %v2057
          %v2059 = vrot.slane %v2052, %v2058
          %v2061 = vadd.f32 %v1755, %v2059
          %2062 = vst.msk [vmem:[#allocation3] sm:$0xf] %vm1753, %v2061
        $region48: #{tpu_custom_call.1} parent=31 // pred_fallthru
          _
        %p2063 = scmp.eq.s32.totalorder %s25, 1
        // Predicated region
        $region53: #{tpu_custom_call.1} parent=31 // pred_check
          %p2064 = pneg %p2063
        $region54: #{tpu_custom_call.1} parent=31 // pred_check_branch
          %2066 = sbr.rel (%p2064) target = $region56
        $region55: #{tpu_custom_call.1} parent=31 // pred_region
          %p2067 = scmp.eq.s32.totalorder %s26, 0
          // Predicated region
          $region57: #{tpu_custom_call.1} parent=55 // pred_check
            %p2068 = pneg %p2067
          $region58: #{tpu_custom_call.1} parent=55 // pred_check_branch
            %2070 = sbr.rel (%p2068) target = $region60
          $region59: #{tpu_custom_call.1} parent=55 // pred_region
            %v2071 = vld [vmem:[#allocation2] sm:$0xf]
            %v2072 = vmul.f32 %v2071, 0.0026041667
            %v2073 = vld [vmem:[#allocation3] sm:$0xf]
            %v2074 = vmul.f32 %v2073, 0.0026041667
            %v2075 = vmul.f32 %v2072, %v2072
            %v2076 = vsub.f32 %v2074, %v2075
            %v2077 = vlaneseq
            %vm2078 = vcmp.ge.s32.totalorder %v2077, 0
            %vm2079 = vcmp.lt.s32.totalorder %v2077, 512
            %vm2080 = vmand %vm2078, %vm2079
            %2081 = vst.msk [vmem:[#allocation4] sm:$0xf] %vm2080, %v2072
            %v2082 = vadd.f32 %v2076, 1e-05
            %v2083 = vrsqrt.pop %v2082
            %2084 = vst.msk [vmem:[#allocation5] sm:$0xf] %vm2080, %v2083
          $region60: #{tpu_custom_call.1} parent=55 // pred_fallthru
            _
          %v2085 = vld [vmem:[#allocation4] sm:$0xf]
          %v2087 = vlaneseq
          %v2088 = vshrl.u32 %v2087, 7
          %v2089 = vsub.s32 0, %v2088
          %v2090 = vrot.slane %v2085, %v2089
          %v2091 = vlaneseq
          %v2092 = vshrl.u32 %v2091, 7
          %v2093 = vsub.s32 1, %v2092
          %v2094 = vrot.slane %v2085, %v2093
          %v2095 = vlaneseq
          %v2096 = vshrl.u32 %v2095, 7
          %v2097 = vsub.s32 2, %v2096
          %v2098 = vrot.slane %v2085, %v2097
          %v2099 = vlaneseq
          %v2100 = vshrl.u32 %v2099, 7
          %v2101 = vsub.s32 3, %v2100
          %v2102 = vrot.slane %v2085, %v2101
          %v2107 = vsub.f32 %v1138, %v2090
          %v2108 = vsub.f32 %v1139, %v2094
          %v2109 = vsub.f32 %v1140, %v2098
          %v2110 = vsub.f32 %v1141, %v2102
          %v2111 = vsub.f32 %v1142, %v2090
          %v2112 = vsub.f32 %v1143, %v2094
          %v2113 = vsub.f32 %v1144, %v2098
          %v2114 = vsub.f32 %v1145, %v2102
          %v2115 = vsub.f32 %v1146, %v2090
          %v2116 = vsub.f32 %v1147, %v2094
          %v2117 = vsub.f32 %v1148, %v2098
          %v2118 = vsub.f32 %v1149, %v2102
          %v2119 = vsub.f32 %v1150, %v2090
          %v2120 = vsub.f32 %v1151, %v2094
          %v2121 = vsub.f32 %v1152, %v2098
          %v2122 = vsub.f32 %v1153, %v2102
          %v2123 = vsub.f32 %v1154, %v2090
          %v2124 = vsub.f32 %v1155, %v2094
          %v2125 = vsub.f32 %v1156, %v2098
          %v2126 = vsub.f32 %v1157, %v2102
          %v2127 = vsub.f32 %v1158, %v2090
          %v2128 = vsub.f32 %v1159, %v2094
          %v2129 = vsub.f32 %v1160, %v2098
          %v2130 = vsub.f32 %v1161, %v2102
          %v2131 = vsub.f32 %v1162, %v2090
          %v2132 = vsub.f32 %v1163, %v2094
          %v2133 = vsub.f32 %v1164, %v2098
          %v2134 = vsub.f32 %v1165, %v2102
          %v2135 = vsub.f32 %v1166, %v2090
          %v2136 = vsub.f32 %v1167, %v2094
          %v2137 = vsub.f32 %v1168, %v2098
          %v2138 = vsub.f32 %v1169, %v2102
          %v2139 = vsub.f32 %v1170, %v2090
          %v2140 = vsub.f32 %v1171, %v2094
          %v2141 = vsub.f32 %v1172, %v2098
          %v2142 = vsub.f32 %v1173, %v2102
          %v2143 = vsub.f32 %v1174, %v2090
          %v2144 = vsub.f32 %v1175, %v2094
          %v2145 = vsub.f32 %v1176, %v2098
          %v2146 = vsub.f32 %v1177, %v2102
          %v2147 = vsub.f32 %v1178, %v2090
          %v2148 = vsub.f32 %v1179, %v2094
          %v2149 = vsub.f32 %v1180, %v2098
          %v2150 = vsub.f32 %v1181, %v2102
          %v2151 = vsub.f32 %v1182, %v2090
          %v2152 = vsub.f32 %v1183, %v2094
          %v2153 = vsub.f32 %v1184, %v2098
          %v2154 = vsub.f32 %v1185, %v2102
          %v2155 = vsub.f32 %v1186, %v2090
          %v2156 = vsub.f32 %v1187, %v2094
          %v2157 = vsub.f32 %v1188, %v2098
          %v2158 = vsub.f32 %v1189, %v2102
          %v2159 = vsub.f32 %v1190, %v2090
          %v2160 = vsub.f32 %v1191, %v2094
          %v2161 = vsub.f32 %v1192, %v2098
          %v2162 = vsub.f32 %v1193, %v2102
          %v2163 = vsub.f32 %v1194, %v2090
          %v2164 = vsub.f32 %v1195, %v2094
          %v2165 = vsub.f32 %v1196, %v2098
          %v2166 = vsub.f32 %v1197, %v2102
          %v2167 = vsub.f32 %v1198, %v2090
          %v2168 = vsub.f32 %v1199, %v2094
          %v2169 = vsub.f32 %v1200, %v2098
          %v2170 = vsub.f32 %v1201, %v2102
          %v2171 = vsub.f32 %v1202, %v2090
          %v2172 = vsub.f32 %v1203, %v2094
          %v2173 = vsub.f32 %v1204, %v2098
          %v2174 = vsub.f32 %v1205, %v2102
          %v2175 = vsub.f32 %v1206, %v2090
          %v2176 = vsub.f32 %v1207, %v2094
          %v2177 = vsub.f32 %v1208, %v2098
          %v2178 = vsub.f32 %v1209, %v2102
          %v2179 = vsub.f32 %v1210, %v2090
          %v2180 = vsub.f32 %v1211, %v2094
          %v2181 = vsub.f32 %v1212, %v2098
          %v2182 = vsub.f32 %v1213, %v2102
          %v2183 = vsub.f32 %v1214, %v2090
          %v2184 = vsub.f32 %v1215, %v2094
          %v2185 = vsub.f32 %v1216, %v2098
          %v2186 = vsub.f32 %v1217, %v2102
          %v2187 = vsub.f32 %v1218, %v2090
          %v2188 = vsub.f32 %v1219, %v2094
          %v2189 = vsub.f32 %v1220, %v2098
          %v2190 = vsub.f32 %v1221, %v2102
          %v2191 = vsub.f32 %v1222, %v2090
          %v2192 = vsub.f32 %v1223, %v2094
          %v2193 = vsub.f32 %v1224, %v2098
          %v2194 = vsub.f32 %v1225, %v2102
          %v2195 = vsub.f32 %v1226, %v2090
          %v2196 = vsub.f32 %v1227, %v2094
          %v2197 = vsub.f32 %v1228, %v2098
          %v2198 = vsub.f32 %v1229, %v2102
          %v2199 = vsub.f32 %v1230, %v2090
          %v2200 = vsub.f32 %v1231, %v2094
          %v2201 = vsub.f32 %v1232, %v2098
          %v2202 = vsub.f32 %v1233, %v2102
          %v2203 = vsub.f32 %v1234, %v2090
          %v2204 = vsub.f32 %v1235, %v2094
          %v2205 = vsub.f32 %v1236, %v2098
          %v2206 = vsub.f32 %v1237, %v2102
          %v2207 = vsub.f32 %v1238, %v2090
          %v2208 = vsub.f32 %v1239, %v2094
          %v2209 = vsub.f32 %v1240, %v2098
          %v2210 = vsub.f32 %v1241, %v2102
          %v2211 = vsub.f32 %v1242, %v2090
          %v2212 = vsub.f32 %v1243, %v2094
          %v2213 = vsub.f32 %v1244, %v2098
          %v2214 = vsub.f32 %v1245, %v2102
          %v2215 = vsub.f32 %v1246, %v2090
          %v2216 = vsub.f32 %v1247, %v2094
          %v2217 = vsub.f32 %v1248, %v2098
          %v2218 = vsub.f32 %v1249, %v2102
          %v2219 = vsub.f32 %v1250, %v2090
          %v2220 = vsub.f32 %v1251, %v2094
          %v2221 = vsub.f32 %v1252, %v2098
          %v2222 = vsub.f32 %v1253, %v2102
          %v2223 = vsub.f32 %v1254, %v2090
          %v2224 = vsub.f32 %v1255, %v2094
          %v2225 = vsub.f32 %v1256, %v2098
          %v2226 = vsub.f32 %v1257, %v2102
          %v2227 = vsub.f32 %v1258, %v2090
          %v2228 = vsub.f32 %v1259, %v2094
          %v2229 = vsub.f32 %v1260, %v2098
          %v2230 = vsub.f32 %v1261, %v2102
          %v2231 = vsub.f32 %v1262, %v2090
          %v2232 = vsub.f32 %v1263, %v2094
          %v2233 = vsub.f32 %v1264, %v2098
          %v2234 = vsub.f32 %v1265, %v2102
          %v2235 = vld [vmem:[#allocation5] sm:$0xf]
          %v2237 = vlaneseq
          %v2238 = vshrl.u32 %v2237, 7
          %v2239 = vsub.s32 0, %v2238
          %v2240 = vrot.slane %v2235, %v2239
          %v2241 = vlaneseq
          %v2242 = vshrl.u32 %v2241, 7
          %v2243 = vsub.s32 1, %v2242
          %v2244 = vrot.slane %v2235, %v2243
          %v2245 = vlaneseq
          %v2246 = vshrl.u32 %v2245, 7
          %v2247 = vsub.s32 2, %v2246
          %v2248 = vrot.slane %v2235, %v2247
          %v2249 = vlaneseq
          %v2250 = vshrl.u32 %v2249, 7
          %v2251 = vsub.s32 3, %v2250
          %v2252 = vrot.slane %v2235, %v2251
          %v2257 = vmul.f32 %v2107, %v2240
          %v2258 = vmul.f32 %v2108, %v2244
          %v2259 = vmul.f32 %v2109, %v2248
          %v2260 = vmul.f32 %v2110, %v2252
          %v2261 = vmul.f32 %v2111, %v2240
          %v2262 = vmul.f32 %v2112, %v2244
          %v2263 = vmul.f32 %v2113, %v2248
          %v2264 = vmul.f32 %v2114, %v2252
          %v2265 = vmul.f32 %v2115, %v2240
          %v2266 = vmul.f32 %v2116, %v2244
          %v2267 = vmul.f32 %v2117, %v2248
          %v2268 = vmul.f32 %v2118, %v2252
          %v2269 = vmul.f32 %v2119, %v2240
          %v2270 = vmul.f32 %v2120, %v2244
          %v2271 = vmul.f32 %v2121, %v2248
          %v2272 = vmul.f32 %v2122, %v2252
          %v2273 = vmul.f32 %v2123, %v2240
          %v2274 = vmul.f32 %v2124, %v2244
          %v2275 = vmul.f32 %v2125, %v2248
          %v2276 = vmul.f32 %v2126, %v2252
          %v2277 = vmul.f32 %v2127, %v2240
          %v2278 = vmul.f32 %v2128, %v2244
          %v2279 = vmul.f32 %v2129, %v2248
          %v2280 = vmul.f32 %v2130, %v2252
          %v2281 = vmul.f32 %v2131, %v2240
          %v2282 = vmul.f32 %v2132, %v2244
          %v2283 = vmul.f32 %v2133, %v2248
          %v2284 = vmul.f32 %v2134, %v2252
          %v2285 = vmul.f32 %v2135, %v2240
          %v2286 = vmul.f32 %v2136, %v2244
          %v2287 = vmul.f32 %v2137, %v2248
          %v2288 = vmul.f32 %v2138, %v2252
          %v2289 = vmul.f32 %v2139, %v2240
          %v2290 = vmul.f32 %v2140, %v2244
          %v2291 = vmul.f32 %v2141, %v2248
          %v2292 = vmul.f32 %v2142, %v2252
          %v2293 = vmul.f32 %v2143, %v2240
          %v2294 = vmul.f32 %v2144, %v2244
          %v2295 = vmul.f32 %v2145, %v2248
          %v2296 = vmul.f32 %v2146, %v2252
          %v2297 = vmul.f32 %v2147, %v2240
          %v2298 = vmul.f32 %v2148, %v2244
          %v2299 = vmul.f32 %v2149, %v2248
          %v2300 = vmul.f32 %v2150, %v2252
          %v2301 = vmul.f32 %v2151, %v2240
          %v2302 = vmul.f32 %v2152, %v2244
          %v2303 = vmul.f32 %v2153, %v2248
          %v2304 = vmul.f32 %v2154, %v2252
          %v2305 = vmul.f32 %v2155, %v2240
          %v2306 = vmul.f32 %v2156, %v2244
          %v2307 = vmul.f32 %v2157, %v2248
          %v2308 = vmul.f32 %v2158, %v2252
          %v2309 = vmul.f32 %v2159, %v2240
          %v2310 = vmul.f32 %v2160, %v2244
          %v2311 = vmul.f32 %v2161, %v2248
          %v2312 = vmul.f32 %v2162, %v2252
          %v2313 = vmul.f32 %v2163, %v2240
          %v2314 = vmul.f32 %v2164, %v2244
          %v2315 = vmul.f32 %v2165, %v2248
          %v2316 = vmul.f32 %v2166, %v2252
          %v2317 = vmul.f32 %v2167, %v2240
          %v2318 = vmul.f32 %v2168, %v2244
          %v2319 = vmul.f32 %v2169, %v2248
          %v2320 = vmul.f32 %v2170, %v2252
          %v2321 = vmul.f32 %v2171, %v2240
          %v2322 = vmul.f32 %v2172, %v2244
          %v2323 = vmul.f32 %v2173, %v2248
          %v2324 = vmul.f32 %v2174, %v2252
          %v2325 = vmul.f32 %v2175, %v2240
          %v2326 = vmul.f32 %v2176, %v2244
          %v2327 = vmul.f32 %v2177, %v2248
          %v2328 = vmul.f32 %v2178, %v2252
          %v2329 = vmul.f32 %v2179, %v2240
          %v2330 = vmul.f32 %v2180, %v2244
          %v2331 = vmul.f32 %v2181, %v2248
          %v2332 = vmul.f32 %v2182, %v2252
          %v2333 = vmul.f32 %v2183, %v2240
          %v2334 = vmul.f32 %v2184, %v2244
          %v2335 = vmul.f32 %v2185, %v2248
          %v2336 = vmul.f32 %v2186, %v2252
          %v2337 = vmul.f32 %v2187, %v2240
          %v2338 = vmul.f32 %v2188, %v2244
          %v2339 = vmul.f32 %v2189, %v2248
          %v2340 = vmul.f32 %v2190, %v2252
          %v2341 = vmul.f32 %v2191, %v2240
          %v2342 = vmul.f32 %v2192, %v2244
          %v2343 = vmul.f32 %v2193, %v2248
          %v2344 = vmul.f32 %v2194, %v2252
          %v2345 = vmul.f32 %v2195, %v2240
          %v2346 = vmul.f32 %v2196, %v2244
          %v2347 = vmul.f32 %v2197, %v2248
          %v2348 = vmul.f32 %v2198, %v2252
          %v2349 = vmul.f32 %v2199, %v2240
          %v2350 = vmul.f32 %v2200, %v2244
          %v2351 = vmul.f32 %v2201, %v2248
          %v2352 = vmul.f32 %v2202, %v2252
          %v2353 = vmul.f32 %v2203, %v2240
          %v2354 = vmul.f32 %v2204, %v2244
          %v2355 = vmul.f32 %v2205, %v2248
          %v2356 = vmul.f32 %v2206, %v2252
          %v2357 = vmul.f32 %v2207, %v2240
          %v2358 = vmul.f32 %v2208, %v2244
          %v2359 = vmul.f32 %v2209, %v2248
          %v2360 = vmul.f32 %v2210, %v2252
          %v2361 = vmul.f32 %v2211, %v2240
          %v2362 = vmul.f32 %v2212, %v2244
          %v2363 = vmul.f32 %v2213, %v2248
          %v2364 = vmul.f32 %v2214, %v2252
          %v2365 = vmul.f32 %v2215, %v2240
          %v2366 = vmul.f32 %v2216, %v2244
          %v2367 = vmul.f32 %v2217, %v2248
          %v2368 = vmul.f32 %v2218, %v2252
          %v2369 = vmul.f32 %v2219, %v2240
          %v2370 = vmul.f32 %v2220, %v2244
          %v2371 = vmul.f32 %v2221, %v2248
          %v2372 = vmul.f32 %v2222, %v2252
          %v2373 = vmul.f32 %v2223, %v2240
          %v2374 = vmul.f32 %v2224, %v2244
          %v2375 = vmul.f32 %v2225, %v2248
          %v2376 = vmul.f32 %v2226, %v2252
          %v2377 = vmul.f32 %v2227, %v2240
          %v2378 = vmul.f32 %v2228, %v2244
          %v2379 = vmul.f32 %v2229, %v2248
          %v2380 = vmul.f32 %v2230, %v2252
          %v2381 = vmul.f32 %v2231, %v2240
          %v2382 = vmul.f32 %v2232, %v2244
          %v2383 = vmul.f32 %v2233, %v2248
          %v2384 = vmul.f32 %v2234, %v2252
          %v2385 = vld [vmem:[#allocation9 + $0x100] sm:$0xff]
          %v2386 = vld [vmem:[#allocation9 + $0x108] sm:$0xf]
          %v2387 = vld [vmem:[#allocation9 + $0x110] sm:$0xff]
          %v2388 = vld [vmem:[#allocation9 + $0x118] sm:$0xf]
          %v2389 = vld [vmem:[#allocation9 + $0x120] sm:$0xff]
          %v2390 = vld [vmem:[#allocation9 + $0x128] sm:$0xf]
          %v2391 = vld [vmem:[#allocation9 + $0x130] sm:$0xff]
          %v2392 = vld [vmem:[#allocation9 + $0x138] sm:$0xf]
          %v2393 = vld [vmem:[#allocation9 + $0x140] sm:$0xff]
          %v2394 = vld [vmem:[#allocation9 + $0x148] sm:$0xf]
          %v2395 = vld [vmem:[#allocation9 + $0x150] sm:$0xff]
          %v2396 = vld [vmem:[#allocation9 + $0x158] sm:$0xf]
          %v2397 = vld [vmem:[#allocation9 + $0x160] sm:$0xff]
          %v2398 = vld [vmem:[#allocation9 + $0x168] sm:$0xf]
          %v2399 = vld [vmem:[#allocation9 + $0x170] sm:$0xff]
          %v2400 = vld [vmem:[#allocation9 + $0x178] sm:$0xf]
          %v2401 = vld [vmem:[#allocation9 + $0x180] sm:$0xff]
          %v2402 = vld [vmem:[#allocation9 + $0x188] sm:$0xf]
          %v2403 = vld [vmem:[#allocation9 + $0x190] sm:$0xff]
          %v2404 = vld [vmem:[#allocation9 + $0x198] sm:$0xf]
          %v2405 = vld [vmem:[#allocation9 + $0x1a0] sm:$0xff]
          %v2406 = vld [vmem:[#allocation9 + $0x1a8] sm:$0xf]
          %v2407 = vld [vmem:[#allocation9 + $0x1b0] sm:$0xff]
          %v2408 = vld [vmem:[#allocation9 + $0x1b8] sm:$0xf]
          %v2409 = vld [vmem:[#allocation9 + $0x1c0] sm:$0xff]
          %v2410 = vld [vmem:[#allocation9 + $0x1c8] sm:$0xf]
          %v2411 = vld [vmem:[#allocation9 + $0x1d0] sm:$0xff]
          %v2412 = vld [vmem:[#allocation9 + $0x1d8] sm:$0xf]
          %v2413 = vld [vmem:[#allocation9 + $0x1e0] sm:$0xff]
          %v2414 = vld [vmem:[#allocation9 + $0x1e8] sm:$0xf]
          %v2415 = vld [vmem:[#allocation9 + $0x1f0] sm:$0xff]
          %v2416 = vld [vmem:[#allocation9 + $0x1f8] sm:$0xf]
          %v2417 = vld [vmem:[#allocation9 + $0x200] sm:$0xff]
          %v2418 = vld [vmem:[#allocation9 + $0x208] sm:$0xf]
          %v2419 = vld [vmem:[#allocation9 + $0x210] sm:$0xff]
          %v2420 = vld [vmem:[#allocation9 + $0x218] sm:$0xf]
          %v2421 = vld [vmem:[#allocation9 + $0x220] sm:$0xff]
          %v2422 = vld [vmem:[#allocation9 + $0x228] sm:$0xf]
          %v2423 = vld [vmem:[#allocation9 + $0x230] sm:$0xff]
          %v2424 = vld [vmem:[#allocation9 + $0x238] sm:$0xf]
          %v2425 = vld [vmem:[#allocation9 + $0x240] sm:$0xff]
          %v2426 = vld [vmem:[#allocation9 + $0x248] sm:$0xf]
          %v2427 = vld [vmem:[#allocation9 + $0x250] sm:$0xff]
          %v2428 = vld [vmem:[#allocation9 + $0x258] sm:$0xf]
          %v2429 = vld [vmem:[#allocation9 + $0x260] sm:$0xff]
          %v2430 = vld [vmem:[#allocation9 + $0x268] sm:$0xf]
          %v2431 = vld [vmem:[#allocation9 + $0x270] sm:$0xff]
          %v2432 = vld [vmem:[#allocation9 + $0x278] sm:$0xf]
          %v2433 = vld [vmem:[#allocation9 + $0x280] sm:$0xff]
          %v2434 = vld [vmem:[#allocation9 + $0x288] sm:$0xf]
          %v2435 = vld [vmem:[#allocation9 + $0x290] sm:$0xff]
          %v2436 = vld [vmem:[#allocation9 + $0x298] sm:$0xf]
          %v2437 = vld [vmem:[#allocation9 + $0x2a0] sm:$0xff]
          %v2438 = vld [vmem:[#allocation9 + $0x2a8] sm:$0xf]
          %v2439 = vld [vmem:[#allocation9 + $0x2b0] sm:$0xff]
          %v2440 = vld [vmem:[#allocation9 + $0x2b8] sm:$0xf]
          %v2441 = vld [vmem:[#allocation9 + $0x2c0] sm:$0xff]
          %v2442 = vld [vmem:[#allocation9 + $0x2c8] sm:$0xf]
          %v2443 = vld [vmem:[#allocation9 + $0x2d0] sm:$0xff]
          %v2444 = vld [vmem:[#allocation9 + $0x2d8] sm:$0xf]
          %v2445 = vld [vmem:[#allocation9 + $0x2e0] sm:$0xff]
          %v2446 = vld [vmem:[#allocation9 + $0x2e8] sm:$0xf]
          %v2447 = vld [vmem:[#allocation9 + $0x2f0] sm:$0xff]
          %v2448 = vld [vmem:[#allocation9 + $0x2f8] sm:$0xf]
          %v2449 = vld [vmem:[#allocation9 + $0x300] sm:$0xff]
          %v2450 = vld [vmem:[#allocation9 + $0x308] sm:$0xf]
          %v2451 = vld [vmem:[#allocation9 + $0x310] sm:$0xff]
          %v2452 = vld [vmem:[#allocation9 + $0x318] sm:$0xf]
          %v2453 = vld [vmem:[#allocation9 + $0x320] sm:$0xff]
          %v2454 = vld [vmem:[#allocation9 + $0x328] sm:$0xf]
          %v2455 = vld [vmem:[#allocation9 + $0x330] sm:$0xff]
          %v2456 = vld [vmem:[#allocation9 + $0x338] sm:$0xf]
          %v2457 = vld [vmem:[#allocation9 + $0x340] sm:$0xff]
          %v2458 = vld [vmem:[#allocation9 + $0x348] sm:$0xf]
          %v2459 = vld [vmem:[#allocation9 + $0x350] sm:$0xff]
          %v2460 = vld [vmem:[#allocation9 + $0x358] sm:$0xf]
          %v2461 = vld [vmem:[#allocation9 + $0x360] sm:$0xff]
          %v2462 = vld [vmem:[#allocation9 + $0x368] sm:$0xf]
          %v2463 = vld [vmem:[#allocation9 + $0x370] sm:$0xff]
          %v2464 = vld [vmem:[#allocation9 + $0x378] sm:$0xf]
          %v2465 = vld [vmem:[#allocation9 + $0x380] sm:$0xff]
          %v2466 = vld [vmem:[#allocation9 + $0x388] sm:$0xf]
          %v2467 = vld [vmem:[#allocation9 + $0x390] sm:$0xff]
          %v2468 = vld [vmem:[#allocation9 + $0x398] sm:$0xf]
          %v2469 = vld [vmem:[#allocation9 + $0x3a0] sm:$0xff]
          %v2470 = vld [vmem:[#allocation9 + $0x3a8] sm:$0xf]
          %v2471 = vld [vmem:[#allocation9 + $0x3b0] sm:$0xff]
          %v2472 = vld [vmem:[#allocation9 + $0x3b8] sm:$0xf]
          %v2473 = vld [vmem:[#allocation9 + $0x3c0] sm:$0xff]
          %v2474 = vld [vmem:[#allocation9 + $0x3c8] sm:$0xf]
          %v2475 = vld [vmem:[#allocation9 + $0x3d0] sm:$0xff]
          %v2476 = vld [vmem:[#allocation9 + $0x3d8] sm:$0xf]
          %v2477 = vld [vmem:[#allocation9 + $0x3e0] sm:$0xff]
          %v2478 = vld [vmem:[#allocation9 + $0x3e8] sm:$0xf]
          %v2479 = vld [vmem:[#allocation9 + $0x3f0] sm:$0xff]
          %v2480 = vld [vmem:[#allocation9 + $0x3f8] sm:$0xf]
          %v2481 = vld [vmem:[#allocation9 + $0x400] sm:$0xff]
          %v2482 = vld [vmem:[#allocation9 + $0x408] sm:$0xf]
          %v2483 = vld [vmem:[#allocation9 + $0x410] sm:$0xff]
          %v2484 = vld [vmem:[#allocation9 + $0x418] sm:$0xf]
          %v2485 = vld [vmem:[#allocation9 + $0x420] sm:$0xff]
          %v2486 = vld [vmem:[#allocation9 + $0x428] sm:$0xf]
          %v2487 = vld [vmem:[#allocation9 + $0x430] sm:$0xff]
          %v2488 = vld [vmem:[#allocation9 + $0x438] sm:$0xf]
          %v2489 = vld [vmem:[#allocation9 + $0x440] sm:$0xff]
          %v2490 = vld [vmem:[#allocation9 + $0x448] sm:$0xf]
          %v2491 = vld [vmem:[#allocation9 + $0x450] sm:$0xff]
          %v2492 = vld [vmem:[#allocation9 + $0x458] sm:$0xf]
          %v2493 = vld [vmem:[#allocation9 + $0x460] sm:$0xff]
          %v2494 = vld [vmem:[#allocation9 + $0x468] sm:$0xf]
          %v2495 = vld [vmem:[#allocation9 + $0x470] sm:$0xff]
          %v2496 = vld [vmem:[#allocation9 + $0x478] sm:$0xf]
          %v2497 = vld [vmem:[#allocation9 + $0x480] sm:$0xff]
          %v2498 = vld [vmem:[#allocation9 + $0x488] sm:$0xf]
          %v2499 = vld [vmem:[#allocation9 + $0x490] sm:$0xff]
          %v2500 = vld [vmem:[#allocation9 + $0x498] sm:$0xf]
          %v2501 = vld [vmem:[#allocation9 + $0x4a0] sm:$0xff]
          %v2502 = vld [vmem:[#allocation9 + $0x4a8] sm:$0xf]
          %v2503 = vld [vmem:[#allocation9 + $0x4b0] sm:$0xff]
          %v2504 = vld [vmem:[#allocation9 + $0x4b8] sm:$0xf]
          %v2505 = vld [vmem:[#allocation9 + $0x4c0] sm:$0xff]
          %v2506 = vld [vmem:[#allocation9 + $0x4c8] sm:$0xf]
          %v2507 = vld [vmem:[#allocation9 + $0x4d0] sm:$0xff]
          %v2508 = vld [vmem:[#allocation9 + $0x4d8] sm:$0xf]
          %v2509 = vld [vmem:[#allocation9 + $0x4e0] sm:$0xff]
          %v2510 = vld [vmem:[#allocation9 + $0x4e8] sm:$0xf]
          %v2511 = vld [vmem:[#allocation9 + $0x4f0] sm:$0xff]
          %v2512 = vld [vmem:[#allocation9 + $0x4f8] sm:$0xf]
          %v2513 = vld [vmem:[#allocation11 + $0x4] sm:$0x7]
          %v2514 = vpack.c.bf16 %v2261, %v2257
          %v2515 = vpack.c.bf16 %v2262, %v2258
          %v2516 = vpack.c.bf16 %v2263, %v2259
          %v2517 = vpack.c.bf16 %v2264, %v2260
          %v2518 = vpack.c.bf16 %v2269, %v2265
          %v2519 = vpack.c.bf16 %v2270, %v2266
          %v2520 = vpack.c.bf16 %v2271, %v2267
          %v2521 = vpack.c.bf16 %v2272, %v2268
          %v2522 = vpack.c.bf16 %v2277, %v2273
          %v2523 = vpack.c.bf16 %v2278, %v2274
          %v2524 = vpack.c.bf16 %v2279, %v2275
          %v2525 = vpack.c.bf16 %v2280, %v2276
          %v2526 = vpack.c.bf16 %v2285, %v2281
          %v2527 = vpack.c.bf16 %v2286, %v2282
          %v2528 = vpack.c.bf16 %v2287, %v2283
          %v2529 = vpack.c.bf16 %v2288, %v2284
          %v2530 = vpack.c.bf16 %v2293, %v2289
          %v2531 = vpack.c.bf16 %v2294, %v2290
          %v2532 = vpack.c.bf16 %v2295, %v2291
          %v2533 = vpack.c.bf16 %v2296, %v2292
          %v2534 = vpack.c.bf16 %v2301, %v2297
          %v2535 = vpack.c.bf16 %v2302, %v2298
          %v2536 = vpack.c.bf16 %v2303, %v2299
          %v2537 = vpack.c.bf16 %v2304, %v2300
          %v2538 = vpack.c.bf16 %v2309, %v2305
          %v2539 = vpack.c.bf16 %v2310, %v2306
          %v2540 = vpack.c.bf16 %v2311, %v2307
          %v2541 = vpack.c.bf16 %v2312, %v2308
          %v2542 = vpack.c.bf16 %v2317, %v2313
          %v2543 = vpack.c.bf16 %v2318, %v2314
          %v2544 = vpack.c.bf16 %v2319, %v2315
          %v2545 = vpack.c.bf16 %v2320, %v2316
          %v2546 = vpack.c.bf16 %v2325, %v2321
          %v2547 = vpack.c.bf16 %v2326, %v2322
          %v2548 = vpack.c.bf16 %v2327, %v2323
          %v2549 = vpack.c.bf16 %v2328, %v2324
          %v2550 = vpack.c.bf16 %v2333, %v2329
          %v2551 = vpack.c.bf16 %v2334, %v2330
          %v2552 = vpack.c.bf16 %v2335, %v2331
          %v2553 = vpack.c.bf16 %v2336, %v2332
          %v2554 = vpack.c.bf16 %v2341, %v2337
          %v2555 = vpack.c.bf16 %v2342, %v2338
          %v2556 = vpack.c.bf16 %v2343, %v2339
          %v2557 = vpack.c.bf16 %v2344, %v2340
          %v2558 = vpack.c.bf16 %v2349, %v2345
          %v2559 = vpack.c.bf16 %v2350, %v2346
          %v2560 = vpack.c.bf16 %v2351, %v2347
          %v2561 = vpack.c.bf16 %v2352, %v2348
          %v2562 = vpack.c.bf16 %v2357, %v2353
          %v2563 = vpack.c.bf16 %v2358, %v2354
          %v2564 = vpack.c.bf16 %v2359, %v2355
          %v2565 = vpack.c.bf16 %v2360, %v2356
          %v2566 = vpack.c.bf16 %v2365, %v2361
          %v2567 = vpack.c.bf16 %v2366, %v2362
          %v2568 = vpack.c.bf16 %v2367, %v2363
          %v2569 = vpack.c.bf16 %v2368, %v2364
          %v2570 = vpack.c.bf16 %v2373, %v2369
          %v2571 = vpack.c.bf16 %v2374, %v2370
          %v2572 = vpack.c.bf16 %v2375, %v2371
          %v2573 = vpack.c.bf16 %v2376, %v2372
          %v2574 = vpack.c.bf16 %v2381, %v2377
          %v2575 = vpack.c.bf16 %v2382, %v2378
          %v2576 = vpack.c.bf16 %v2383, %v2379
          %v2577 = vpack.c.bf16 %v2384, %v2380
          %v2579 = vlaneseq
          %v2580 = vshrl.u32 %v2579, 7
          %v2581 = vsub.s32 0, %v2580
          %v2582 = vrot.slane %v2513, %v2581
          %v2583 = vlaneseq
          %v2584 = vshrl.u32 %v2583, 7
          %v2585 = vsub.s32 1, %v2584
          %v2586 = vrot.slane %v2513, %v2585
          %v2587 = vlaneseq
          %v2588 = vshrl.u32 %v2587, 7
          %v2589 = vsub.s32 2, %v2588
          %v2590 = vrot.slane %v2513, %v2589
          %v2722 = vunpack.c.l.b16 %v2385
          %v2723 = vunpack.c.h.b16 %v2385
          %v2724 = vunpack.c.l.b16 %v2386
          %v2725 = vunpack.c.l.b16 %v2387
          %v2726 = vunpack.c.h.b16 %v2387
          %v2727 = vunpack.c.l.b16 %v2388
          %v2728 = vunpack.c.l.b16 %v2389
          %v2729 = vunpack.c.h.b16 %v2389
          %v2730 = vunpack.c.l.b16 %v2390
          %v2731 = vunpack.c.l.b16 %v2391
          %v2732 = vunpack.c.h.b16 %v2391
          %v2733 = vunpack.c.l.b16 %v2392
          %v2734 = vunpack.c.l.b16 %v2393
          %v2735 = vunpack.c.h.b16 %v2393
          %v2736 = vunpack.c.l.b16 %v2394
          %v2737 = vunpack.c.l.b16 %v2395
          %v2738 = vunpack.c.h.b16 %v2395
          %v2739 = vunpack.c.l.b16 %v2396
          %v2740 = vunpack.c.l.b16 %v2397
          %v2741 = vunpack.c.h.b16 %v2397
          %v2742 = vunpack.c.l.b16 %v2398
          %v2743 = vunpack.c.l.b16 %v2399
          %v2744 = vunpack.c.h.b16 %v2399
          %v2745 = vunpack.c.l.b16 %v2400
          %v2746 = vunpack.c.l.b16 %v2401
          %v2747 = vunpack.c.h.b16 %v2401
          %v2748 = vunpack.c.l.b16 %v2402
          %v2749 = vunpack.c.l.b16 %v2403
          %v2750 = vunpack.c.h.b16 %v2403
          %v2751 = vunpack.c.l.b16 %v2404
          %v2752 = vunpack.c.l.b16 %v2405
          %v2753 = vunpack.c.h.b16 %v2405
          %v2754 = vunpack.c.l.b16 %v2406
          %v2755 = vunpack.c.l.b16 %v2407
          %v2756 = vunpack.c.h.b16 %v2407
          %v2757 = vunpack.c.l.b16 %v2408
          %v2758 = vunpack.c.l.b16 %v2409
          %v2759 = vunpack.c.h.b16 %v2409
          %v2760 = vunpack.c.l.b16 %v2410
          %v2761 = vunpack.c.l.b16 %v2411
          %v2762 = vunpack.c.h.b16 %v2411
          %v2763 = vunpack.c.l.b16 %v2412
          %v2764 = vunpack.c.l.b16 %v2413
          %v2765 = vunpack.c.h.b16 %v2413
          %v2766 = vunpack.c.l.b16 %v2414
          %v2767 = vunpack.c.l.b16 %v2415
          %v2768 = vunpack.c.h.b16 %v2415
          %v2769 = vunpack.c.l.b16 %v2416
          %v2770 = vunpack.c.l.b16 %v2417
          %v2771 = vunpack.c.h.b16 %v2417
          %v2772 = vunpack.c.l.b16 %v2418
          %v2773 = vunpack.c.l.b16 %v2419
          %v2774 = vunpack.c.h.b16 %v2419
          %v2775 = vunpack.c.l.b16 %v2420
          %v2776 = vunpack.c.l.b16 %v2421
          %v2777 = vunpack.c.h.b16 %v2421
          %v2778 = vunpack.c.l.b16 %v2422
          %v2779 = vunpack.c.l.b16 %v2423
          %v2780 = vunpack.c.h.b16 %v2423
          %v2781 = vunpack.c.l.b16 %v2424
          %v2782 = vunpack.c.l.b16 %v2425
          %v2783 = vunpack.c.h.b16 %v2425
          %v2784 = vunpack.c.l.b16 %v2426
          %v2785 = vunpack.c.l.b16 %v2427
          %v2786 = vunpack.c.h.b16 %v2427
          %v2787 = vunpack.c.l.b16 %v2428
          %v2788 = vunpack.c.l.b16 %v2429
          %v2789 = vunpack.c.h.b16 %v2429
          %v2790 = vunpack.c.l.b16 %v2430
          %v2791 = vunpack.c.l.b16 %v2431
          %v2792 = vunpack.c.h.b16 %v2431
          %v2793 = vunpack.c.l.b16 %v2432
          %v2794 = vunpack.c.l.b16 %v2433
          %v2795 = vunpack.c.h.b16 %v2433
          %v2796 = vunpack.c.l.b16 %v2434
          %v2797 = vunpack.c.l.b16 %v2435
          %v2798 = vunpack.c.h.b16 %v2435
          %v2799 = vunpack.c.l.b16 %v2436
          %v2800 = vunpack.c.l.b16 %v2437
          %v2801 = vunpack.c.h.b16 %v2437
          %v2802 = vunpack.c.l.b16 %v2438
          %v2803 = vunpack.c.l.b16 %v2439
          %v2804 = vunpack.c.h.b16 %v2439
          %v2805 = vunpack.c.l.b16 %v2440
          %v2806 = vunpack.c.l.b16 %v2441
          %v2807 = vunpack.c.h.b16 %v2441
          %v2808 = vunpack.c.l.b16 %v2442
          %v2809 = vunpack.c.l.b16 %v2443
          %v2810 = vunpack.c.h.b16 %v2443
          %v2811 = vunpack.c.l.b16 %v2444
          %v2812 = vunpack.c.l.b16 %v2445
          %v2813 = vunpack.c.h.b16 %v2445
          %v2814 = vunpack.c.l.b16 %v2446
          %v2815 = vunpack.c.l.b16 %v2447
          %v2816 = vunpack.c.h.b16 %v2447
          %v2817 = vunpack.c.l.b16 %v2448
          %v2818 = vunpack.c.l.b16 %v2449
          %v2819 = vunpack.c.h.b16 %v2449
          %v2820 = vunpack.c.l.b16 %v2450
          %v2821 = vunpack.c.l.b16 %v2451
          %v2822 = vunpack.c.h.b16 %v2451
          %v2823 = vunpack.c.l.b16 %v2452
          %v2824 = vunpack.c.l.b16 %v2453
          %v2825 = vunpack.c.h.b16 %v2453
          %v2826 = vunpack.c.l.b16 %v2454
          %v2827 = vunpack.c.l.b16 %v2455
          %v2828 = vunpack.c.h.b16 %v2455
          %v2829 = vunpack.c.l.b16 %v2456
          %v2830 = vunpack.c.l.b16 %v2457
          %v2831 = vunpack.c.h.b16 %v2457
          %v2832 = vunpack.c.l.b16 %v2458
          %v2833 = vunpack.c.l.b16 %v2459
          %v2834 = vunpack.c.h.b16 %v2459
          %v2835 = vunpack.c.l.b16 %v2460
          %v2836 = vunpack.c.l.b16 %v2461
          %v2837 = vunpack.c.h.b16 %v2461
          %v2838 = vunpack.c.l.b16 %v2462
          %v2839 = vunpack.c.l.b16 %v2463
          %v2840 = vunpack.c.h.b16 %v2463
          %v2841 = vunpack.c.l.b16 %v2464
          %v2842 = vunpack.c.l.b16 %v2465
          %v2843 = vunpack.c.h.b16 %v2465
          %v2844 = vunpack.c.l.b16 %v2466
          %v2845 = vunpack.c.l.b16 %v2467
          %v2846 = vunpack.c.h.b16 %v2467
          %v2847 = vunpack.c.l.b16 %v2468
          %v2848 = vunpack.c.l.b16 %v2469
          %v2849 = vunpack.c.h.b16 %v2469
          %v2850 = vunpack.c.l.b16 %v2470
          %v2851 = vunpack.c.l.b16 %v2471
          %v2852 = vunpack.c.h.b16 %v2471
          %v2853 = vunpack.c.l.b16 %v2472
          %v2854 = vunpack.c.l.b16 %v2473
          %v2855 = vunpack.c.h.b16 %v2473
          %v2856 = vunpack.c.l.b16 %v2474
          %v2857 = vunpack.c.l.b16 %v2475
          %v2858 = vunpack.c.h.b16 %v2475
          %v2859 = vunpack.c.l.b16 %v2476
          %v2860 = vunpack.c.l.b16 %v2477
          %v2861 = vunpack.c.h.b16 %v2477
          %v2862 = vunpack.c.l.b16 %v2478
          %v2863 = vunpack.c.l.b16 %v2479
          %v2864 = vunpack.c.h.b16 %v2479
          %v2865 = vunpack.c.l.b16 %v2480
          %v2866 = vunpack.c.l.b16 %v2481
          %v2867 = vunpack.c.h.b16 %v2481
          %v2868 = vunpack.c.l.b16 %v2482
          %v2869 = vunpack.c.l.b16 %v2483
          %v2870 = vunpack.c.h.b16 %v2483
          %v2871 = vunpack.c.l.b16 %v2484
          %v2872 = vunpack.c.l.b16 %v2485
          %v2873 = vunpack.c.h.b16 %v2485
          %v2874 = vunpack.c.l.b16 %v2486
          %v2875 = vunpack.c.l.b16 %v2487
          %v2876 = vunpack.c.h.b16 %v2487
          %v2877 = vunpack.c.l.b16 %v2488
          %v2878 = vunpack.c.l.b16 %v2489
          %v2879 = vunpack.c.h.b16 %v2489
          %v2880 = vunpack.c.l.b16 %v2490
          %v2881 = vunpack.c.l.b16 %v2491
          %v2882 = vunpack.c.h.b16 %v2491
          %v2883 = vunpack.c.l.b16 %v2492
          %v2884 = vunpack.c.l.b16 %v2493
          %v2885 = vunpack.c.h.b16 %v2493
          %v2886 = vunpack.c.l.b16 %v2494
          %v2887 = vunpack.c.l.b16 %v2495
          %v2888 = vunpack.c.h.b16 %v2495
          %v2889 = vunpack.c.l.b16 %v2496
          %v2890 = vunpack.c.l.b16 %v2497
          %v2891 = vunpack.c.h.b16 %v2497
          %v2892 = vunpack.c.l.b16 %v2498
          %v2893 = vunpack.c.l.b16 %v2499
          %v2894 = vunpack.c.h.b16 %v2499
          %v2895 = vunpack.c.l.b16 %v2500
          %v2896 = vunpack.c.l.b16 %v2501
          %v2897 = vunpack.c.h.b16 %v2501
          %v2898 = vunpack.c.l.b16 %v2502
          %v2899 = vunpack.c.l.b16 %v2503
          %v2900 = vunpack.c.h.b16 %v2503
          %v2901 = vunpack.c.l.b16 %v2504
          %v2902 = vunpack.c.l.b16 %v2505
          %v2903 = vunpack.c.h.b16 %v2505
          %v2904 = vunpack.c.l.b16 %v2506
          %v2905 = vunpack.c.l.b16 %v2507
          %v2906 = vunpack.c.h.b16 %v2507
          %v2907 = vunpack.c.l.b16 %v2508
          %v2908 = vunpack.c.l.b16 %v2509
          %v2909 = vunpack.c.h.b16 %v2509
          %v2910 = vunpack.c.l.b16 %v2510
          %v2911 = vunpack.c.l.b16 %v2511
          %v2912 = vunpack.c.h.b16 %v2511
          %v2913 = vunpack.c.l.b16 %v2512
          %v2914 = vpack.c.b16 %v2725, %v2722
          %v2915 = vpack.c.b16 %v2726, %v2723
          %v2916 = vpack.c.b16 %v2727, %v2724
          %v2917 = vpack.c.b16 %v2731, %v2728
          %v2918 = vpack.c.b16 %v2732, %v2729
          %v2919 = vpack.c.b16 %v2733, %v2730
          %v2920 = vpack.c.b16 %v2737, %v2734
          %v2921 = vpack.c.b16 %v2738, %v2735
          %v2922 = vpack.c.b16 %v2739, %v2736
          %v2923 = vpack.c.b16 %v2743, %v2740
          %v2924 = vpack.c.b16 %v2744, %v2741
          %v2925 = vpack.c.b16 %v2745, %v2742
          %v2926 = vpack.c.b16 %v2749, %v2746
          %v2927 = vpack.c.b16 %v2750, %v2747
          %v2928 = vpack.c.b16 %v2751, %v2748
          %v2929 = vpack.c.b16 %v2755, %v2752
          %v2930 = vpack.c.b16 %v2756, %v2753
          %v2931 = vpack.c.b16 %v2757, %v2754
          %v2932 = vpack.c.b16 %v2761, %v2758
          %v2933 = vpack.c.b16 %v2762, %v2759
          %v2934 = vpack.c.b16 %v2763, %v2760
          %v2935 = vpack.c.b16 %v2767, %v2764
          %v2936 = vpack.c.b16 %v2768, %v2765
          %v2937 = vpack.c.b16 %v2769, %v2766
          %v2938 = vpack.c.b16 %v2773, %v2770
          %v2939 = vpack.c.b16 %v2774, %v2771
          %v2940 = vpack.c.b16 %v2775, %v2772
          %v2941 = vpack.c.b16 %v2779, %v2776
          %v2942 = vpack.c.b16 %v2780, %v2777
          %v2943 = vpack.c.b16 %v2781, %v2778
          %v2944 = vpack.c.b16 %v2785, %v2782
          %v2945 = vpack.c.b16 %v2786, %v2783
          %v2946 = vpack.c.b16 %v2787, %v2784
          %v2947 = vpack.c.b16 %v2791, %v2788
          %v2948 = vpack.c.b16 %v2792, %v2789
          %v2949 = vpack.c.b16 %v2793, %v2790
          %v2950 = vpack.c.b16 %v2797, %v2794
          %v2951 = vpack.c.b16 %v2798, %v2795
          %v2952 = vpack.c.b16 %v2799, %v2796
          %v2953 = vpack.c.b16 %v2803, %v2800
          %v2954 = vpack.c.b16 %v2804, %v2801
          %v2955 = vpack.c.b16 %v2805, %v2802
          %v2956 = vpack.c.b16 %v2809, %v2806
          %v2957 = vpack.c.b16 %v2810, %v2807
          %v2958 = vpack.c.b16 %v2811, %v2808
          %v2959 = vpack.c.b16 %v2815, %v2812
          %v2960 = vpack.c.b16 %v2816, %v2813
          %v2961 = vpack.c.b16 %v2817, %v2814
          %v2962 = vpack.c.b16 %v2821, %v2818
          %v2963 = vpack.c.b16 %v2822, %v2819
          %v2964 = vpack.c.b16 %v2823, %v2820
          %v2965 = vpack.c.b16 %v2827, %v2824
          %v2966 = vpack.c.b16 %v2828, %v2825
          %v2967 = vpack.c.b16 %v2829, %v2826
          %v2968 = vpack.c.b16 %v2833, %v2830
          %v2969 = vpack.c.b16 %v2834, %v2831
          %v2970 = vpack.c.b16 %v2835, %v2832
          %v2971 = vpack.c.b16 %v2839, %v2836
          %v2972 = vpack.c.b16 %v2840, %v2837
          %v2973 = vpack.c.b16 %v2841, %v2838
          %v2974 = vpack.c.b16 %v2845, %v2842
          %v2975 = vpack.c.b16 %v2846, %v2843
          %v2976 = vpack.c.b16 %v2847, %v2844
          %v2977 = vpack.c.b16 %v2851, %v2848
          %v2978 = vpack.c.b16 %v2852, %v2849
          %v2979 = vpack.c.b16 %v2853, %v2850
          %v2980 = vpack.c.b16 %v2857, %v2854
          %v2981 = vpack.c.b16 %v2858, %v2855
          %v2982 = vpack.c.b16 %v2859, %v2856
          %v2983 = vpack.c.b16 %v2863, %v2860
          %v2984 = vpack.c.b16 %v2864, %v2861
          %v2985 = vpack.c.b16 %v2865, %v2862
          %v2986 = vpack.c.b16 %v2869, %v2866
          %v2987 = vpack.c.b16 %v2870, %v2867
          %v2988 = vpack.c.b16 %v2871, %v2868
          %v2989 = vpack.c.b16 %v2875, %v2872
          %v2990 = vpack.c.b16 %v2876, %v2873
          %v2991 = vpack.c.b16 %v2877, %v2874
          %v2992 = vpack.c.b16 %v2881, %v2878
          %v2993 = vpack.c.b16 %v2882, %v2879
          %v2994 = vpack.c.b16 %v2883, %v2880
          %v2995 = vpack.c.b16 %v2887, %v2884
          %v2996 = vpack.c.b16 %v2888, %v2885
          %v2997 = vpack.c.b16 %v2889, %v2886
          %v2998 = vpack.c.b16 %v2893, %v2890
          %v2999 = vpack.c.b16 %v2894, %v2891
          %v3000 = vpack.c.b16 %v2895, %v2892
          %v3001 = vpack.c.b16 %v2899, %v2896
          %v3002 = vpack.c.b16 %v2900, %v2897
          %v3003 = vpack.c.b16 %v2901, %v2898
          %v3004 = vpack.c.b16 %v2905, %v2902
          %v3005 = vpack.c.b16 %v2906, %v2903
          %v3006 = vpack.c.b16 %v2907, %v2904
          %v3007 = vpack.c.b16 %v2911, %v2908
          %v3008 = vpack.c.b16 %v2912, %v2909
          %v3009 = vpack.c.b16 %v2913, %v2910
          %3106 = vmatprep.subr.bf16.mxu0 %v2936
          %3107 = vmatpush1.bf16.msra.mxu0 %v2935
          %3108 = vmatprep.subr.bf16.mxu0 %v2933
          %3109 = vmatpush1.bf16.msra.mxu0 %v2932
          %3110 = vmatprep.subr.bf16.mxu0 %v2930
          %3111 = vmatpush1.bf16.msra.mxu0 %v2929
          %3112 = vmatprep.subr.bf16.mxu0 %v2927
          %3113 = vmatpush1.bf16.msra.mxu0 %v2926
          %3114 = vmatprep.subr.bf16.mxu0 %v2924
          %3115 = vmatpush1.bf16.msra.mxu0 %v2923
          %3116 = vmatprep.subr.bf16.mxu0 %v2921
          %3117 = vmatpush1.bf16.msra.mxu0 %v2920
          %3118 = vmatprep.subr.bf16.mxu0 %v2918
          %3119 = vmatpush1.bf16.msra.mxu0 %v2917
          %3120 = vmatprep.subr.bf16.mxu0 %v2915
          %3121 = vmatpush1.bf16.msra.mxu0 %v2914
          %3122 = vmatprep.subr.bf16.mxu0 %v2960
          %3123 = vmatpush2.bf16.msra.mxu0 %v2959
          %3124 = vmatprep.subr.bf16.mxu0 %v2957
          %3125 = vmatpush2.bf16.msra.mxu0 %v2956
          %3126 = vmatprep.subr.bf16.mxu0 %v2954
          %3127 = vmatpush2.bf16.msra.mxu0 %v2953
          %3128 = vmatprep.subr.bf16.mxu0 %v2951
          %3129 = vmatpush2.bf16.msra.mxu0 %v2950
          %3130 = vmatprep.subr.bf16.mxu0 %v2948
          %3131 = vmatpush2.bf16.msra.mxu0 %v2947
          %3132 = vmatprep.subr.bf16.mxu0 %v2945
          %3133 = vmatpush2.bf16.msra.mxu0 %v2944
          %3134 = vmatprep.subr.bf16.mxu0 %v2942
          %3135 = vmatpush2.bf16.msra.mxu0 %v2941
          %3136 = vmatprep.subr.bf16.mxu0 %v2939
          %3137 = vmatpush2.bf16.msra.mxu0 %v2938
          %3138 = vmatprep.mubr.bf16.mxu0 %v2515
          %3139 = vmatmul.mubr.bf16.gmra.mxu0 %v2514
          %v3140 = vpop.f32.mrf.mxu0
          %v3141 = vadd.f32 %v2582, %v3140
          %v3142 = vpop.f32.mrf.mxu0
          %v3143 = vadd.f32 %v2586, %v3142
          %v3144 = vpop.f32.mrf.mxu0
          %v3145 = vadd.f32 %v2582, %v3144
          %v3146 = vpop.f32.mrf.mxu0
          %v3147 = vadd.f32 %v2586, %v3146
          %3148 = vmatprep.mubr.bf16.mxu0 %v2519
          %3149 = vmatmul.mubr.bf16.gmra.mxu0 %v2518
          %v3150 = vpop.f32.mrf.mxu0
          %v3151 = vadd.f32 %v2582, %v3150
          %v3152 = vpop.f32.mrf.mxu0
          %v3153 = vadd.f32 %v2586, %v3152
          %v3154 = vpop.f32.mrf.mxu0
          %v3155 = vadd.f32 %v2582, %v3154
          %v3156 = vpop.f32.mrf.mxu0
          %v3157 = vadd.f32 %v2586, %v3156
          %3158 = vmatprep.mubr.bf16.mxu0 %v2523
          %3159 = vmatmul.mubr.bf16.gmra.mxu0 %v2522
          %v3160 = vpop.f32.mrf.mxu0
          %v3161 = vadd.f32 %v2582, %v3160
          %v3162 = vpop.f32.mrf.mxu0
          %v3163 = vadd.f32 %v2586, %v3162
          %v3164 = vpop.f32.mrf.mxu0
          %v3165 = vadd.f32 %v2582, %v3164
          %v3166 = vpop.f32.mrf.mxu0
          %v3167 = vadd.f32 %v2586, %v3166
          %3168 = vmatprep.mubr.bf16.mxu0 %v2527
          %3169 = vmatmul.mubr.bf16.gmra.mxu0 %v2526
          %v3170 = vpop.f32.mrf.mxu0
          %v3171 = vadd.f32 %v2582, %v3170
          %v3172 = vpop.f32.mrf.mxu0
          %v3173 = vadd.f32 %v2586, %v3172
          %v3174 = vpop.f32.mrf.mxu0
          %v3175 = vadd.f32 %v2582, %v3174
          %v3176 = vpop.f32.mrf.mxu0
          %v3177 = vadd.f32 %v2586, %v3176
          %3178 = vmatprep.mubr.bf16.mxu0 %v2531
          %3179 = vmatmul.mubr.bf16.gmra.mxu0 %v2530
          %v3180 = vpop.f32.mrf.mxu0
          %v3181 = vadd.f32 %v2582, %v3180
          %v3182 = vpop.f32.mrf.mxu0
          %v3183 = vadd.f32 %v2586, %v3182
          %v3184 = vpop.f32.mrf.mxu0
          %v3185 = vadd.f32 %v2582, %v3184
          %v3186 = vpop.f32.mrf.mxu0
          %v3187 = vadd.f32 %v2586, %v3186
          %3188 = vmatprep.mubr.bf16.mxu0 %v2535
          %3189 = vmatmul.mubr.bf16.gmra.mxu0 %v2534
          %v3190 = vpop.f32.mrf.mxu0
          %v3191 = vadd.f32 %v2582, %v3190
          %v3192 = vpop.f32.mrf.mxu0
          %v3193 = vadd.f32 %v2586, %v3192
          %v3194 = vpop.f32.mrf.mxu0
          %v3195 = vadd.f32 %v2582, %v3194
          %v3196 = vpop.f32.mrf.mxu0
          %v3197 = vadd.f32 %v2586, %v3196
          %3198 = vmatprep.mubr.bf16.mxu0 %v2539
          %3199 = vmatmul.mubr.bf16.gmra.mxu0 %v2538
          %v3200 = vpop.f32.mrf.mxu0
          %v3201 = vadd.f32 %v2582, %v3200
          %v3202 = vpop.f32.mrf.mxu0
          %v3203 = vadd.f32 %v2586, %v3202
          %v3204 = vpop.f32.mrf.mxu0
          %v3205 = vadd.f32 %v2582, %v3204
          %v3206 = vpop.f32.mrf.mxu0
          %v3207 = vadd.f32 %v2586, %v3206
          %3208 = vmatprep.mubr.bf16.mxu0 %v2543
          %3209 = vmatmul.mubr.bf16.gmra.mxu0 %v2542
          %v3210 = vpop.f32.mrf.mxu0
          %v3211 = vadd.f32 %v2582, %v3210
          %v3212 = vpop.f32.mrf.mxu0
          %v3213 = vadd.f32 %v2586, %v3212
          %v3214 = vpop.f32.mrf.mxu0
          %v3215 = vadd.f32 %v2582, %v3214
          %v3216 = vpop.f32.mrf.mxu0
          %v3217 = vadd.f32 %v2586, %v3216
          %3218 = vmatprep.mubr.bf16.mxu0 %v2547
          %3219 = vmatmul.mubr.bf16.gmra.mxu0 %v2546
          %v3220 = vpop.f32.mrf.mxu0
          %v3221 = vadd.f32 %v2582, %v3220
          %v3222 = vpop.f32.mrf.mxu0
          %v3223 = vadd.f32 %v2586, %v3222
          %v3224 = vpop.f32.mrf.mxu0
          %v3225 = vadd.f32 %v2582, %v3224
          %v3226 = vpop.f32.mrf.mxu0
          %v3227 = vadd.f32 %v2586, %v3226
          %3228 = vmatprep.mubr.bf16.mxu0 %v2551
          %3229 = vmatmul.mubr.bf16.gmra.mxu0 %v2550
          %v3230 = vpop.f32.mrf.mxu0
          %v3231 = vadd.f32 %v2582, %v3230
          %v3232 = vpop.f32.mrf.mxu0
          %v3233 = vadd.f32 %v2586, %v3232
          %v3234 = vpop.f32.mrf.mxu0
          %v3235 = vadd.f32 %v2582, %v3234
          %v3236 = vpop.f32.mrf.mxu0
          %v3237 = vadd.f32 %v2586, %v3236
          %3238 = vmatprep.mubr.bf16.mxu0 %v2555
          %3239 = vmatmul.mubr.bf16.gmra.mxu0 %v2554
          %v3240 = vpop.f32.mrf.mxu0
          %v3241 = vadd.f32 %v2582, %v3240
          %v3242 = vpop.f32.mrf.mxu0
          %v3243 = vadd.f32 %v2586, %v3242
          %v3244 = vpop.f32.mrf.mxu0
          %v3245 = vadd.f32 %v2582, %v3244
          %v3246 = vpop.f32.mrf.mxu0
          %v3247 = vadd.f32 %v2586, %v3246
          %3248 = vmatprep.mubr.bf16.mxu0 %v2559
          %3249 = vmatmul.mubr.bf16.gmra.mxu0 %v2558
          %v3250 = vpop.f32.mrf.mxu0
          %v3251 = vadd.f32 %v2582, %v3250
          %v3252 = vpop.f32.mrf.mxu0
          %v3253 = vadd.f32 %v2586, %v3252
          %v3254 = vpop.f32.mrf.mxu0
          %v3255 = vadd.f32 %v2582, %v3254
          %v3256 = vpop.f32.mrf.mxu0
          %v3257 = vadd.f32 %v2586, %v3256
          %3258 = vmatprep.mubr.bf16.mxu0 %v2563
          %3259 = vmatmul.mubr.bf16.gmra.mxu0 %v2562
          %v3260 = vpop.f32.mrf.mxu0
          %v3261 = vadd.f32 %v2582, %v3260
          %v3262 = vpop.f32.mrf.mxu0
          %v3263 = vadd.f32 %v2586, %v3262
          %v3264 = vpop.f32.mrf.mxu0
          %v3265 = vadd.f32 %v2582, %v3264
          %v3266 = vpop.f32.mrf.mxu0
          %v3267 = vadd.f32 %v2586, %v3266
          %3268 = vmatprep.mubr.bf16.mxu0 %v2567
          %3269 = vmatmul.mubr.bf16.gmra.mxu0 %v2566
          %v3270 = vpop.f32.mrf.mxu0
          %v3271 = vadd.f32 %v2582, %v3270
          %v3272 = vpop.f32.mrf.mxu0
          %v3273 = vadd.f32 %v2586, %v3272
          %v3274 = vpop.f32.mrf.mxu0
          %v3275 = vadd.f32 %v2582, %v3274
          %v3276 = vpop.f32.mrf.mxu0
          %v3277 = vadd.f32 %v2586, %v3276
          %3278 = vmatprep.mubr.bf16.mxu0 %v2571
          %3279 = vmatmul.mubr.bf16.gmra.mxu0 %v2570
          %v3280 = vpop.f32.mrf.mxu0
          %v3281 = vadd.f32 %v2582, %v3280
          %v3282 = vpop.f32.mrf.mxu0
          %v3283 = vadd.f32 %v2586, %v3282
          %v3284 = vpop.f32.mrf.mxu0
          %v3285 = vadd.f32 %v2582, %v3284
          %v3286 = vpop.f32.mrf.mxu0
          %v3287 = vadd.f32 %v2586, %v3286
          %3288 = vmatprep.mubr.bf16.mxu0 %v2575
          %3289 = vmatmul.mubr.bf16.gmra.mxu0 %v2574
          %v3290 = vpop.f32.mrf.mxu0
          %v3291 = vadd.f32 %v2582, %v3290
          %v3292 = vpop.f32.mrf.mxu0
          %v3293 = vadd.f32 %v2586, %v3292
          %v3294 = vpop.f32.mrf.mxu0
          %v3295 = vadd.f32 %v2582, %v3294
          %v3296 = vpop.f32.mrf.mxu0
          %v3297 = vadd.f32 %v2586, %v3296
          %3298 = vdwg.mxu0
          %3299 = vmatprep.subr.bf16.mxu0 %v2984
          %3300 = vmatpush1.bf16.msra.mxu0 %v2983
          %3301 = vmatprep.subr.bf16.mxu0 %v2981
          %3302 = vmatpush1.bf16.msra.mxu0 %v2980
          %3303 = vmatprep.subr.bf16.mxu0 %v2978
          %3304 = vmatpush1.bf16.msra.mxu0 %v2977
          %3305 = vmatprep.subr.bf16.mxu0 %v2975
          %3306 = vmatpush1.bf16.msra.mxu0 %v2974
          %3307 = vmatprep.subr.bf16.mxu0 %v2972
          %3308 = vmatpush1.bf16.msra.mxu0 %v2971
          %3309 = vmatprep.subr.bf16.mxu0 %v2969
          %3310 = vmatpush1.bf16.msra.mxu0 %v2968
          %3311 = vmatprep.subr.bf16.mxu0 %v2966
          %3312 = vmatpush1.bf16.msra.mxu0 %v2965
          %3313 = vmatprep.subr.bf16.mxu0 %v2963
          %3314 = vmatpush1.bf16.msra.mxu0 %v2962
          %3315 = vmatprep.subr.bf16.mxu0 %v3008
          %3316 = vmatpush2.bf16.msra.mxu0 %v3007
          %3317 = vmatprep.subr.bf16.mxu0 %v3005
          %3318 = vmatpush2.bf16.msra.mxu0 %v3004
          %3319 = vmatprep.subr.bf16.mxu0 %v3002
          %3320 = vmatpush2.bf16.msra.mxu0 %v3001
          %3321 = vmatprep.subr.bf16.mxu0 %v2999
          %3322 = vmatpush2.bf16.msra.mxu0 %v2998
          %3323 = vmatprep.subr.bf16.mxu0 %v2996
          %3324 = vmatpush2.bf16.msra.mxu0 %v2995
          %3325 = vmatprep.subr.bf16.mxu0 %v2993
          %3326 = vmatpush2.bf16.msra.mxu0 %v2992
          %3327 = vmatprep.subr.bf16.mxu0 %v2990
          %3328 = vmatpush2.bf16.msra.mxu0 %v2989
          %3329 = vmatprep.subr.bf16.mxu0 %v2987
          %3330 = vmatpush2.bf16.msra.mxu0 %v2986
          %3331 = vmatprep.mubr.bf16.mxu0 %v2517
          %3332 = vmatmul.mubr.bf16.gmra.mxu0 %v2516
          %v3333 = vpop.f32.mrf.mxu0
          %v3334 = vadd.f32 %v3141, %v3333
          %v3335 = vpop.f32.mrf.mxu0
          %v3336 = vadd.f32 %v3143, %v3335
          %v3337 = vpop.f32.mrf.mxu0
          %v3338 = vadd.f32 %v3145, %v3337
          %v3339 = vpop.f32.mrf.mxu0
          %v3340 = vadd.f32 %v3147, %v3339
          %3341 = vmatprep.mubr.bf16.mxu0 %v2521
          %3342 = vmatmul.mubr.bf16.gmra.mxu0 %v2520
          %v3343 = vpop.f32.mrf.mxu0
          %v3344 = vadd.f32 %v3151, %v3343
          %v3345 = vpop.f32.mrf.mxu0
          %v3346 = vadd.f32 %v3153, %v3345
          %v3347 = vpop.f32.mrf.mxu0
          %v3348 = vadd.f32 %v3155, %v3347
          %v3349 = vpop.f32.mrf.mxu0
          %v3350 = vadd.f32 %v3157, %v3349
          %3351 = vmatprep.mubr.bf16.mxu0 %v2525
          %3352 = vmatmul.mubr.bf16.gmra.mxu0 %v2524
          %v3353 = vpop.f32.mrf.mxu0
          %v3354 = vadd.f32 %v3161, %v3353
          %v3355 = vpop.f32.mrf.mxu0
          %v3356 = vadd.f32 %v3163, %v3355
          %v3357 = vpop.f32.mrf.mxu0
          %v3358 = vadd.f32 %v3165, %v3357
          %v3359 = vpop.f32.mrf.mxu0
          %v3360 = vadd.f32 %v3167, %v3359
          %3361 = vmatprep.mubr.bf16.mxu0 %v2529
          %3362 = vmatmul.mubr.bf16.gmra.mxu0 %v2528
          %v3363 = vpop.f32.mrf.mxu0
          %v3364 = vadd.f32 %v3171, %v3363
          %v3365 = vpop.f32.mrf.mxu0
          %v3366 = vadd.f32 %v3173, %v3365
          %v3367 = vpop.f32.mrf.mxu0
          %v3368 = vadd.f32 %v3175, %v3367
          %v3369 = vpop.f32.mrf.mxu0
          %v3370 = vadd.f32 %v3177, %v3369
          %3371 = vmatprep.mubr.bf16.mxu0 %v2533
          %3372 = vmatmul.mubr.bf16.gmra.mxu0 %v2532
          %v3373 = vpop.f32.mrf.mxu0
          %v3374 = vadd.f32 %v3181, %v3373
          %v3375 = vpop.f32.mrf.mxu0
          %v3376 = vadd.f32 %v3183, %v3375
          %v3377 = vpop.f32.mrf.mxu0
          %v3378 = vadd.f32 %v3185, %v3377
          %v3379 = vpop.f32.mrf.mxu0
          %v3380 = vadd.f32 %v3187, %v3379
          %3381 = vmatprep.mubr.bf16.mxu0 %v2537
          %3382 = vmatmul.mubr.bf16.gmra.mxu0 %v2536
          %v3383 = vpop.f32.mrf.mxu0
          %v3384 = vadd.f32 %v3191, %v3383
          %v3385 = vpop.f32.mrf.mxu0
          %v3386 = vadd.f32 %v3193, %v3385
          %v3387 = vpop.f32.mrf.mxu0
          %v3388 = vadd.f32 %v3195, %v3387
          %v3389 = vpop.f32.mrf.mxu0
          %v3390 = vadd.f32 %v3197, %v3389
          %3391 = vmatprep.mubr.bf16.mxu0 %v2541
          %3392 = vmatmul.mubr.bf16.gmra.mxu0 %v2540
          %v3393 = vpop.f32.mrf.mxu0
          %v3394 = vadd.f32 %v3201, %v3393
          %v3395 = vpop.f32.mrf.mxu0
          %v3396 = vadd.f32 %v3203, %v3395
          %v3397 = vpop.f32.mrf.mxu0
          %v3398 = vadd.f32 %v3205, %v3397
          %v3399 = vpop.f32.mrf.mxu0
          %v3400 = vadd.f32 %v3207, %v3399
          %3401 = vmatprep.mubr.bf16.mxu0 %v2545
          %3402 = vmatmul.mubr.bf16.gmra.mxu0 %v2544
          %v3403 = vpop.f32.mrf.mxu0
          %v3404 = vadd.f32 %v3211, %v3403
          %v3405 = vpop.f32.mrf.mxu0
          %v3406 = vadd.f32 %v3213, %v3405
          %v3407 = vpop.f32.mrf.mxu0
          %v3408 = vadd.f32 %v3215, %v3407
          %v3409 = vpop.f32.mrf.mxu0
          %v3410 = vadd.f32 %v3217, %v3409
          %3411 = vmatprep.mubr.bf16.mxu0 %v2549
          %3412 = vmatmul.mubr.bf16.gmra.mxu0 %v2548
          %v3413 = vpop.f32.mrf.mxu0
          %v3414 = vadd.f32 %v3221, %v3413
          %v3415 = vpop.f32.mrf.mxu0
          %v3416 = vadd.f32 %v3223, %v3415
          %v3417 = vpop.f32.mrf.mxu0
          %v3418 = vadd.f32 %v3225, %v3417
          %v3419 = vpop.f32.mrf.mxu0
          %v3420 = vadd.f32 %v3227, %v3419
          %3421 = vmatprep.mubr.bf16.mxu0 %v2553
          %3422 = vmatmul.mubr.bf16.gmra.mxu0 %v2552
          %v3423 = vpop.f32.mrf.mxu0
          %v3424 = vadd.f32 %v3231, %v3423
          %v3425 = vpop.f32.mrf.mxu0
          %v3426 = vadd.f32 %v3233, %v3425
          %v3427 = vpop.f32.mrf.mxu0
          %v3428 = vadd.f32 %v3235, %v3427
          %v3429 = vpop.f32.mrf.mxu0
          %v3430 = vadd.f32 %v3237, %v3429
          %3431 = vmatprep.mubr.bf16.mxu0 %v2557
          %3432 = vmatmul.mubr.bf16.gmra.mxu0 %v2556
          %v3433 = vpop.f32.mrf.mxu0
          %v3434 = vadd.f32 %v3241, %v3433
          %v3435 = vpop.f32.mrf.mxu0
          %v3436 = vadd.f32 %v3243, %v3435
          %v3437 = vpop.f32.mrf.mxu0
          %v3438 = vadd.f32 %v3245, %v3437
          %v3439 = vpop.f32.mrf.mxu0
          %v3440 = vadd.f32 %v3247, %v3439
          %3441 = vmatprep.mubr.bf16.mxu0 %v2561
          %3442 = vmatmul.mubr.bf16.gmra.mxu0 %v2560
          %v3443 = vpop.f32.mrf.mxu0
          %v3444 = vadd.f32 %v3251, %v3443
          %v3445 = vpop.f32.mrf.mxu0
          %v3446 = vadd.f32 %v3253, %v3445
          %v3447 = vpop.f32.mrf.mxu0
          %v3448 = vadd.f32 %v3255, %v3447
          %v3449 = vpop.f32.mrf.mxu0
          %v3450 = vadd.f32 %v3257, %v3449
          %3451 = vmatprep.mubr.bf16.mxu0 %v2565
          %3452 = vmatmul.mubr.bf16.gmra.mxu0 %v2564
          %v3453 = vpop.f32.mrf.mxu0
          %v3454 = vadd.f32 %v3261, %v3453
          %v3455 = vpop.f32.mrf.mxu0
          %v3456 = vadd.f32 %v3263, %v3455
          %v3457 = vpop.f32.mrf.mxu0
          %v3458 = vadd.f32 %v3265, %v3457
          %v3459 = vpop.f32.mrf.mxu0
          %v3460 = vadd.f32 %v3267, %v3459
          %3461 = vmatprep.mubr.bf16.mxu0 %v2569
          %3462 = vmatmul.mubr.bf16.gmra.mxu0 %v2568
          %v3463 = vpop.f32.mrf.mxu0
          %v3464 = vadd.f32 %v3271, %v3463
          %v3465 = vpop.f32.mrf.mxu0
          %v3466 = vadd.f32 %v3273, %v3465
          %v3467 = vpop.f32.mrf.mxu0
          %v3468 = vadd.f32 %v3275, %v3467
          %v3469 = vpop.f32.mrf.mxu0
          %v3470 = vadd.f32 %v3277, %v3469
          %3471 = vmatprep.mubr.bf16.mxu0 %v2573
          %3472 = vmatmul.mubr.bf16.gmra.mxu0 %v2572
          %v3473 = vpop.f32.mrf.mxu0
          %v3474 = vadd.f32 %v3281, %v3473
          %v3475 = vpop.f32.mrf.mxu0
          %v3476 = vadd.f32 %v3283, %v3475
          %v3477 = vpop.f32.mrf.mxu0
          %v3478 = vadd.f32 %v3285, %v3477
          %v3479 = vpop.f32.mrf.mxu0
          %v3480 = vadd.f32 %v3287, %v3479
          %3481 = vmatprep.mubr.bf16.mxu0 %v2577
          %3482 = vmatmul.mubr.bf16.gmra.mxu0 %v2576
          %v3483 = vpop.f32.mrf.mxu0
          %v3484 = vadd.f32 %v3291, %v3483
          %v3485 = vpop.f32.mrf.mxu0
          %v3486 = vadd.f32 %v3293, %v3485
          %v3487 = vpop.f32.mrf.mxu0
          %v3488 = vadd.f32 %v3295, %v3487
          %v3489 = vpop.f32.mrf.mxu0
          %v3490 = vadd.f32 %v3297, %v3489
          %3491 = vdwg.mxu0
          %3492 = vmatprep.subr.bf16.mxu0 0
          %3493 = vmatpush1.bf16.msra.mxu0 %v2937
          %3494 = vmatprep.subr.bf16.mxu0 0
          %3495 = vmatpush1.bf16.msra.mxu0 %v2934
          %3496 = vmatprep.subr.bf16.mxu0 0
          %3497 = vmatpush1.bf16.msra.mxu0 %v2931
          %3498 = vmatprep.subr.bf16.mxu0 0
          %3499 = vmatpush1.bf16.msra.mxu0 %v2928
          %3500 = vmatprep.subr.bf16.mxu0 0
          %3501 = vmatpush1.bf16.msra.mxu0 %v2925
          %3502 = vmatprep.subr.bf16.mxu0 0
          %3503 = vmatpush1.bf16.msra.mxu0 %v2922
          %3504 = vmatprep.subr.bf16.mxu0 0
          %3505 = vmatpush1.bf16.msra.mxu0 %v2919
          %3506 = vmatprep.subr.bf16.mxu0 0
          %3507 = vmatpush1.bf16.msra.mxu0 %v2916
          %3508 = vmatprep.subr.bf16.mxu0 0
          %3509 = vmatpush2.bf16.msra.mxu0 %v2961
          %3510 = vmatprep.subr.bf16.mxu0 0
          %3511 = vmatpush2.bf16.msra.mxu0 %v2958
          %3512 = vmatprep.subr.bf16.mxu0 0
          %3513 = vmatpush2.bf16.msra.mxu0 %v2955
          %3514 = vmatprep.subr.bf16.mxu0 0
          %3515 = vmatpush2.bf16.msra.mxu0 %v2952
          %3516 = vmatprep.subr.bf16.mxu0 0
          %3517 = vmatpush2.bf16.msra.mxu0 %v2949
          %3518 = vmatprep.subr.bf16.mxu0 0
          %3519 = vmatpush2.bf16.msra.mxu0 %v2946
          %3520 = vmatprep.subr.bf16.mxu0 0
          %3521 = vmatpush2.bf16.msra.mxu0 %v2943
          %3522 = vmatprep.subr.bf16.mxu0 0
          %3523 = vmatpush2.bf16.msra.mxu0 %v2940
          %3524 = vmatprep.mubr.bf16.mxu0 %v2515
          %3525 = vmatmul.mubr.bf16.gmra.mxu0 %v2514
          %v3526 = vpop.f32.mrf.mxu0
          %v3527 = vadd.f32 %v2590, %v3526
          %v3528 = vpop.f32.mrf.mxu0
          %v3529 = vpop.f32.mrf.mxu0
          %v3530 = vadd.f32 %v2590, %v3529
          %v3531 = vpop.f32.mrf.mxu0
          %3532 = vmatprep.mubr.bf16.mxu0 %v2519
          %3533 = vmatmul.mubr.bf16.gmra.mxu0 %v2518
          %v3534 = vpop.f32.mrf.mxu0
          %v3535 = vadd.f32 %v2590, %v3534
          %v3536 = vpop.f32.mrf.mxu0
          %v3537 = vpop.f32.mrf.mxu0
          %v3538 = vadd.f32 %v2590, %v3537
          %v3539 = vpop.f32.mrf.mxu0
          %3540 = vmatprep.mubr.bf16.mxu0 %v2523
          %3541 = vmatmul.mubr.bf16.gmra.mxu0 %v2522
          %v3542 = vpop.f32.mrf.mxu0
          %v3543 = vadd.f32 %v2590, %v3542
          %v3544 = vpop.f32.mrf.mxu0
          %v3545 = vpop.f32.mrf.mxu0
          %v3546 = vadd.f32 %v2590, %v3545
          %v3547 = vpop.f32.mrf.mxu0
          %3548 = vmatprep.mubr.bf16.mxu0 %v2527
          %3549 = vmatmul.mubr.bf16.gmra.mxu0 %v2526
          %v3550 = vpop.f32.mrf.mxu0
          %v3551 = vadd.f32 %v2590, %v3550
          %v3552 = vpop.f32.mrf.mxu0
          %v3553 = vpop.f32.mrf.mxu0
          %v3554 = vadd.f32 %v2590, %v3553
          %v3555 = vpop.f32.mrf.mxu0
          %3556 = vmatprep.mubr.bf16.mxu0 %v2531
          %3557 = vmatmul.mubr.bf16.gmra.mxu0 %v2530
          %v3558 = vpop.f32.mrf.mxu0
          %v3559 = vadd.f32 %v2590, %v3558
          %v3560 = vpop.f32.mrf.mxu0
          %v3561 = vpop.f32.mrf.mxu0
          %v3562 = vadd.f32 %v2590, %v3561
          %v3563 = vpop.f32.mrf.mxu0
          %3564 = vmatprep.mubr.bf16.mxu0 %v2535
          %3565 = vmatmul.mubr.bf16.gmra.mxu0 %v2534
          %v3566 = vpop.f32.mrf.mxu0
          %v3567 = vadd.f32 %v2590, %v3566
          %v3568 = vpop.f32.mrf.mxu0
          %v3569 = vpop.f32.mrf.mxu0
          %v3570 = vadd.f32 %v2590, %v3569
          %v3571 = vpop.f32.mrf.mxu0
          %3572 = vmatprep.mubr.bf16.mxu0 %v2539
          %3573 = vmatmul.mubr.bf16.gmra.mxu0 %v2538
          %v3574 = vpop.f32.mrf.mxu0
          %v3575 = vadd.f32 %v2590, %v3574
          %v3576 = vpop.f32.mrf.mxu0
          %v3577 = vpop.f32.mrf.mxu0
          %v3578 = vadd.f32 %v2590, %v3577
          %v3579 = vpop.f32.mrf.mxu0
          %3580 = vmatprep.mubr.bf16.mxu0 %v2543
          %3581 = vmatmul.mubr.bf16.gmra.mxu0 %v2542
          %v3582 = vpop.f32.mrf.mxu0
          %v3583 = vadd.f32 %v2590, %v3582
          %v3584 = vpop.f32.mrf.mxu0
          %v3585 = vpop.f32.mrf.mxu0
          %v3586 = vadd.f32 %v2590, %v3585
          %v3587 = vpop.f32.mrf.mxu0
          %3588 = vmatprep.mubr.bf16.mxu0 %v2547
          %3589 = vmatmul.mubr.bf16.gmra.mxu0 %v2546
          %v3590 = vpop.f32.mrf.mxu0
          %v3591 = vadd.f32 %v2590, %v3590
          %v3592 = vpop.f32.mrf.mxu0
          %v3593 = vpop.f32.mrf.mxu0
          %v3594 = vadd.f32 %v2590, %v3593
          %v3595 = vpop.f32.mrf.mxu0
          %3596 = vmatprep.mubr.bf16.mxu0 %v2551
          %3597 = vmatmul.mubr.bf16.gmra.mxu0 %v2550
          %v3598 = vpop.f32.mrf.mxu0
          %v3599 = vadd.f32 %v2590, %v3598
          %v3600 = vpop.f32.mrf.mxu0
          %v3601 = vpop.f32.mrf.mxu0
          %v3602 = vadd.f32 %v2590, %v3601
          %v3603 = vpop.f32.mrf.mxu0
          %3604 = vmatprep.mubr.bf16.mxu0 %v2555
          %3605 = vmatmul.mubr.bf16.gmra.mxu0 %v2554
          %v3606 = vpop.f32.mrf.mxu0
          %v3607 = vadd.f32 %v2590, %v3606
          %v3608 = vpop.f32.mrf.mxu0
          %v3609 = vpop.f32.mrf.mxu0
          %v3610 = vadd.f32 %v2590, %v3609
          %v3611 = vpop.f32.mrf.mxu0
          %3612 = vmatprep.mubr.bf16.mxu0 %v2559
          %3613 = vmatmul.mubr.bf16.gmra.mxu0 %v2558
          %v3614 = vpop.f32.mrf.mxu0
          %v3615 = vadd.f32 %v2590, %v3614
          %v3616 = vpop.f32.mrf.mxu0
          %v3617 = vpop.f32.mrf.mxu0
          %v3618 = vadd.f32 %v2590, %v3617
          %v3619 = vpop.f32.mrf.mxu0
          %3620 = vmatprep.mubr.bf16.mxu0 %v2563
          %3621 = vmatmul.mubr.bf16.gmra.mxu0 %v2562
          %v3622 = vpop.f32.mrf.mxu0
          %v3623 = vadd.f32 %v2590, %v3622
          %v3624 = vpop.f32.mrf.mxu0
          %v3625 = vpop.f32.mrf.mxu0
          %v3626 = vadd.f32 %v2590, %v3625
          %v3627 = vpop.f32.mrf.mxu0
          %3628 = vmatprep.mubr.bf16.mxu0 %v2567
          %3629 = vmatmul.mubr.bf16.gmra.mxu0 %v2566
          %v3630 = vpop.f32.mrf.mxu0
          %v3631 = vadd.f32 %v2590, %v3630
          %v3632 = vpop.f32.mrf.mxu0
          %v3633 = vpop.f32.mrf.mxu0
          %v3634 = vadd.f32 %v2590, %v3633
          %v3635 = vpop.f32.mrf.mxu0
          %3636 = vmatprep.mubr.bf16.mxu0 %v2571
          %3637 = vmatmul.mubr.bf16.gmra.mxu0 %v2570
          %v3638 = vpop.f32.mrf.mxu0
          %v3639 = vadd.f32 %v2590, %v3638
          %v3640 = vpop.f32.mrf.mxu0
          %v3641 = vpop.f32.mrf.mxu0
          %v3642 = vadd.f32 %v2590, %v3641
          %v3643 = vpop.f32.mrf.mxu0
          %3644 = vmatprep.mubr.bf16.mxu0 %v2575
          %3645 = vmatmul.mubr.bf16.gmra.mxu0 %v2574
          %v3646 = vpop.f32.mrf.mxu0
          %v3647 = vadd.f32 %v2590, %v3646
          %v3648 = vpop.f32.mrf.mxu0
          %v3649 = vpop.f32.mrf.mxu0
          %v3650 = vadd.f32 %v2590, %v3649
          %v3651 = vpop.f32.mrf.mxu0
          %3652 = vdwg.mxu0
          %3653 = vmatprep.subr.bf16.mxu0 0
          %3654 = vmatpush1.bf16.msra.mxu0 %v2985
          %3655 = vmatprep.subr.bf16.mxu0 0
          %3656 = vmatpush1.bf16.msra.mxu0 %v2982
          %3657 = vmatprep.subr.bf16.mxu0 0
          %3658 = vmatpush1.bf16.msra.mxu0 %v2979
          %3659 = vmatprep.subr.bf16.mxu0 0
          %3660 = vmatpush1.bf16.msra.mxu0 %v2976
          %3661 = vmatprep.subr.bf16.mxu0 0
          %3662 = vmatpush1.bf16.msra.mxu0 %v2973
          %3663 = vmatprep.subr.bf16.mxu0 0
          %3664 = vmatpush1.bf16.msra.mxu0 %v2970
          %3665 = vmatprep.subr.bf16.mxu0 0
          %3666 = vmatpush1.bf16.msra.mxu0 %v2967
          %3667 = vmatprep.subr.bf16.mxu0 0
          %3668 = vmatpush1.bf16.msra.mxu0 %v2964
          %3669 = vmatprep.subr.bf16.mxu0 0
          %3670 = vmatpush2.bf16.msra.mxu0 %v3009
          %3671 = vmatprep.subr.bf16.mxu0 0
          %3672 = vmatpush2.bf16.msra.mxu0 %v3006
          %3673 = vmatprep.subr.bf16.mxu0 0
          %3674 = vmatpush2.bf16.msra.mxu0 %v3003
          %3675 = vmatprep.subr.bf16.mxu0 0
          %3676 = vmatpush2.bf16.msra.mxu0 %v3000
          %3677 = vmatprep.subr.bf16.mxu0 0
          %3678 = vmatpush2.bf16.msra.mxu0 %v2997
          %3679 = vmatprep.subr.bf16.mxu0 0
          %3680 = vmatpush2.bf16.msra.mxu0 %v2994
          %3681 = vmatprep.subr.bf16.mxu0 0
          %3682 = vmatpush2.bf16.msra.mxu0 %v2991
          %3683 = vmatprep.subr.bf16.mxu0 0
          %3684 = vmatpush2.bf16.msra.mxu0 %v2988
          %3685 = vmatprep.mubr.bf16.mxu0 %v2517
          %3686 = vmatmul.mubr.bf16.gmra.mxu0 %v2516
          %v3687 = vpop.f32.mrf.mxu0
          %v3688 = vadd.f32 %v3527, %v3687
          %v3689 = vpop.f32.mrf.mxu0
          %v3690 = vpop.f32.mrf.mxu0
          %v3691 = vadd.f32 %v3530, %v3690
          %v3692 = vpop.f32.mrf.mxu0
          %3693 = vmatprep.mubr.bf16.mxu0 %v2521
          %3694 = vmatmul.mubr.bf16.gmra.mxu0 %v2520
          %v3695 = vpop.f32.mrf.mxu0
          %v3696 = vadd.f32 %v3535, %v3695
          %v3697 = vpop.f32.mrf.mxu0
          %v3698 = vpop.f32.mrf.mxu0
          %v3699 = vadd.f32 %v3538, %v3698
          %v3700 = vpop.f32.mrf.mxu0
          %3701 = vmatprep.mubr.bf16.mxu0 %v2525
          %3702 = vmatmul.mubr.bf16.gmra.mxu0 %v2524
          %v3703 = vpop.f32.mrf.mxu0
          %v3704 = vadd.f32 %v3543, %v3703
          %v3705 = vpop.f32.mrf.mxu0
          %v3706 = vpop.f32.mrf.mxu0
          %v3707 = vadd.f32 %v3546, %v3706
          %v3708 = vpop.f32.mrf.mxu0
          %3709 = vmatprep.mubr.bf16.mxu0 %v2529
          %3710 = vmatmul.mubr.bf16.gmra.mxu0 %v2528
          %v3711 = vpop.f32.mrf.mxu0
          %v3712 = vadd.f32 %v3551, %v3711
          %v3713 = vpop.f32.mrf.mxu0
          %v3714 = vpop.f32.mrf.mxu0
          %v3715 = vadd.f32 %v3554, %v3714
          %v3716 = vpop.f32.mrf.mxu0
          %3717 = vmatprep.mubr.bf16.mxu0 %v2533
          %3718 = vmatmul.mubr.bf16.gmra.mxu0 %v2532
          %v3719 = vpop.f32.mrf.mxu0
          %v3720 = vadd.f32 %v3559, %v3719
          %v3721 = vpop.f32.mrf.mxu0
          %v3722 = vpop.f32.mrf.mxu0
          %v3723 = vadd.f32 %v3562, %v3722
          %v3724 = vpop.f32.mrf.mxu0
          %3725 = vmatprep.mubr.bf16.mxu0 %v2537
          %3726 = vmatmul.mubr.bf16.gmra.mxu0 %v2536
          %v3727 = vpop.f32.mrf.mxu0
          %v3728 = vadd.f32 %v3567, %v3727
          %v3729 = vpop.f32.mrf.mxu0
          %v3730 = vpop.f32.mrf.mxu0
          %v3731 = vadd.f32 %v3570, %v3730
          %v3732 = vpop.f32.mrf.mxu0
          %3733 = vmatprep.mubr.bf16.mxu0 %v2541
          %3734 = vmatmul.mubr.bf16.gmra.mxu0 %v2540
          %v3735 = vpop.f32.mrf.mxu0
          %v3736 = vadd.f32 %v3575, %v3735
          %v3737 = vpop.f32.mrf.mxu0
          %v3738 = vpop.f32.mrf.mxu0
          %v3739 = vadd.f32 %v3578, %v3738
          %v3740 = vpop.f32.mrf.mxu0
          %3741 = vmatprep.mubr.bf16.mxu0 %v2545
          %3742 = vmatmul.mubr.bf16.gmra.mxu0 %v2544
          %v3743 = vpop.f32.mrf.mxu0
          %v3744 = vadd.f32 %v3583, %v3743
          %v3745 = vpop.f32.mrf.mxu0
          %v3746 = vpop.f32.mrf.mxu0
          %v3747 = vadd.f32 %v3586, %v3746
          %v3748 = vpop.f32.mrf.mxu0
          %3749 = vmatprep.mubr.bf16.mxu0 %v2549
          %3750 = vmatmul.mubr.bf16.gmra.mxu0 %v2548
          %v3751 = vpop.f32.mrf.mxu0
          %v3752 = vadd.f32 %v3591, %v3751
          %v3753 = vpop.f32.mrf.mxu0
          %v3754 = vpop.f32.mrf.mxu0
          %v3755 = vadd.f32 %v3594, %v3754
          %v3756 = vpop.f32.mrf.mxu0
          %3757 = vmatprep.mubr.bf16.mxu0 %v2553
          %3758 = vmatmul.mubr.bf16.gmra.mxu0 %v2552
          %v3759 = vpop.f32.mrf.mxu0
          %v3760 = vadd.f32 %v3599, %v3759
          %v3761 = vpop.f32.mrf.mxu0
          %v3762 = vpop.f32.mrf.mxu0
          %v3763 = vadd.f32 %v3602, %v3762
          %v3764 = vpop.f32.mrf.mxu0
          %3765 = vmatprep.mubr.bf16.mxu0 %v2557
          %3766 = vmatmul.mubr.bf16.gmra.mxu0 %v2556
          %v3767 = vpop.f32.mrf.mxu0
          %v3768 = vadd.f32 %v3607, %v3767
          %v3769 = vpop.f32.mrf.mxu0
          %v3770 = vpop.f32.mrf.mxu0
          %v3771 = vadd.f32 %v3610, %v3770
          %v3772 = vpop.f32.mrf.mxu0
          %3773 = vmatprep.mubr.bf16.mxu0 %v2561
          %3774 = vmatmul.mubr.bf16.gmra.mxu0 %v2560
          %v3775 = vpop.f32.mrf.mxu0
          %v3776 = vadd.f32 %v3615, %v3775
          %v3777 = vpop.f32.mrf.mxu0
          %v3778 = vpop.f32.mrf.mxu0
          %v3779 = vadd.f32 %v3618, %v3778
          %v3780 = vpop.f32.mrf.mxu0
          %3781 = vmatprep.mubr.bf16.mxu0 %v2565
          %3782 = vmatmul.mubr.bf16.gmra.mxu0 %v2564
          %v3783 = vpop.f32.mrf.mxu0
          %v3784 = vadd.f32 %v3623, %v3783
          %v3785 = vpop.f32.mrf.mxu0
          %v3786 = vpop.f32.mrf.mxu0
          %v3787 = vadd.f32 %v3626, %v3786
          %v3788 = vpop.f32.mrf.mxu0
          %3789 = vmatprep.mubr.bf16.mxu0 %v2569
          %3790 = vmatmul.mubr.bf16.gmra.mxu0 %v2568
          %v3791 = vpop.f32.mrf.mxu0
          %v3792 = vadd.f32 %v3631, %v3791
          %v3793 = vpop.f32.mrf.mxu0
          %v3794 = vpop.f32.mrf.mxu0
          %v3795 = vadd.f32 %v3634, %v3794
          %v3796 = vpop.f32.mrf.mxu0
          %3797 = vmatprep.mubr.bf16.mxu0 %v2573
          %3798 = vmatmul.mubr.bf16.gmra.mxu0 %v2572
          %v3799 = vpop.f32.mrf.mxu0
          %v3800 = vadd.f32 %v3639, %v3799
          %v3801 = vpop.f32.mrf.mxu0
          %v3802 = vpop.f32.mrf.mxu0
          %v3803 = vadd.f32 %v3642, %v3802
          %v3804 = vpop.f32.mrf.mxu0
          %3805 = vmatprep.mubr.bf16.mxu0 %v2577
          %3806 = vmatmul.mubr.bf16.gmra.mxu0 %v2576
          %v3807 = vpop.f32.mrf.mxu0
          %v3808 = vadd.f32 %v3647, %v3807
          %v3809 = vpop.f32.mrf.mxu0
          %v3810 = vpop.f32.mrf.mxu0
          %v3811 = vadd.f32 %v3650, %v3810
          %v3812 = vpop.f32.mrf.mxu0
          %3813 = vdwg.mxu0
          %vm3814 = vcmp.gt.f32.partialorder %v3334, 0.0
          %vm3815 = vcmp.gt.f32.partialorder %v3336, 0.0
          %vm3816 = vcmp.gt.f32.partialorder %v3688, 0.0
          %vm3817 = vcmp.gt.f32.partialorder %v3338, 0.0
          %vm3818 = vcmp.gt.f32.partialorder %v3340, 0.0
          %vm3819 = vcmp.gt.f32.partialorder %v3691, 0.0
          %vm3820 = vcmp.gt.f32.partialorder %v3344, 0.0
          %vm3821 = vcmp.gt.f32.partialorder %v3346, 0.0
          %vm3822 = vcmp.gt.f32.partialorder %v3696, 0.0
          %vm3823 = vcmp.gt.f32.partialorder %v3348, 0.0
          %vm3824 = vcmp.gt.f32.partialorder %v3350, 0.0
          %vm3825 = vcmp.gt.f32.partialorder %v3699, 0.0
          %vm3826 = vcmp.gt.f32.partialorder %v3354, 0.0
          %vm3827 = vcmp.gt.f32.partialorder %v3356, 0.0
          %vm3828 = vcmp.gt.f32.partialorder %v3704, 0.0
          %vm3829 = vcmp.gt.f32.partialorder %v3358, 0.0
          %vm3830 = vcmp.gt.f32.partialorder %v3360, 0.0
          %vm3831 = vcmp.gt.f32.partialorder %v3707, 0.0
          %vm3832 = vcmp.gt.f32.partialorder %v3364, 0.0
          %vm3833 = vcmp.gt.f32.partialorder %v3366, 0.0
          %vm3834 = vcmp.gt.f32.partialorder %v3712, 0.0
          %vm3835 = vcmp.gt.f32.partialorder %v3368, 0.0
          %vm3836 = vcmp.gt.f32.partialorder %v3370, 0.0
          %vm3837 = vcmp.gt.f32.partialorder %v3715, 0.0
          %vm3838 = vcmp.gt.f32.partialorder %v3374, 0.0
          %vm3839 = vcmp.gt.f32.partialorder %v3376, 0.0
          %vm3840 = vcmp.gt.f32.partialorder %v3720, 0.0
          %vm3841 = vcmp.gt.f32.partialorder %v3378, 0.0
          %vm3842 = vcmp.gt.f32.partialorder %v3380, 0.0
          %vm3843 = vcmp.gt.f32.partialorder %v3723, 0.0
          %vm3844 = vcmp.gt.f32.partialorder %v3384, 0.0
          %vm3845 = vcmp.gt.f32.partialorder %v3386, 0.0
          %vm3846 = vcmp.gt.f32.partialorder %v3728, 0.0
          %vm3847 = vcmp.gt.f32.partialorder %v3388, 0.0
          %vm3848 = vcmp.gt.f32.partialorder %v3390, 0.0
          %vm3849 = vcmp.gt.f32.partialorder %v3731, 0.0
          %vm3850 = vcmp.gt.f32.partialorder %v3394, 0.0
          %vm3851 = vcmp.gt.f32.partialorder %v3396, 0.0
          %vm3852 = vcmp.gt.f32.partialorder %v3736, 0.0
          %vm3853 = vcmp.gt.f32.partialorder %v3398, 0.0
          %vm3854 = vcmp.gt.f32.partialorder %v3400, 0.0
          %vm3855 = vcmp.gt.f32.partialorder %v3739, 0.0
          %vm3856 = vcmp.gt.f32.partialorder %v3404, 0.0
          %vm3857 = vcmp.gt.f32.partialorder %v3406, 0.0
          %vm3858 = vcmp.gt.f32.partialorder %v3744, 0.0
          %vm3859 = vcmp.gt.f32.partialorder %v3408, 0.0
          %vm3860 = vcmp.gt.f32.partialorder %v3410, 0.0
          %vm3861 = vcmp.gt.f32.partialorder %v3747, 0.0
          %vm3862 = vcmp.gt.f32.partialorder %v3414, 0.0
          %vm3863 = vcmp.gt.f32.partialorder %v3416, 0.0
          %vm3864 = vcmp.gt.f32.partialorder %v3752, 0.0
          %vm3865 = vcmp.gt.f32.partialorder %v3418, 0.0
          %vm3866 = vcmp.gt.f32.partialorder %v3420, 0.0
          %vm3867 = vcmp.gt.f32.partialorder %v3755, 0.0
          %vm3868 = vcmp.gt.f32.partialorder %v3424, 0.0
          %vm3869 = vcmp.gt.f32.partialorder %v3426, 0.0
          %vm3870 = vcmp.gt.f32.partialorder %v3760, 0.0
          %vm3871 = vcmp.gt.f32.partialorder %v3428, 0.0
          %vm3872 = vcmp.gt.f32.partialorder %v3430, 0.0
          %vm3873 = vcmp.gt.f32.partialorder %v3763, 0.0
          %vm3874 = vcmp.gt.f32.partialorder %v3434, 0.0
          %vm3875 = vcmp.gt.f32.partialorder %v3436, 0.0
          %vm3876 = vcmp.gt.f32.partialorder %v3768, 0.0
          %vm3877 = vcmp.gt.f32.partialorder %v3438, 0.0
          %vm3878 = vcmp.gt.f32.partialorder %v3440, 0.0
          %vm3879 = vcmp.gt.f32.partialorder %v3771, 0.0
          %vm3880 = vcmp.gt.f32.partialorder %v3444, 0.0
          %vm3881 = vcmp.gt.f32.partialorder %v3446, 0.0
          %vm3882 = vcmp.gt.f32.partialorder %v3776, 0.0
          %vm3883 = vcmp.gt.f32.partialorder %v3448, 0.0
          %vm3884 = vcmp.gt.f32.partialorder %v3450, 0.0
          %vm3885 = vcmp.gt.f32.partialorder %v3779, 0.0
          %vm3886 = vcmp.gt.f32.partialorder %v3454, 0.0
          %vm3887 = vcmp.gt.f32.partialorder %v3456, 0.0
          %vm3888 = vcmp.gt.f32.partialorder %v3784, 0.0
          %vm3889 = vcmp.gt.f32.partialorder %v3458, 0.0
          %vm3890 = vcmp.gt.f32.partialorder %v3460, 0.0
          %vm3891 = vcmp.gt.f32.partialorder %v3787, 0.0
          %vm3892 = vcmp.gt.f32.partialorder %v3464, 0.0
          %vm3893 = vcmp.gt.f32.partialorder %v3466, 0.0
          %vm3894 = vcmp.gt.f32.partialorder %v3792, 0.0
          %vm3895 = vcmp.gt.f32.partialorder %v3468, 0.0
          %vm3896 = vcmp.gt.f32.partialorder %v3470, 0.0
          %vm3897 = vcmp.gt.f32.partialorder %v3795, 0.0
          %vm3898 = vcmp.gt.f32.partialorder %v3474, 0.0
          %vm3899 = vcmp.gt.f32.partialorder %v3476, 0.0
          %vm3900 = vcmp.gt.f32.partialorder %v3800, 0.0
          %vm3901 = vcmp.gt.f32.partialorder %v3478, 0.0
          %vm3902 = vcmp.gt.f32.partialorder %v3480, 0.0
          %vm3903 = vcmp.gt.f32.partialorder %v3803, 0.0
          %vm3904 = vcmp.gt.f32.partialorder %v3484, 0.0
          %vm3905 = vcmp.gt.f32.partialorder %v3486, 0.0
          %vm3906 = vcmp.gt.f32.partialorder %v3808, 0.0
          %vm3907 = vcmp.gt.f32.partialorder %v3488, 0.0
          %vm3908 = vcmp.gt.f32.partialorder %v3490, 0.0
          %vm3909 = vcmp.gt.f32.partialorder %v3811, 0.0
          %v3910 = vmul.f32 %v3334, 0.01
          %v3911 = vmul.f32 %v3336, 0.01
          %v3912 = vmul.f32 %v3688, 0.01
          %v3913 = vmul.f32 %v3338, 0.01
          %v3914 = vmul.f32 %v3340, 0.01
          %v3915 = vmul.f32 %v3691, 0.01
          %v3916 = vmul.f32 %v3344, 0.01
          %v3917 = vmul.f32 %v3346, 0.01
          %v3918 = vmul.f32 %v3696, 0.01
          %v3919 = vmul.f32 %v3348, 0.01
          %v3920 = vmul.f32 %v3350, 0.01
          %v3921 = vmul.f32 %v3699, 0.01
          %v3922 = vmul.f32 %v3354, 0.01
          %v3923 = vmul.f32 %v3356, 0.01
          %v3924 = vmul.f32 %v3704, 0.01
          %v3925 = vmul.f32 %v3358, 0.01
          %v3926 = vmul.f32 %v3360, 0.01
          %v3927 = vmul.f32 %v3707, 0.01
          %v3928 = vmul.f32 %v3364, 0.01
          %v3929 = vmul.f32 %v3366, 0.01
          %v3930 = vmul.f32 %v3712, 0.01
          %v3931 = vmul.f32 %v3368, 0.01
          %v3932 = vmul.f32 %v3370, 0.01
          %v3933 = vmul.f32 %v3715, 0.01
          %v3934 = vmul.f32 %v3374, 0.01
          %v3935 = vmul.f32 %v3376, 0.01
          %v3936 = vmul.f32 %v3720, 0.01
          %v3937 = vmul.f32 %v3378, 0.01
          %v3938 = vmul.f32 %v3380, 0.01
          %v3939 = vmul.f32 %v3723, 0.01
          %v3940 = vmul.f32 %v3384, 0.01
          %v3941 = vmul.f32 %v3386, 0.01
          %v3942 = vmul.f32 %v3728, 0.01
          %v3943 = vmul.f32 %v3388, 0.01
          %v3944 = vmul.f32 %v3390, 0.01
          %v3945 = vmul.f32 %v3731, 0.01
          %v3946 = vmul.f32 %v3394, 0.01
          %v3947 = vmul.f32 %v3396, 0.01
          %v3948 = vmul.f32 %v3736, 0.01
          %v3949 = vmul.f32 %v3398, 0.01
          %v3950 = vmul.f32 %v3400, 0.01
          %v3951 = vmul.f32 %v3739, 0.01
          %v3952 = vmul.f32 %v3404, 0.01
          %v3953 = vmul.f32 %v3406, 0.01
          %v3954 = vmul.f32 %v3744, 0.01
          %v3955 = vmul.f32 %v3408, 0.01
          %v3956 = vmul.f32 %v3410, 0.01
          %v3957 = vmul.f32 %v3747, 0.01
          %v3958 = vmul.f32 %v3414, 0.01
          %v3959 = vmul.f32 %v3416, 0.01
          %v3960 = vmul.f32 %v3752, 0.01
          %v3961 = vmul.f32 %v3418, 0.01
          %v3962 = vmul.f32 %v3420, 0.01
          %v3963 = vmul.f32 %v3755, 0.01
          %v3964 = vmul.f32 %v3424, 0.01
          %v3965 = vmul.f32 %v3426, 0.01
          %v3966 = vmul.f32 %v3760, 0.01
          %v3967 = vmul.f32 %v3428, 0.01
          %v3968 = vmul.f32 %v3430, 0.01
          %v3969 = vmul.f32 %v3763, 0.01
          %v3970 = vmul.f32 %v3434, 0.01
          %v3971 = vmul.f32 %v3436, 0.01
          %v3972 = vmul.f32 %v3768, 0.01
          %v3973 = vmul.f32 %v3438, 0.01
          %v3974 = vmul.f32 %v3440, 0.01
          %v3975 = vmul.f32 %v3771, 0.01
          %v3976 = vmul.f32 %v3444, 0.01
          %v3977 = vmul.f32 %v3446, 0.01
          %v3978 = vmul.f32 %v3776, 0.01
          %v3979 = vmul.f32 %v3448, 0.01
          %v3980 = vmul.f32 %v3450, 0.01
          %v3981 = vmul.f32 %v3779, 0.01
          %v3982 = vmul.f32 %v3454, 0.01
          %v3983 = vmul.f32 %v3456, 0.01
          %v3984 = vmul.f32 %v3784, 0.01
          %v3985 = vmul.f32 %v3458, 0.01
          %v3986 = vmul.f32 %v3460, 0.01
          %v3987 = vmul.f32 %v3787, 0.01
          %v3988 = vmul.f32 %v3464, 0.01
          %v3989 = vmul.f32 %v3466, 0.01
          %v3990 = vmul.f32 %v3792, 0.01
          %v3991 = vmul.f32 %v3468, 0.01
          %v3992 = vmul.f32 %v3470, 0.01
          %v3993 = vmul.f32 %v3795, 0.01
          %v3994 = vmul.f32 %v3474, 0.01
          %v3995 = vmul.f32 %v3476, 0.01
          %v3996 = vmul.f32 %v3800, 0.01
          %v3997 = vmul.f32 %v3478, 0.01
          %v3998 = vmul.f32 %v3480, 0.01
          %v3999 = vmul.f32 %v3803, 0.01
          %v4000 = vmul.f32 %v3484, 0.01
          %v4001 = vmul.f32 %v3486, 0.01
          %v4002 = vmul.f32 %v3808, 0.01
          %v4003 = vmul.f32 %v3488, 0.01
          %v4004 = vmul.f32 %v3490, 0.01
          %v4005 = vmul.f32 %v3811, 0.01
          %v4006 = vsel %vm3814, %v3334, %v3910
          %v4007 = vsel %vm3815, %v3336, %v3911
          %v4008 = vsel %vm3816, %v3688, %v3912
          %v4009 = vsel %vm3817, %v3338, %v3913
          %v4010 = vsel %vm3818, %v3340, %v3914
          %v4011 = vsel %vm3819, %v3691, %v3915
          %v4012 = vsel %vm3820, %v3344, %v3916
          %v4013 = vsel %vm3821, %v3346, %v3917
          %v4014 = vsel %vm3822, %v3696, %v3918
          %v4015 = vsel %vm3823, %v3348, %v3919
          %v4016 = vsel %vm3824, %v3350, %v3920
          %v4017 = vsel %vm3825, %v3699, %v3921
          %v4018 = vsel %vm3826, %v3354, %v3922
          %v4019 = vsel %vm3827, %v3356, %v3923
          %v4020 = vsel %vm3828, %v3704, %v3924
          %v4021 = vsel %vm3829, %v3358, %v3925
          %v4022 = vsel %vm3830, %v3360, %v3926
          %v4023 = vsel %vm3831, %v3707, %v3927
          %v4024 = vsel %vm3832, %v3364, %v3928
          %v4025 = vsel %vm3833, %v3366, %v3929
          %v4026 = vsel %vm3834, %v3712, %v3930
          %v4027 = vsel %vm3835, %v3368, %v3931
          %v4028 = vsel %vm3836, %v3370, %v3932
          %v4029 = vsel %vm3837, %v3715, %v3933
          %v4030 = vsel %vm3838, %v3374, %v3934
          %v4031 = vsel %vm3839, %v3376, %v3935
          %v4032 = vsel %vm3840, %v3720, %v3936
          %v4033 = vsel %vm3841, %v3378, %v3937
          %v4034 = vsel %vm3842, %v3380, %v3938
          %v4035 = vsel %vm3843, %v3723, %v3939
          %v4036 = vsel %vm3844, %v3384, %v3940
          %v4037 = vsel %vm3845, %v3386, %v3941
          %v4038 = vsel %vm3846, %v3728, %v3942
          %v4039 = vsel %vm3847, %v3388, %v3943
          %v4040 = vsel %vm3848, %v3390, %v3944
          %v4041 = vsel %vm3849, %v3731, %v3945
          %v4042 = vsel %vm3850, %v3394, %v3946
          %v4043 = vsel %vm3851, %v3396, %v3947
          %v4044 = vsel %vm3852, %v3736, %v3948
          %v4045 = vsel %vm3853, %v3398, %v3949
          %v4046 = vsel %vm3854, %v3400, %v3950
          %v4047 = vsel %vm3855, %v3739, %v3951
          %v4048 = vsel %vm3856, %v3404, %v3952
          %v4049 = vsel %vm3857, %v3406, %v3953
          %v4050 = vsel %vm3858, %v3744, %v3954
          %v4051 = vsel %vm3859, %v3408, %v3955
          %v4052 = vsel %vm3860, %v3410, %v3956
          %v4053 = vsel %vm3861, %v3747, %v3957
          %v4054 = vsel %vm3862, %v3414, %v3958
          %v4055 = vsel %vm3863, %v3416, %v3959
          %v4056 = vsel %vm3864, %v3752, %v3960
          %v4057 = vsel %vm3865, %v3418, %v3961
          %v4058 = vsel %vm3866, %v3420, %v3962
          %v4059 = vsel %vm3867, %v3755, %v3963
          %v4060 = vsel %vm3868, %v3424, %v3964
          %v4061 = vsel %vm3869, %v3426, %v3965
          %v4062 = vsel %vm3870, %v3760, %v3966
          %v4063 = vsel %vm3871, %v3428, %v3967
          %v4064 = vsel %vm3872, %v3430, %v3968
          %v4065 = vsel %vm3873, %v3763, %v3969
          %v4066 = vsel %vm3874, %v3434, %v3970
          %v4067 = vsel %vm3875, %v3436, %v3971
          %v4068 = vsel %vm3876, %v3768, %v3972
          %v4069 = vsel %vm3877, %v3438, %v3973
          %v4070 = vsel %vm3878, %v3440, %v3974
          %v4071 = vsel %vm3879, %v3771, %v3975
          %v4072 = vsel %vm3880, %v3444, %v3976
          %v4073 = vsel %vm3881, %v3446, %v3977
          %v4074 = vsel %vm3882, %v3776, %v3978
          %v4075 = vsel %vm3883, %v3448, %v3979
          %v4076 = vsel %vm3884, %v3450, %v3980
          %v4077 = vsel %vm3885, %v3779, %v3981
          %v4078 = vsel %vm3886, %v3454, %v3982
          %v4079 = vsel %vm3887, %v3456, %v3983
          %v4080 = vsel %vm3888, %v3784, %v3984
          %v4081 = vsel %vm3889, %v3458, %v3985
          %v4082 = vsel %vm3890, %v3460, %v3986
          %v4083 = vsel %vm3891, %v3787, %v3987
          %v4084 = vsel %vm3892, %v3464, %v3988
          %v4085 = vsel %vm3893, %v3466, %v3989
          %v4086 = vsel %vm3894, %v3792, %v3990
          %v4087 = vsel %vm3895, %v3468, %v3991
          %v4088 = vsel %vm3896, %v3470, %v3992
          %v4089 = vsel %vm3897, %v3795, %v3993
          %v4090 = vsel %vm3898, %v3474, %v3994
          %v4091 = vsel %vm3899, %v3476, %v3995
          %v4092 = vsel %vm3900, %v3800, %v3996
          %v4093 = vsel %vm3901, %v3478, %v3997
          %v4094 = vsel %vm3902, %v3480, %v3998
          %v4095 = vsel %vm3903, %v3803, %v3999
          %v4096 = vsel %vm3904, %v3484, %v4000
          %v4097 = vsel %vm3905, %v3486, %v4001
          %v4098 = vsel %vm3906, %v3808, %v4002
          %v4099 = vsel %vm3907, %v3488, %v4003
          %v4100 = vsel %vm3908, %v3490, %v4004
          %v4101 = vsel %vm3909, %v3811, %v4005
          %v4102 = vld [vmem:[#allocation9 + $0x500] sm:$0xf]
          %v4103 = vld [vmem:[#allocation9 + $0x510] sm:$0xf]
          %v4104 = vld [vmem:[#allocation9 + $0x520] sm:$0xf]
          %v4105 = vld [vmem:[#allocation9 + $0x530] sm:$0xf]
          %v4106 = vld [vmem:[#allocation9 + $0x540] sm:$0xf]
          %v4107 = vld [vmem:[#allocation9 + $0x550] sm:$0xf]
          %v4108 = vld [vmem:[#allocation9 + $0x560] sm:$0xf]
          %v4109 = vld [vmem:[#allocation9 + $0x570] sm:$0xf]
          %v4110 = vld [vmem:[#allocation9 + $0x580] sm:$0xf]
          %v4111 = vld [vmem:[#allocation9 + $0x590] sm:$0xf]
          %v4112 = vld [vmem:[#allocation9 + $0x5a0] sm:$0xf]
          %v4113 = vld [vmem:[#allocation9 + $0x5b0] sm:$0xf]
          %v4114 = vld [vmem:[#allocation9 + $0x5c0] sm:$0xf]
          %v4115 = vld [vmem:[#allocation9 + $0x5d0] sm:$0xf]
          %v4116 = vld [vmem:[#allocation9 + $0x5e0] sm:$0xf]
          %v4117 = vld [vmem:[#allocation9 + $0x5f0] sm:$0xf]
          %v4118 = vld [vmem:[#allocation9 + $0x600] sm:$0xf]
          %v4119 = vld [vmem:[#allocation9 + $0x610] sm:$0xf]
          %v4120 = vld [vmem:[#allocation9 + $0x620] sm:$0xf]
          %v4121 = vld [vmem:[#allocation9 + $0x630] sm:$0xf]
          %v4122 = vld [vmem:[#allocation9 + $0x640] sm:$0xf]
          %v4123 = vld [vmem:[#allocation9 + $0x650] sm:$0xf]
          %v4124 = vld [vmem:[#allocation9 + $0x660] sm:$0xf]
          %v4125 = vld [vmem:[#allocation9 + $0x670] sm:$0xf]
          %v4126 = vld [vmem:[#allocation9 + $0x680] sm:$0xf]
          %v4127 = vld [vmem:[#allocation9 + $0x690] sm:$0xf]
          %v4128 = vld [vmem:[#allocation9 + $0x6a0] sm:$0xf]
          %v4129 = vld [vmem:[#allocation9 + $0x6b0] sm:$0xf]
          %v4130 = vld [vmem:[#allocation9 + $0x6c0] sm:$0xf]
          %v4131 = vld [vmem:[#allocation9 + $0x6d0] sm:$0xf]
          %v4132 = vld [vmem:[#allocation9 + $0x6e0] sm:$0xf]
          %v4133 = vld [vmem:[#allocation9 + $0x6f0] sm:$0xf]
          %v4134 = vld [vmem:[#allocation9 + $0x700] sm:$0xf]
          %v4135 = vld [vmem:[#allocation9 + $0x710] sm:$0xf]
          %v4136 = vld [vmem:[#allocation9 + $0x720] sm:$0xf]
          %v4137 = vld [vmem:[#allocation9 + $0x730] sm:$0xf]
          %v4138 = vld [vmem:[#allocation9 + $0x740] sm:$0xf]
          %v4139 = vld [vmem:[#allocation9 + $0x750] sm:$0xf]
          %v4140 = vld [vmem:[#allocation9 + $0x760] sm:$0xf]
          %v4141 = vld [vmem:[#allocation9 + $0x770] sm:$0xf]
          %v4142 = vld [vmem:[#allocation9 + $0x780] sm:$0xf]
          %v4143 = vld [vmem:[#allocation9 + $0x790] sm:$0xf]
          %v4144 = vld [vmem:[#allocation9 + $0x7a0] sm:$0xf]
          %v4145 = vld [vmem:[#allocation9 + $0x7b0] sm:$0xf]
          %v4146 = vld [vmem:[#allocation9 + $0x7c0] sm:$0xf]
          %v4147 = vld [vmem:[#allocation9 + $0x7d0] sm:$0xf]
          %v4148 = vld [vmem:[#allocation9 + $0x7e0] sm:$0xf]
          %v4149 = vld [vmem:[#allocation9 + $0x7f0] sm:$0xf]
          %v4150 = vld [vmem:[#allocation11 + $0x7] sm:$0x1]
          %v4151 = vpack.c.bf16 %v4009, %v4006
          %v4152 = vpack.c.bf16 %v4010, %v4007
          %v4153 = vpack.c.bf16 %v4011, %v4008
          %v4154 = vpack.c.bf16 %v4015, %v4012
          %v4155 = vpack.c.bf16 %v4016, %v4013
          %v4156 = vpack.c.bf16 %v4017, %v4014
          %v4157 = vpack.c.bf16 %v4021, %v4018
          %v4158 = vpack.c.bf16 %v4022, %v4019
          %v4159 = vpack.c.bf16 %v4023, %v4020
          %v4160 = vpack.c.bf16 %v4027, %v4024
          %v4161 = vpack.c.bf16 %v4028, %v4025
          %v4162 = vpack.c.bf16 %v4029, %v4026
          %v4163 = vpack.c.bf16 %v4033, %v4030
          %v4164 = vpack.c.bf16 %v4034, %v4031
          %v4165 = vpack.c.bf16 %v4035, %v4032
          %v4166 = vpack.c.bf16 %v4039, %v4036
          %v4167 = vpack.c.bf16 %v4040, %v4037
          %v4168 = vpack.c.bf16 %v4041, %v4038
          %v4169 = vpack.c.bf16 %v4045, %v4042
          %v4170 = vpack.c.bf16 %v4046, %v4043
          %v4171 = vpack.c.bf16 %v4047, %v4044
          %v4172 = vpack.c.bf16 %v4051, %v4048
          %v4173 = vpack.c.bf16 %v4052, %v4049
          %v4174 = vpack.c.bf16 %v4053, %v4050
          %v4175 = vpack.c.bf16 %v4057, %v4054
          %v4176 = vpack.c.bf16 %v4058, %v4055
          %v4177 = vpack.c.bf16 %v4059, %v4056
          %v4178 = vpack.c.bf16 %v4063, %v4060
          %v4179 = vpack.c.bf16 %v4064, %v4061
          %v4180 = vpack.c.bf16 %v4065, %v4062
          %v4181 = vpack.c.bf16 %v4069, %v4066
          %v4182 = vpack.c.bf16 %v4070, %v4067
          %v4183 = vpack.c.bf16 %v4071, %v4068
          %v4184 = vpack.c.bf16 %v4075, %v4072
          %v4185 = vpack.c.bf16 %v4076, %v4073
          %v4186 = vpack.c.bf16 %v4077, %v4074
          %v4187 = vpack.c.bf16 %v4081, %v4078
          %v4188 = vpack.c.bf16 %v4082, %v4079
          %v4189 = vpack.c.bf16 %v4083, %v4080
          %v4190 = vpack.c.bf16 %v4087, %v4084
          %v4191 = vpack.c.bf16 %v4088, %v4085
          %v4192 = vpack.c.bf16 %v4089, %v4086
          %v4193 = vpack.c.bf16 %v4093, %v4090
          %v4194 = vpack.c.bf16 %v4094, %v4091
          %v4195 = vpack.c.bf16 %v4095, %v4092
          %v4196 = vpack.c.bf16 %v4099, %v4096
          %v4197 = vpack.c.bf16 %v4100, %v4097
          %v4198 = vpack.c.bf16 %v4101, %v4098
          %v4200 = vlaneseq
          %v4201 = vshrl.u32 %v4200, 7
          %v4202 = vsub.s32 0, %v4201
          %v4203 = vrot.slane %v4150, %v4202
          %v4253 = vunpack.c.l.b16 %v4102
          %v4254 = vunpack.c.l.b16 %v4103
          %v4255 = vunpack.c.l.b16 %v4104
          %v4256 = vunpack.c.l.b16 %v4105
          %v4257 = vunpack.c.l.b16 %v4106
          %v4258 = vunpack.c.l.b16 %v4107
          %v4259 = vunpack.c.l.b16 %v4108
          %v4260 = vunpack.c.l.b16 %v4109
          %v4261 = vunpack.c.l.b16 %v4110
          %v4262 = vunpack.c.l.b16 %v4111
          %v4263 = vunpack.c.l.b16 %v4112
          %v4264 = vunpack.c.l.b16 %v4113
          %v4265 = vunpack.c.l.b16 %v4114
          %v4266 = vunpack.c.l.b16 %v4115
          %v4267 = vunpack.c.l.b16 %v4116
          %v4268 = vunpack.c.l.b16 %v4117
          %v4269 = vunpack.c.l.b16 %v4118
          %v4270 = vunpack.c.l.b16 %v4119
          %v4271 = vunpack.c.l.b16 %v4120
          %v4272 = vunpack.c.l.b16 %v4121
          %v4273 = vunpack.c.l.b16 %v4122
          %v4274 = vunpack.c.l.b16 %v4123
          %v4275 = vunpack.c.l.b16 %v4124
          %v4276 = vunpack.c.l.b16 %v4125
          %v4277 = vunpack.c.l.b16 %v4126
          %v4278 = vunpack.c.l.b16 %v4127
          %v4279 = vunpack.c.l.b16 %v4128
          %v4280 = vunpack.c.l.b16 %v4129
          %v4281 = vunpack.c.l.b16 %v4130
          %v4282 = vunpack.c.l.b16 %v4131
          %v4283 = vunpack.c.l.b16 %v4132
          %v4284 = vunpack.c.l.b16 %v4133
          %v4285 = vunpack.c.l.b16 %v4134
          %v4286 = vunpack.c.l.b16 %v4135
          %v4287 = vunpack.c.l.b16 %v4136
          %v4288 = vunpack.c.l.b16 %v4137
          %v4289 = vunpack.c.l.b16 %v4138
          %v4290 = vunpack.c.l.b16 %v4139
          %v4291 = vunpack.c.l.b16 %v4140
          %v4292 = vunpack.c.l.b16 %v4141
          %v4293 = vunpack.c.l.b16 %v4142
          %v4294 = vunpack.c.l.b16 %v4143
          %v4295 = vunpack.c.l.b16 %v4144
          %v4296 = vunpack.c.l.b16 %v4145
          %v4297 = vunpack.c.l.b16 %v4146
          %v4298 = vunpack.c.l.b16 %v4147
          %v4299 = vunpack.c.l.b16 %v4148
          %v4300 = vunpack.c.l.b16 %v4149
          %v4301 = vpack.c.b16 %v4254, %v4253
          %v4302 = vpack.c.b16 %v4256, %v4255
          %v4303 = vpack.c.b16 %v4258, %v4257
          %v4304 = vpack.c.b16 %v4260, %v4259
          %v4305 = vpack.c.b16 %v4262, %v4261
          %v4306 = vpack.c.b16 %v4264, %v4263
          %v4307 = vpack.c.b16 %v4266, %v4265
          %v4308 = vpack.c.b16 %v4268, %v4267
          %v4309 = vpack.c.b16 %v4270, %v4269
          %v4310 = vpack.c.b16 %v4272, %v4271
          %v4311 = vpack.c.b16 %v4274, %v4273
          %v4312 = vpack.c.b16 %v4276, %v4275
          %v4313 = vpack.c.b16 %v4278, %v4277
          %v4314 = vpack.c.b16 %v4280, %v4279
          %v4315 = vpack.c.b16 %v4282, %v4281
          %v4316 = vpack.c.b16 %v4284, %v4283
          %v4317 = vpack.c.b16 %v4286, %v4285
          %v4318 = vpack.c.b16 %v4288, %v4287
          %v4319 = vpack.c.b16 %v4290, %v4289
          %v4320 = vpack.c.b16 %v4292, %v4291
          %v4321 = vpack.c.b16 %v4294, %v4293
          %v4322 = vpack.c.b16 %v4296, %v4295
          %v4323 = vpack.c.b16 %v4298, %v4297
          %v4324 = vpack.c.b16 %v4300, %v4299
          %4349 = vmatprep.subr.bf16.mxu0 0
          %4350 = vmatpush1.bf16.msra.mxu0 %v4308
          %4351 = vmatprep.subr.bf16.mxu0 0
          %4352 = vmatpush1.bf16.msra.mxu0 %v4307
          %4353 = vmatprep.subr.bf16.mxu0 0
          %4354 = vmatpush1.bf16.msra.mxu0 %v4306
          %4355 = vmatprep.subr.bf16.mxu0 0
          %4356 = vmatpush1.bf16.msra.mxu0 %v4305
          %4357 = vmatprep.subr.bf16.mxu0 0
          %4358 = vmatpush1.bf16.msra.mxu0 %v4304
          %4359 = vmatprep.subr.bf16.mxu0 0
          %4360 = vmatpush1.bf16.msra.mxu0 %v4303
          %4361 = vmatprep.subr.bf16.mxu0 0
          %4362 = vmatpush1.bf16.msra.mxu0 %v4302
          %4363 = vmatprep.subr.bf16.mxu0 0
          %4364 = vmatpush1.bf16.msra.mxu0 %v4301
          %4365 = vmatprep.subr.bf16.mxu0 0
          %4366 = vmatpush2.bf16.msra.mxu0 %v4316
          %4367 = vmatprep.subr.bf16.mxu0 0
          %4368 = vmatpush2.bf16.msra.mxu0 %v4315
          %4369 = vmatprep.subr.bf16.mxu0 0
          %4370 = vmatpush2.bf16.msra.mxu0 %v4314
          %4371 = vmatprep.subr.bf16.mxu0 0
          %4372 = vmatpush2.bf16.msra.mxu0 %v4313
          %4373 = vmatprep.subr.bf16.mxu0 0
          %4374 = vmatpush2.bf16.msra.mxu0 %v4312
          %4375 = vmatprep.subr.bf16.mxu0 0
          %4376 = vmatpush2.bf16.msra.mxu0 %v4311
          %4377 = vmatprep.subr.bf16.mxu0 0
          %4378 = vmatpush2.bf16.msra.mxu0 %v4310
          %4379 = vmatprep.subr.bf16.mxu0 0
          %4380 = vmatpush2.bf16.msra.mxu0 %v4309
          %4381 = vmatprep.mubr.bf16.mxu0 %v4152
          %4382 = vmatmul.mubr.bf16.gmra.mxu0 %v4151
          %v4383 = vpop.f32.mrf.mxu0
          %v4384 = vadd.f32 %v4203, %v4383
          %v4385 = vpop.f32.mrf.mxu0
          %v4386 = vpop.f32.mrf.mxu0
          %v4387 = vadd.f32 %v4203, %v4386
          %v4388 = vpop.f32.mrf.mxu0
          %4389 = vmatprep.mubr.bf16.mxu0 %v4155
          %4390 = vmatmul.mubr.bf16.gmra.mxu0 %v4154
          %v4391 = vpop.f32.mrf.mxu0
          %v4392 = vadd.f32 %v4203, %v4391
          %v4393 = vpop.f32.mrf.mxu0
          %v4394 = vpop.f32.mrf.mxu0
          %v4395 = vadd.f32 %v4203, %v4394
          %v4396 = vpop.f32.mrf.mxu0
          %4397 = vmatprep.mubr.bf16.mxu0 %v4158
          %4398 = vmatmul.mubr.bf16.gmra.mxu0 %v4157
          %v4399 = vpop.f32.mrf.mxu0
          %v4400 = vadd.f32 %v4203, %v4399
          %v4401 = vpop.f32.mrf.mxu0
          %v4402 = vpop.f32.mrf.mxu0
          %v4403 = vadd.f32 %v4203, %v4402
          %v4404 = vpop.f32.mrf.mxu0
          %4405 = vmatprep.mubr.bf16.mxu0 %v4161
          %4406 = vmatmul.mubr.bf16.gmra.mxu0 %v4160
          %v4407 = vpop.f32.mrf.mxu0
          %v4408 = vadd.f32 %v4203, %v4407
          %v4409 = vpop.f32.mrf.mxu0
          %v4410 = vpop.f32.mrf.mxu0
          %v4411 = vadd.f32 %v4203, %v4410
          %v4412 = vpop.f32.mrf.mxu0
          %4413 = vmatprep.mubr.bf16.mxu0 %v4164
          %4414 = vmatmul.mubr.bf16.gmra.mxu0 %v4163
          %v4415 = vpop.f32.mrf.mxu0
          %v4416 = vadd.f32 %v4203, %v4415
          %v4417 = vpop.f32.mrf.mxu0
          %v4418 = vpop.f32.mrf.mxu0
          %v4419 = vadd.f32 %v4203, %v4418
          %v4420 = vpop.f32.mrf.mxu0
          %4421 = vmatprep.mubr.bf16.mxu0 %v4167
          %4422 = vmatmul.mubr.bf16.gmra.mxu0 %v4166
          %v4423 = vpop.f32.mrf.mxu0
          %v4424 = vadd.f32 %v4203, %v4423
          %v4425 = vpop.f32.mrf.mxu0
          %v4426 = vpop.f32.mrf.mxu0
          %v4427 = vadd.f32 %v4203, %v4426
          %v4428 = vpop.f32.mrf.mxu0
          %4429 = vmatprep.mubr.bf16.mxu0 %v4170
          %4430 = vmatmul.mubr.bf16.gmra.mxu0 %v4169
          %v4431 = vpop.f32.mrf.mxu0
          %v4432 = vadd.f32 %v4203, %v4431
          %v4433 = vpop.f32.mrf.mxu0
          %v4434 = vpop.f32.mrf.mxu0
          %v4435 = vadd.f32 %v4203, %v4434
          %v4436 = vpop.f32.mrf.mxu0
          %4437 = vmatprep.mubr.bf16.mxu0 %v4173
          %4438 = vmatmul.mubr.bf16.gmra.mxu0 %v4172
          %v4439 = vpop.f32.mrf.mxu0
          %v4440 = vadd.f32 %v4203, %v4439
          %v4441 = vpop.f32.mrf.mxu0
          %v4442 = vpop.f32.mrf.mxu0
          %v4443 = vadd.f32 %v4203, %v4442
          %v4444 = vpop.f32.mrf.mxu0
          %4445 = vmatprep.mubr.bf16.mxu0 %v4176
          %4446 = vmatmul.mubr.bf16.gmra.mxu0 %v4175
          %v4447 = vpop.f32.mrf.mxu0
          %v4448 = vadd.f32 %v4203, %v4447
          %v4449 = vpop.f32.mrf.mxu0
          %v4450 = vpop.f32.mrf.mxu0
          %v4451 = vadd.f32 %v4203, %v4450
          %v4452 = vpop.f32.mrf.mxu0
          %4453 = vmatprep.mubr.bf16.mxu0 %v4179
          %4454 = vmatmul.mubr.bf16.gmra.mxu0 %v4178
          %v4455 = vpop.f32.mrf.mxu0
          %v4456 = vadd.f32 %v4203, %v4455
          %v4457 = vpop.f32.mrf.mxu0
          %v4458 = vpop.f32.mrf.mxu0
          %v4459 = vadd.f32 %v4203, %v4458
          %v4460 = vpop.f32.mrf.mxu0
          %4461 = vmatprep.mubr.bf16.mxu0 %v4182
          %4462 = vmatmul.mubr.bf16.gmra.mxu0 %v4181
          %v4463 = vpop.f32.mrf.mxu0
          %v4464 = vadd.f32 %v4203, %v4463
          %v4465 = vpop.f32.mrf.mxu0
          %v4466 = vpop.f32.mrf.mxu0
          %v4467 = vadd.f32 %v4203, %v4466
          %v4468 = vpop.f32.mrf.mxu0
          %4469 = vmatprep.mubr.bf16.mxu0 %v4185
          %4470 = vmatmul.mubr.bf16.gmra.mxu0 %v4184
          %v4471 = vpop.f32.mrf.mxu0
          %v4472 = vadd.f32 %v4203, %v4471
          %v4473 = vpop.f32.mrf.mxu0
          %v4474 = vpop.f32.mrf.mxu0
          %v4475 = vadd.f32 %v4203, %v4474
          %v4476 = vpop.f32.mrf.mxu0
          %4477 = vmatprep.mubr.bf16.mxu0 %v4188
          %4478 = vmatmul.mubr.bf16.gmra.mxu0 %v4187
          %v4479 = vpop.f32.mrf.mxu0
          %v4480 = vadd.f32 %v4203, %v4479
          %v4481 = vpop.f32.mrf.mxu0
          %v4482 = vpop.f32.mrf.mxu0
          %v4483 = vadd.f32 %v4203, %v4482
          %v4484 = vpop.f32.mrf.mxu0
          %4485 = vmatprep.mubr.bf16.mxu0 %v4191
          %4486 = vmatmul.mubr.bf16.gmra.mxu0 %v4190
          %v4487 = vpop.f32.mrf.mxu0
          %v4488 = vadd.f32 %v4203, %v4487
          %v4489 = vpop.f32.mrf.mxu0
          %v4490 = vpop.f32.mrf.mxu0
          %v4491 = vadd.f32 %v4203, %v4490
          %v4492 = vpop.f32.mrf.mxu0
          %4493 = vmatprep.mubr.bf16.mxu0 %v4194
          %4494 = vmatmul.mubr.bf16.gmra.mxu0 %v4193
          %v4495 = vpop.f32.mrf.mxu0
          %v4496 = vadd.f32 %v4203, %v4495
          %v4497 = vpop.f32.mrf.mxu0
          %v4498 = vpop.f32.mrf.mxu0
          %v4499 = vadd.f32 %v4203, %v4498
          %v4500 = vpop.f32.mrf.mxu0
          %4501 = vmatprep.mubr.bf16.mxu0 %v4197
          %4502 = vmatmul.mubr.bf16.gmra.mxu0 %v4196
          %v4503 = vpop.f32.mrf.mxu0
          %v4504 = vadd.f32 %v4203, %v4503
          %v4505 = vpop.f32.mrf.mxu0
          %v4506 = vpop.f32.mrf.mxu0
          %v4507 = vadd.f32 %v4203, %v4506
          %v4508 = vpop.f32.mrf.mxu0
          %4509 = vdwg.mxu0
          %4510 = vmatprep.subr.bf16.mxu0 0
          %4511 = vmatpush1.bf16.msra.mxu0 %v4324
          %4512 = vmatprep.subr.bf16.mxu0 0
          %4513 = vmatpush1.bf16.msra.mxu0 %v4323
          %4514 = vmatprep.subr.bf16.mxu0 0
          %4515 = vmatpush1.bf16.msra.mxu0 %v4322
          %4516 = vmatprep.subr.bf16.mxu0 0
          %4517 = vmatpush1.bf16.msra.mxu0 %v4321
          %4518 = vmatprep.subr.bf16.mxu0 0
          %4519 = vmatpush1.bf16.msra.mxu0 %v4320
          %4520 = vmatprep.subr.bf16.mxu0 0
          %4521 = vmatpush1.bf16.msra.mxu0 %v4319
          %4522 = vmatprep.subr.bf16.mxu0 0
          %4523 = vmatpush1.bf16.msra.mxu0 %v4318
          %4524 = vmatprep.subr.bf16.mxu0 0
          %4525 = vmatpush1.bf16.msra.mxu0 %v4317
          %4526 = vmatprep.subr.bf16.mxu0 0
          %4527 = vmatpush2.bf16.msra.mxu0 0
          %4528 = vmatprep.subr.bf16.mxu0 0
          %4529 = vmatpush2.bf16.msra.mxu0 0
          %4530 = vmatprep.subr.bf16.mxu0 0
          %4531 = vmatpush2.bf16.msra.mxu0 0
          %4532 = vmatprep.subr.bf16.mxu0 0
          %4533 = vmatpush2.bf16.msra.mxu0 0
          %4534 = vmatprep.subr.bf16.mxu0 0
          %4535 = vmatpush2.bf16.msra.mxu0 0
          %4536 = vmatprep.subr.bf16.mxu0 0
          %4537 = vmatpush2.bf16.msra.mxu0 0
          %4538 = vmatprep.subr.bf16.mxu0 0
          %4539 = vmatpush2.bf16.msra.mxu0 0
          %4540 = vmatprep.subr.bf16.mxu0 0
          %4541 = vmatpush2.bf16.msra.mxu0 0
          %4542 = vmatprep.mubr.bf16.mxu0 0
          %4543 = vmatmul.mubr.bf16.gmra.mxu0 %v4153
          %v4544 = vpop.f32.mrf.mxu0
          %v4545 = vadd.f32 %v4384, %v4544
          %v4546 = vpop.f32.mrf.mxu0
          %v4547 = vpop.f32.mrf.mxu0
          %v4548 = vadd.f32 %v4387, %v4547
          %v4549 = vpop.f32.mrf.mxu0
          %4550 = vmatprep.mubr.bf16.mxu0 0
          %4551 = vmatmul.mubr.bf16.gmra.mxu0 %v4156
          %v4552 = vpop.f32.mrf.mxu0
          %v4553 = vadd.f32 %v4392, %v4552
          %v4554 = vpop.f32.mrf.mxu0
          %v4555 = vpop.f32.mrf.mxu0
          %v4556 = vadd.f32 %v4395, %v4555
          %v4557 = vpop.f32.mrf.mxu0
          %4558 = vmatprep.mubr.bf16.mxu0 0
          %4559 = vmatmul.mubr.bf16.gmra.mxu0 %v4159
          %v4560 = vpop.f32.mrf.mxu0
          %v4561 = vadd.f32 %v4400, %v4560
          %v4562 = vpop.f32.mrf.mxu0
          %v4563 = vpop.f32.mrf.mxu0
          %v4564 = vadd.f32 %v4403, %v4563
          %v4565 = vpop.f32.mrf.mxu0
          %4566 = vmatprep.mubr.bf16.mxu0 0
          %4567 = vmatmul.mubr.bf16.gmra.mxu0 %v4162
          %v4568 = vpop.f32.mrf.mxu0
          %v4569 = vadd.f32 %v4408, %v4568
          %v4570 = vpop.f32.mrf.mxu0
          %v4571 = vpop.f32.mrf.mxu0
          %v4572 = vadd.f32 %v4411, %v4571
          %v4573 = vpop.f32.mrf.mxu0
          %4574 = vmatprep.mubr.bf16.mxu0 0
          %4575 = vmatmul.mubr.bf16.gmra.mxu0 %v4165
          %v4576 = vpop.f32.mrf.mxu0
          %v4577 = vadd.f32 %v4416, %v4576
          %v4578 = vpop.f32.mrf.mxu0
          %v4579 = vpop.f32.mrf.mxu0
          %v4580 = vadd.f32 %v4419, %v4579
          %v4581 = vpop.f32.mrf.mxu0
          %4582 = vmatprep.mubr.bf16.mxu0 0
          %4583 = vmatmul.mubr.bf16.gmra.mxu0 %v4168
          %v4584 = vpop.f32.mrf.mxu0
          %v4585 = vadd.f32 %v4424, %v4584
          %v4586 = vpop.f32.mrf.mxu0
          %v4587 = vpop.f32.mrf.mxu0
          %v4588 = vadd.f32 %v4427, %v4587
          %v4589 = vpop.f32.mrf.mxu0
          %4590 = vmatprep.mubr.bf16.mxu0 0
          %4591 = vmatmul.mubr.bf16.gmra.mxu0 %v4171
          %v4592 = vpop.f32.mrf.mxu0
          %v4593 = vadd.f32 %v4432, %v4592
          %v4594 = vpop.f32.mrf.mxu0
          %v4595 = vpop.f32.mrf.mxu0
          %v4596 = vadd.f32 %v4435, %v4595
          %v4597 = vpop.f32.mrf.mxu0
          %4598 = vmatprep.mubr.bf16.mxu0 0
          %4599 = vmatmul.mubr.bf16.gmra.mxu0 %v4174
          %v4600 = vpop.f32.mrf.mxu0
          %v4601 = vadd.f32 %v4440, %v4600
          %v4602 = vpop.f32.mrf.mxu0
          %v4603 = vpop.f32.mrf.mxu0
          %v4604 = vadd.f32 %v4443, %v4603
          %v4605 = vpop.f32.mrf.mxu0
          %4606 = vmatprep.mubr.bf16.mxu0 0
          %4607 = vmatmul.mubr.bf16.gmra.mxu0 %v4177
          %v4608 = vpop.f32.mrf.mxu0
          %v4609 = vadd.f32 %v4448, %v4608
          %v4610 = vpop.f32.mrf.mxu0
          %v4611 = vpop.f32.mrf.mxu0
          %v4612 = vadd.f32 %v4451, %v4611
          %v4613 = vpop.f32.mrf.mxu0
          %4614 = vmatprep.mubr.bf16.mxu0 0
          %4615 = vmatmul.mubr.bf16.gmra.mxu0 %v4180
          %v4616 = vpop.f32.mrf.mxu0
          %v4617 = vadd.f32 %v4456, %v4616
          %v4618 = vpop.f32.mrf.mxu0
          %v4619 = vpop.f32.mrf.mxu0
          %v4620 = vadd.f32 %v4459, %v4619
          %v4621 = vpop.f32.mrf.mxu0
          %4622 = vmatprep.mubr.bf16.mxu0 0
          %4623 = vmatmul.mubr.bf16.gmra.mxu0 %v4183
          %v4624 = vpop.f32.mrf.mxu0
          %v4625 = vadd.f32 %v4464, %v4624
          %v4626 = vpop.f32.mrf.mxu0
          %v4627 = vpop.f32.mrf.mxu0
          %v4628 = vadd.f32 %v4467, %v4627
          %v4629 = vpop.f32.mrf.mxu0
          %4630 = vmatprep.mubr.bf16.mxu0 0
          %4631 = vmatmul.mubr.bf16.gmra.mxu0 %v4186
          %v4632 = vpop.f32.mrf.mxu0
          %v4633 = vadd.f32 %v4472, %v4632
          %v4634 = vpop.f32.mrf.mxu0
          %v4635 = vpop.f32.mrf.mxu0
          %v4636 = vadd.f32 %v4475, %v4635
          %v4637 = vpop.f32.mrf.mxu0
          %4638 = vmatprep.mubr.bf16.mxu0 0
          %4639 = vmatmul.mubr.bf16.gmra.mxu0 %v4189
          %v4640 = vpop.f32.mrf.mxu0
          %v4641 = vadd.f32 %v4480, %v4640
          %v4642 = vpop.f32.mrf.mxu0
          %v4643 = vpop.f32.mrf.mxu0
          %v4644 = vadd.f32 %v4483, %v4643
          %v4645 = vpop.f32.mrf.mxu0
          %4646 = vmatprep.mubr.bf16.mxu0 0
          %4647 = vmatmul.mubr.bf16.gmra.mxu0 %v4192
          %v4648 = vpop.f32.mrf.mxu0
          %v4649 = vadd.f32 %v4488, %v4648
          %v4650 = vpop.f32.mrf.mxu0
          %v4651 = vpop.f32.mrf.mxu0
          %v4652 = vadd.f32 %v4491, %v4651
          %v4653 = vpop.f32.mrf.mxu0
          %4654 = vmatprep.mubr.bf16.mxu0 0
          %4655 = vmatmul.mubr.bf16.gmra.mxu0 %v4195
          %v4656 = vpop.f32.mrf.mxu0
          %v4657 = vadd.f32 %v4496, %v4656
          %v4658 = vpop.f32.mrf.mxu0
          %v4659 = vpop.f32.mrf.mxu0
          %v4660 = vadd.f32 %v4499, %v4659
          %v4661 = vpop.f32.mrf.mxu0
          %4662 = vmatprep.mubr.bf16.mxu0 0
          %4663 = vmatmul.mubr.bf16.gmra.mxu0 %v4198
          %v4664 = vpop.f32.mrf.mxu0
          %v4665 = vadd.f32 %v4504, %v4664
          %v4666 = vpop.f32.mrf.mxu0
          %v4667 = vpop.f32.mrf.mxu0
          %v4668 = vadd.f32 %v4507, %v4667
          %v4669 = vpop.f32.mrf.mxu0
          %4670 = vdwg.mxu0
          %v4671 = vtanh.pop %v4545
          %v4672 = vtanh.pop %v4548
          %v4673 = vtanh.pop %v4553
          %v4674 = vtanh.pop %v4556
          %v4675 = vtanh.pop %v4561
          %v4676 = vtanh.pop %v4564
          %v4677 = vtanh.pop %v4569
          %v4678 = vtanh.pop %v4572
          %v4679 = vtanh.pop %v4577
          %v4680 = vtanh.pop %v4580
          %v4681 = vtanh.pop %v4585
          %v4682 = vtanh.pop %v4588
          %v4683 = vtanh.pop %v4593
          %v4684 = vtanh.pop %v4596
          %v4685 = vtanh.pop %v4601
          %v4686 = vtanh.pop %v4604
          %v4687 = vtanh.pop %v4609
          %v4688 = vtanh.pop %v4612
          %v4689 = vtanh.pop %v4617
          %v4690 = vtanh.pop %v4620
          %v4691 = vtanh.pop %v4625
          %v4692 = vtanh.pop %v4628
          %v4693 = vtanh.pop %v4633
          %v4694 = vtanh.pop %v4636
          %v4695 = vtanh.pop %v4641
          %v4696 = vtanh.pop %v4644
          %v4697 = vtanh.pop %v4649
          %v4698 = vtanh.pop %v4652
          %v4699 = vtanh.pop %v4657
          %v4700 = vtanh.pop %v4660
          %v4701 = vtanh.pop %v4665
          %v4702 = vtanh.pop %v4668
          %4703 = vst [vmem:[%s229] sm:$0xff] %v4671
          %4704 = vst [vmem:[%s229 + $0x8] sm:$0xff] %v4672
          %4705 = vst [vmem:[%s229 + $0x10] sm:$0xff] %v4673
          %4706 = vst [vmem:[%s229 + $0x18] sm:$0xff] %v4674
          %4707 = vst [vmem:[%s229 + $0x20] sm:$0xff] %v4675
          %4708 = vst [vmem:[%s229 + $0x28] sm:$0xff] %v4676
          %4709 = vst [vmem:[%s229 + $0x30] sm:$0xff] %v4677
          %4710 = vst [vmem:[%s229 + $0x38] sm:$0xff] %v4678
          %4711 = vst [vmem:[%s229 + $0x40] sm:$0xff] %v4679
          %4712 = vst [vmem:[%s229 + $0x48] sm:$0xff] %v4680
          %4713 = vst [vmem:[%s229 + $0x50] sm:$0xff] %v4681
          %4714 = vst [vmem:[%s229 + $0x58] sm:$0xff] %v4682
          %4715 = vst [vmem:[%s229 + $0x60] sm:$0xff] %v4683
          %4716 = vst [vmem:[%s229 + $0x68] sm:$0xff] %v4684
          %4717 = vst [vmem:[%s229 + $0x70] sm:$0xff] %v4685
          %4718 = vst [vmem:[%s229 + $0x78] sm:$0xff] %v4686
          %4719 = vst [vmem:[%s229 + $0x80] sm:$0xff] %v4687
          %4720 = vst [vmem:[%s229 + $0x88] sm:$0xff] %v4688
          %4721 = vst [vmem:[%s229 + $0x90] sm:$0xff] %v4689
          %4722 = vst [vmem:[%s229 + $0x98] sm:$0xff] %v4690
          %4723 = vst [vmem:[%s229 + $0xa0] sm:$0xff] %v4691
          %4724 = vst [vmem:[%s229 + $0xa8] sm:$0xff] %v4692
          %4725 = vst [vmem:[%s229 + $0xb0] sm:$0xff] %v4693
          %4726 = vst [vmem:[%s229 + $0xb8] sm:$0xff] %v4694
          %4727 = vst [vmem:[%s229 + $0xc0] sm:$0xff] %v4695
          %4728 = vst [vmem:[%s229 + $0xc8] sm:$0xff] %v4696
          %4729 = vst [vmem:[%s229 + $0xd0] sm:$0xff] %v4697
          %4730 = vst [vmem:[%s229 + $0xd8] sm:$0xff] %v4698
          %4731 = vst [vmem:[%s229 + $0xe0] sm:$0xff] %v4699
          %4732 = vst [vmem:[%s229 + $0xe8] sm:$0xff] %v4700
          %4733 = vst [vmem:[%s229 + $0xf0] sm:$0xff] %v4701
          %4734 = vst [vmem:[%s229 + $0xf8] sm:$0xff] %v4702
        $region56: #{tpu_custom_call.1} parent=31 // pred_fallthru
          _
        %s4735 = sand.u32 %s111, 1
        %s4736 = scalar_lea.sflag [#allocation8], %s4735
        %s4737 = sand.u32 %s111, 1
        %s4738 = smul.addr %s4737, 256
        %s4739 = scalar_lea.vmem [#allocation12], %s4738
        // Predicated region
        $region61: #{tpu_custom_call.1} parent=31 // pred_check
          %p4740 = pneg %p121
        $region62: #{tpu_custom_call.1} parent=31 // pred_check_branch
          %4742 = sbr.rel (%p4740) target = $region64
        $region63: #{tpu_custom_call.1} parent=31 // pred_region
          %s4743 = smul.u32 %s25, %s26
          %s4744 = smul.u32 32, %s4743
          %s4746 = ssub.s32 4096, 4096
          %4747 = vsyncadd %s4736, %s4746
          %s4748 = smul.addr %s4744, 128
          %s4749 = scalar_lea.hbm %s3, %s4748
          %s4750 = sshll.u32 %s4739, 4
          %s4751 = int_to_ptr.vmem [resolvable:$true] %s4750
          %4756 = dma.vmem_to_hbm [thread:$0]  %s4751, 4096, %s4749, %s4736, 128, 128, 8
        $region64: #{tpu_custom_call.1} parent=31 // pred_fallthru
          _
      $region32: #{tpu_custom_call.1} parent=5 // pred_fallthru
        _
      %p4757 = scmp.le.s32.totalorder 2, %s16
      // Predicated region
      $region65: #{tpu_custom_call.1} parent=5 // pred_check
        %p4758 = pneg %p4757
      $region66: #{tpu_custom_call.1} parent=5 // pred_check_branch
        %4760 = sbr.rel (%p4758) target = $region68
      $region67: #{tpu_custom_call.1} parent=5 // pred_region
        %s4761 = ssub.s32 %s16, 2
        // Predicated region
        $region69: #{tpu_custom_call.1} parent=67 // pred_check
          %p4762 = pneg %p127
        $region70: #{tpu_custom_call.1} parent=67 // pred_check_branch
          %4764 = sbr.rel (%p4762) target = $region72
        $region71: #{tpu_custom_call.1} parent=67 // pred_region
          %s4765 = sand.u32 %s112, 1
          %s4766 = scalar_lea.sflag [#allocation8], %s4765
          %s4767 = sand.u32 %s112, 1
          %s4768 = smul.addr %s4767, 256
          %s4769 = scalar_lea.vmem [#allocation12], %s4768
          %4770 = dma.done %s4766, 4096
        $region72: #{tpu_custom_call.1} parent=67 // pred_fallthru
          _
      $region68: #{tpu_custom_call.1} parent=5 // pred_fallthru
        _
    $region6: #{tpu_custom_call.1} parent=1 // loop_footer
      %s20 = sadd.s32 1, %s16
    $region7: #{tpu_custom_call.1} parent=1 // loop_footer_branch
      %15 = sbr.rel target = $region3
    $region8: #{tpu_custom_call.1} parent=1 // loop_exit
      _
    %4771 = vsyncpa [#allocation7], 1
    %s4772 = scalar_lea.sflag [#allocation7], 1
    %4773 = vsyncpa %s4772, 1
    %4774 = vsyncpa [#allocation10], 1
    %4775 = vsyncpa [#allocation8], 1
    %s4776 = scalar_lea.sflag [#allocation8], 1
    %4777 = vsyncpa %s4776, 1

</llo_original>
